<compile_context>
chip_gen: v6e
topology: v6e:2x2x1
jax: 0.10.0
libtpu: 0.0.40
codegen_flags: <defaults>
</compile_context>

<pallas_src>
import functools

import numpy as np
import jax
import jax.numpy as jnp
from jax.experimental import pallas as pl
from jax.experimental.pallas import tpu as pltpu

SCALES = (1, 2, 3, 6)


# ------------------------------ fused kernel --------------------------------


def _lspm_fused_kernel(x_ref, xt_ref, wconv_ref, wgap_ref, poolt_ref, mask_ref,
                       wsum_ref, wrest_ref, o_ref, wm_s, acc_s, *, ti):
    # Grid: (B, n_row_tiles).  Row-tile axis is the reduction axis (last).
    # x_ref:     (C, HW)      bf16  one batch element, channel-major, spatial flat
    # xt_ref:    (ti, C)      bf16  row tile of x^T (pre-transposed in wrapper)
    # wconv_ref: (S2PAD, C)   bf16  stacked, zero-padded 1x1 conv (C -> S*S) weights
    # wgap_ref:  (4C, C)      bf16  stacked GAP 1x1 conv weights
    # poolt_ref: (HW, S2PAD)  bf16  stacked, zero-padded adaptive-avg-pool matrices^T
    # mask_ref:  (4C, S2PAD)  f32   block-diagonal 0/1 mask (scale-s rows x scale-s cols)
    # wsum_ref:  (C, C)       bf16  sum of the five (C,C) blocks of the final conv
    # wrest_ref: (C, 4C)      bf16  final-conv blocks for [LSPM_1..LSPM_6]
    # wm_s:      (C, HW)      bf16  scratch: Wrest @ blockdiag(GAP) @ conv_blk(x)
    # acc_s:     (C, HW)      f32   scratch: output accumulator
    t = pl.program_id(1)

    # ---------------- per-batch invariants (hoisted out of the tile loop) ----
    @pl.when(t == 0)
    def _init():
        x_bf = x_ref[...]
        # Per-scale 1x1 convs / pooling / GAP path, all batched & padded.
        xc_all = jnp.dot(wconv_ref[...], x_bf,
                         preferred_element_type=jnp.float32)             # (S2PAD, HW)
        gap_pre = jnp.dot(x_bf, poolt_ref[...],
                          preferred_element_type=jnp.float32)            # (C, S2PAD)
        g_all = jnp.dot(wgap_ref[...], gap_pre.astype(jnp.bfloat16),
                        preferred_element_type=jnp.float32)              # (4C, S2PAD)
        g_all = jnp.maximum(g_all, 0.0) * mask_ref[...]
        # Fold the final conv's non-identity blocks into the GAP path:
        #   Wrest @ blockdiag(GAP_S) -> (C, S2PAD)
        wg = jnp.dot(wrest_ref[...], g_all.astype(jnp.bfloat16),
                     preferred_element_type=jnp.float32)
        # wm = Wrest @ stack_S(GAP_S @ conv_S(x))  -> (C, HW)
        wm_s[...] = jnp.dot(wg.astype(jnp.bfloat16), xc_all.astype(jnp.bfloat16),
                            preferred_element_type=jnp.float32).astype(jnp.bfloat16)
        # Accumulator starts at Wsum @ x (folded identity / skip paths).
        acc_s[...] = jnp.dot(wsum_ref[...], x_bf,
                             preferred_element_type=jnp.float32)         # (C, HW)

    # ---------------- row-tiled softmax(x^T x) + contraction ----------------
    logits = jnp.dot(xt_ref[...], x_ref[...],
                     preferred_element_type=jnp.float32)                 # (ti, HW)
    m = jnp.max(logits, axis=-1, keepdims=True)
    e = jnp.exp(logits - m)                                              # f32 (v5e-safe)
    denom = jnp.sum(e, axis=-1, keepdims=True)                           # (ti, 1)
    inv = pl.reciprocal(denom, approx=True)                              # EUP, (ti, 1)

    # Fold 1/denom into the (C, ti) slice of wm (MM1 row i == wm column i),
    # instead of scaling the whole (ti, HW) tile.
    start = pl.multiple_of(t * ti, ti)
    wm_tile = wm_s[:, pl.ds(start, ti)].astype(jnp.float32)              # (C, ti)
    scaled = (wm_tile * inv.reshape(1, ti)).astype(jnp.bfloat16)
    acc_s[...] += jnp.dot(scaled, e.astype(jnp.bfloat16),
                          preferred_element_type=jnp.float32)            # (C, HW)

    @pl.when(t == pl.num_programs(1) - 1)
    def _finalize():
        o_ref[...] = acc_s[...].astype(o_ref.dtype)


# -------------------------------- wrapper ------------------------------------


def _blockdiag_mask(C, scales, total_pad):
    mask = np.zeros((len(scales) * C, total_pad), np.float32)
    off = 0
    for i, s in enumerate(scales):
        mask[i * C:(i + 1) * C, off:off + s * s] = 1.0
        off += s * s
    return mask


def _pick_row_tile(hw):
    for cand in (512, 256, 128):
        if hw % cand == 0:
            return cand
    return hw


def _default_vmem_limit():
    # ~100 MiB on 128-MiB chips (v5e/v6e), ~48 MiB on 64-MiB v7x.
    try:
        cap = int(getattr(pltpu.get_tpu_info(), "vmem_capacity_bytes"))
    except Exception:
        cap = 0
    if cap <= 0:
        return 48 * 1024 * 1024
    return min(100 * 1024 * 1024, (cap * 3) // 4)


def lspm_forward(x, params):
    """x: (B, C, H, W) NCHW (like PyTorch). Returns (B, C, H, W)."""
    B, C, H, W = x.shape
    HW = H * W
    x_flat = x.reshape(B, C, HW)
    x_bf = x_flat.astype(jnp.bfloat16)                          # (B, C, HW)
    xt_bf = jnp.transpose(x_flat, (0, 2, 1)).astype(jnp.bfloat16)  # (B, HW, C)

    S2 = sum(s * s for s in SCALES)                             # 50
    S2PAD = -(-S2 // 64) * 64                                   # pad to 64 (aligned tiles)
    C4 = len(SCALES) * C

    # Pack per-scale weights into batched, padded operands (const-folded under jit).
    wconv_all = jnp.concatenate(
        [params["layer%d" % S]["wconv"] for S in SCALES], axis=0)
    wconv_all = jnp.pad(wconv_all, ((0, S2PAD - S2), (0, 0))).astype(jnp.bfloat16)
    wgap_stk = jnp.concatenate(
        [params["layer%d" % S]["wgap"] for S in SCALES], axis=0).astype(jnp.bfloat16)
    poolt_all = jnp.concatenate(
        [params["layer%d" % S]["poolt"] for S in SCALES], axis=1)
    poolt_all = jnp.pad(poolt_all, ((0, 0), (0, S2PAD - S2))).astype(jnp.bfloat16)
    mask = jnp.asarray(_blockdiag_mask(C, SCALES, S2PAD))

    wfinal = params["wfinal"]                                   # (C, 5C), no bias in spec
    wsum = sum(wfinal[:, i * C:(i + 1) * C]
               for i in range(len(SCALES) + 1)).astype(jnp.bfloat16)     # (C, C)
    wrest = wfinal[:, C:].astype(jnp.bfloat16)                           # (C, 4C)

    TI = _pick_row_tile(HW)
    n_tiles = HW // TI

    flops_per_b = (2 * S2PAD * C * HW          # xc_all
                   + 2 * C * HW * S2PAD        # gap_pre
                   + 2 * C4 * C * S2PAD        # g_all
                   + 2 * C * C4 * S2PAD        # wg
                   + 2 * C * S2PAD * HW        # wm
                   + 2 * C * C * HW            # Wsum @ x
                   + 2 * HW * C * HW           # logits (all row tiles)
                   + 2 * C * HW * HW)          # accumulation (all row tiles)
    weight_bytes = (2 * (S2PAD * C + C4 * C + HW * S2PAD + C * C + C * C4)
                    + 4 * C4 * S2PAD)
    cost = pl.CostEstimate(
        flops=B * flops_per_b,
        transcendentals=B * (HW * HW + HW),
        bytes_accessed=B * (2 * C * HW * 2 + HW * C * 2 + C * HW * 4) + weight_bytes)

    kernel = functools.partial(_lspm_fused_kernel, ti=TI)

    out = pl.pallas_call(
        kernel,
        out_shape=jax.ShapeDtypeStruct((B, C, HW), x.dtype),
        grid=(B, n_tiles),
        in_specs=[
            pl.BlockSpec((None, C, HW), lambda b, t: (b, 0, 0)),   # x (resident over t)
            pl.BlockSpec((None, TI, C), lambda b, t: (b, t, 0)),   # x^T row tile
            pl.BlockSpec((S2PAD, C), lambda b, t: (0, 0)),
            pl.BlockSpec((C4, C), lambda b, t: (0, 0)),
            pl.BlockSpec((HW, S2PAD), lambda b, t: (0, 0)),
            pl.BlockSpec((C4, S2PAD), lambda b, t: (0, 0)),
            pl.BlockSpec((C, C), lambda b, t: (0, 0)),
            pl.BlockSpec((C, C4), lambda b, t: (0, 0)),
        ],
        out_specs=pl.BlockSpec((None, C, HW), lambda b, t: (b, 0, 0)),
        scratch_shapes=[
            pltpu.VMEM((C, HW), jnp.bfloat16),    # wm = Wrest @ GAP_blk @ conv_blk(x)
            pltpu.VMEM((C, HW), jnp.float32),     # output accumulator
        ],
        compiler_params=pltpu.CompilerParams(
            dimension_semantics=("parallel", "arbitrary"),
            vmem_limit_bytes=_default_vmem_limit()),
        cost_estimate=cost,
    )(x_bf, xt_bf, wconv_all, wgap_stk, poolt_all, mask, wsum, wrest)

    return out.reshape(B, C, H, W)


# ----------------------------- parameter setup -------------------------------


def adaptive_pool_matrix(H, W, S):
    """(S*S, H*W) matrix P s.t. pooled_flat = x_flat @ P.T == AdaptiveAvgPool2d(S)."""
    P = np.zeros((S * S, H * W), dtype=np.float32)
    for sh in range(S):
        h0 = (sh * H) // S
        h1 = -((-(sh + 1) * H) // S)
        for sw in range(S):
            w0 = (sw * W) // S
            w1 = -((-(sw + 1) * W) // S)
            cnt = float((h1 - h0) * (w1 - w0))
            for h in range(h0, h1):
                for w in range(w0, w1):
                    P[sh * S + sw, h * W + w] = 1.0 / cnt
    return P


def init_params(key, C, H, W):
    params = {}
    keys = jax.random.split(key, 9)
    i = 0
    for S in SCALES:
        wconv = jax.random.normal(keys[i], (S * S, C), jnp.float32) * 0.1
        i += 1
        wgap = jax.random.normal(keys[i], (C, C), jnp.float32) * 0.1
        i += 1
        poolt = jnp.asarray(adaptive_pool_matrix(H, W, S).T)      # (HW, S*S)
        params["layer%d" % S] = dict(wconv=wconv, wgap=wgap, poolt=poolt)
    params["wfinal"] = jax.random.normal(keys[8], (C, 5 * C), jnp.float32) * 0.1
    return params


# --------------------------- pure numpy reference ----------------------------


def reference(x, params):
    """Follows the original per-scale torch semantics (no reassociation)."""
    x = np.asarray(x, np.float64)
    B, C, H, W = x.shape
    HW = H * W
    xf = x.reshape(B, C, HW)
    outs = [xf]
    for S in SCALES:
        p = params["layer%d" % S]
        wconv = np.asarray(p["wconv"], np.float64)
        wgap = np.asarray(p["wgap"], np.float64)
        poolt = np.asarray(p["poolt"], np.float64)
        res = np.empty_like(xf)
        for b in range(B):
            xb = xf[b]
            mm1 = xb.T @ xb
            mm1 = mm1 - mm1.max(-1, keepdims=True)
            e = np.exp(mm1)
            mm1 = e / e.sum(-1, keepdims=True)
            xc = wconv @ xb
            mm2 = xc @ mm1
            gap = np.maximum(wgap @ (xb @ poolt), 0.0)
            res[b] = gap @ mm2 + xb
        outs.append(res)
    cat = np.concatenate(outs, axis=1)
    wfinal = np.asarray(params["wfinal"], np.float64)
    out = np.einsum("oc,bcm->bom", wfinal, cat)
    return out.reshape(B, C, H, W)


# ----------------------------------- main -------------------------------------


if __name__ == "__main__":
    B, C, H, W = 2, 4, 16, 16
    key = jax.random.PRNGKey(0)
    kx, kp = jax.random.split(key)
    x = jax.random.normal(kx, (B, C, H, W), jnp.float32) * 0.5
    params = init_params(kp, C, H, W)

    out = jax.jit(lspm_forward)(x, params)
    out = jax.block_until_ready(out)

    ref = reference(np.asarray(x), params)
    assert out.shape == (B, C, H, W)
    np.testing.assert_allclose(np.asarray(out), ref, rtol=2e-2, atol=2e-2)
    print("KERNEL_OK")
</pallas_src>

<mosaic_0001>
module attributes {stable_mosaic.version = 11 : i64} {
  func.func @_lspm_fused_kernel(%arg0: i32, %arg1: i32, %arg2: memref<1x4x256xbf16, #tpu.memory_space<vmem>>, %arg3: memref<1x256x4xbf16, #tpu.memory_space<vmem>>, %arg4: memref<64x4xbf16, #tpu.memory_space<vmem>>, %arg5: memref<16x4xbf16, #tpu.memory_space<vmem>>, %arg6: memref<256x64xbf16, #tpu.memory_space<vmem>>, %arg7: memref<16x64xf32, #tpu.memory_space<vmem>>, %arg8: memref<4x4xbf16, #tpu.memory_space<vmem>>, %arg9: memref<4x16xbf16, #tpu.memory_space<vmem>>, %arg10: memref<1x4x256xf32, #tpu.memory_space<vmem>>, %arg11: memref<4x256xbf16, #tpu.memory_space<vmem>>, %arg12: memref<4x256xf32, #tpu.memory_space<vmem>>) attributes {dimension_semantics = [#tpu.dimension_semantics<parallel>, #tpu.dimension_semantics<arbitrary>], iteration_bounds = array<i64: 2, 1>, scalar_prefetch = 0 : i64, scratch_operands = 2 : i64, tpu.core_type = #tpu.core_type<tc>, window_params = [{transform_indices = @transform_0, window_bounds = array<i64: 1, 4, 256>}, {transform_indices = @transform_1, window_bounds = array<i64: 1, 256, 4>}, {pipeline_mode = #tpu.pipeline_mode<synchronous>, transform_indices = @transform_2, window_bounds = array<i64: 64, 4>}, {pipeline_mode = #tpu.pipeline_mode<synchronous>, transform_indices = @transform_3, window_bounds = array<i64: 16, 4>}, {pipeline_mode = #tpu.pipeline_mode<synchronous>, transform_indices = @transform_4, window_bounds = array<i64: 256, 64>}, {pipeline_mode = #tpu.pipeline_mode<synchronous>, transform_indices = @transform_5, window_bounds = array<i64: 16, 64>}, {pipeline_mode = #tpu.pipeline_mode<synchronous>, transform_indices = @transform_6, window_bounds = array<i64: 4, 4>}, {pipeline_mode = #tpu.pipeline_mode<synchronous>, transform_indices = @transform_7, window_bounds = array<i64: 4, 16>}, {transform_indices = @transform_8, window_bounds = array<i64: 1, 4, 256>}]} {
    %c0_i32 = arith.constant 0 : i32
    %0 = arith.cmpi eq, %arg1, %c0_i32 : i32
    %1 = arith.extui %0 : i1 to i32
    %c0_i32_0 = arith.constant 0 : i32
    %2 = arith.cmpi ne, %1, %c0_i32_0 : i32
    scf.if %2 {
      %c0_16 = arith.constant 0 : index
      %c0_17 = arith.constant 0 : index
      %c0_18 = arith.constant 0 : index
      %33 = vector.load %arg2[%c0_16, %c0_17, %c0_18] : memref<1x4x256xbf16, #tpu.memory_space<vmem>>, vector<1x4x256xbf16>
      %34 = vector.shape_cast %33 : vector<1x4x256xbf16> to vector<4x256xbf16>
      %c0_19 = arith.constant 0 : index
      %c0_20 = arith.constant 0 : index
      %35 = vector.load %arg4[%c0_19, %c0_20] : memref<64x4xbf16, #tpu.memory_space<vmem>>, vector<64x4xbf16>
      %cst_21 = arith.constant dense<0.000000e+00> : vector<64x256xf32>
      %36 = tpu.matmul %35, %34, %cst_21 {dimension_numbers = #tpu.dot_dimension_numbers<[1], [0], [0], [1], [0, 0, 1, 1], [], []>} : vector<64x4xbf16>, vector<4x256xbf16>, vector<64x256xf32> -> vector<64x256xf32>
      %c0_22 = arith.constant 0 : index
      %c0_23 = arith.constant 0 : index
      %37 = vector.load %arg6[%c0_22, %c0_23] : memref<256x64xbf16, #tpu.memory_space<vmem>>, vector<256x64xbf16>
      %cst_24 = arith.constant dense<0.000000e+00> : vector<4x64xf32>
      %38 = tpu.matmul %34, %37, %cst_24 {dimension_numbers = #tpu.dot_dimension_numbers<[1], [0], [0], [1], [0, 0, 1, 1], [], []>} : vector<4x256xbf16>, vector<256x64xbf16>, vector<4x64xf32> -> vector<4x64xf32>
      %c0_25 = arith.constant 0 : index
      %c0_26 = arith.constant 0 : index
      %39 = vector.load %arg5[%c0_25, %c0_26] : memref<16x4xbf16, #tpu.memory_space<vmem>>, vector<16x4xbf16>
      %40 = arith.truncf %38 : vector<4x64xf32> to vector<4x64xbf16>
      %cst_27 = arith.constant dense<0.000000e+00> : vector<16x64xf32>
      %41 = tpu.matmul %39, %40, %cst_27 {dimension_numbers = #tpu.dot_dimension_numbers<[1], [0], [0], [1], [0, 0, 1, 1], [], []>} : vector<16x4xbf16>, vector<4x64xbf16>, vector<16x64xf32> -> vector<16x64xf32>
      %cst_28 = arith.constant 0.000000e+00 : f32
      %42 = vector.broadcast %cst_28 : f32 to vector<16x64xf32>
      %43 = arith.maximumf %41, %42 : vector<16x64xf32>
      %c0_29 = arith.constant 0 : index
      %c0_30 = arith.constant 0 : index
      %44 = vector.load %arg7[%c0_29, %c0_30] : memref<16x64xf32, #tpu.memory_space<vmem>>, vector<16x64xf32>
      %45 = arith.mulf %43, %44 : vector<16x64xf32>
      %c0_31 = arith.constant 0 : index
      %c0_32 = arith.constant 0 : index
      %46 = vector.load %arg9[%c0_31, %c0_32] : memref<4x16xbf16, #tpu.memory_space<vmem>>, vector<4x16xbf16>
      %47 = arith.truncf %45 : vector<16x64xf32> to vector<16x64xbf16>
      %cst_33 = arith.constant dense<0.000000e+00> : vector<4x64xf32>
      %48 = tpu.matmul %46, %47, %cst_33 {dimension_numbers = #tpu.dot_dimension_numbers<[1], [0], [0], [1], [0, 0, 1, 1], [], []>} : vector<4x16xbf16>, vector<16x64xbf16>, vector<4x64xf32> -> vector<4x64xf32>
      %49 = arith.truncf %48 : vector<4x64xf32> to vector<4x64xbf16>
      %50 = arith.truncf %36 : vector<64x256xf32> to vector<64x256xbf16>
      %cst_34 = arith.constant dense<0.000000e+00> : vector<4x256xf32>
      %51 = tpu.matmul %49, %50, %cst_34 {dimension_numbers = #tpu.dot_dimension_numbers<[1], [0], [0], [1], [0, 0, 1, 1], [], []>} : vector<4x64xbf16>, vector<64x256xbf16>, vector<4x256xf32> -> vector<4x256xf32>
      %52 = arith.truncf %51 : vector<4x256xf32> to vector<4x256xbf16>
      %c0_35 = arith.constant 0 : index
      %c0_36 = arith.constant 0 : index
      %53 = vector.load %arg11[%c0_35, %c0_36] : memref<4x256xbf16, #tpu.memory_space<vmem>>, vector<4x256xbf16>
      tpu.vector_store %arg11[%c0_35, %c0_36], %52 {strides = array<i32>} : memref<4x256xbf16, #tpu.memory_space<vmem>>, vector<4x256xbf16>,
      %c0_37 = arith.constant 0 : index
      %c0_38 = arith.constant 0 : index
      %54 = vector.load %arg8[%c0_37, %c0_38] : memref<4x4xbf16, #tpu.memory_space<vmem>>, vector<4x4xbf16>
      %cst_39 = arith.constant dense<0.000000e+00> : vector<4x256xf32>
      %55 = tpu.matmul %54, %34, %cst_39 {dimension_numbers = #tpu.dot_dimension_numbers<[1], [0], [0], [1], [0, 0, 1, 1], [], []>} : vector<4x4xbf16>, vector<4x256xbf16>, vector<4x256xf32> -> vector<4x256xf32>
      %c0_40 = arith.constant 0 : index
      %c0_41 = arith.constant 0 : index
      %56 = vector.load %arg12[%c0_40, %c0_41] : memref<4x256xf32, #tpu.memory_space<vmem>>, vector<4x256xf32>
      tpu.vector_store %arg12[%c0_40, %c0_41], %55 {strides = array<i32>} : memref<4x256xf32, #tpu.memory_space<vmem>>, vector<4x256xf32>,
    } else {
    }
    %c0 = arith.constant 0 : index
    %c0_1 = arith.constant 0 : index
    %c0_2 = arith.constant 0 : index
    %3 = vector.load %arg3[%c0, %c0_1, %c0_2] : memref<1x256x4xbf16, #tpu.memory_space<vmem>>, vector<1x256x4xbf16>
    %4 = vector.shape_cast %3 : vector<1x256x4xbf16> to vector<256x4xbf16>
    %c0_3 = arith.constant 0 : index
    %c0_4 = arith.constant 0 : index
    %c0_5 = arith.constant 0 : index
    %5 = vector.load %arg2[%c0_3, %c0_4, %c0_5] : memref<1x4x256xbf16, #tpu.memory_space<vmem>>, vector<1x4x256xbf16>
    %6 = vector.shape_cast %5 : vector<1x4x256xbf16> to vector<4x256xbf16>
    %cst = arith.constant dense<0.000000e+00> : vector<256x256xf32>
    %7 = tpu.matmul %4, %6, %cst {dimension_numbers = #tpu.dot_dimension_numbers<[1], [0], [0], [1], [0, 0, 1, 1], [], []>} : vector<256x4xbf16>, vector<4x256xbf16>, vector<256x256xf32> -> vector<256x256xf32>
    %cst_6 = arith.constant dense<0xFF800000> : vector<256xf32>
    %8 = vector.multi_reduction <maximumf>, %7, %cst_6 [1] : vector<256x256xf32> to vector<256xf32>
    %9 = vector.shape_cast %8 : vector<256xf32> to vector<256x1xf32>
    %10 = vector.broadcast %9 : vector<256x1xf32> to vector<256x256xf32>
    %11 = arith.subf %7, %10 : vector<256x256xf32>
    %12 = math.exp %11 : vector<256x256xf32>
    %cst_7 = arith.constant dense<0.000000e+00> : vector<256xf32>
    %13 = vector.multi_reduction <add>, %12, %cst_7 [1] : vector<256x256xf32> to vector<256xf32>
    %14 = vector.shape_cast %13 : vector<256xf32> to vector<256x1xf32>
    %15 = tpu.reciprocal %14 {approx = true} : vector<256x1xf32> -> vector<256x1xf32>
    %c256_i32 = arith.constant 256 : i32
    %16 = arith.muli %arg1, %c256_i32 : i32
    %17 = tpu.assume_multiple %16, 256 : i32
    %c0_8 = arith.constant 0 : index
    %18 = arith.index_cast %17 : i32 to index
    %19 = vector.load %arg11[%c0_8, %18] : memref<4x256xbf16, #tpu.memory_space<vmem>>, vector<4x256xbf16>
    %20 = arith.extf %19 : vector<4x256xbf16> to vector<4x256xf32>
    %21 = vector.shape_cast %15 : vector<256x1xf32> to vector<1x256xf32>
    %22 = vector.broadcast %21 : vector<1x256xf32> to vector<4x256xf32>
    %23 = arith.mulf %20, %22 : vector<4x256xf32>
    %24 = arith.truncf %23 : vector<4x256xf32> to vector<4x256xbf16>
    %c0_9 = arith.constant 0 : index
    %c0_10 = arith.constant 0 : index
    %25 = vector.load %arg12[%c0_9, %c0_10] : memref<4x256xf32, #tpu.memory_space<vmem>>, vector<4x256xf32>
    %26 = arith.truncf %12 : vector<256x256xf32> to vector<256x256xbf16>
    %cst_11 = arith.constant dense<0.000000e+00> : vector<4x256xf32>
    %27 = tpu.matmul %24, %26, %cst_11 {dimension_numbers = #tpu.dot_dimension_numbers<[1], [0], [0], [1], [0, 0, 1, 1], [], []>} : vector<4x256xbf16>, vector<256x256xbf16>, vector<4x256xf32> -> vector<4x256xf32>
    %28 = arith.addf %25, %27 : vector<4x256xf32>
    %c0_12 = arith.constant 0 : index
    %c0_13 = arith.constant 0 : index
    %29 = vector.load %arg12[%c0_12, %c0_13] : memref<4x256xf32, #tpu.memory_space<vmem>>, vector<4x256xf32>
    tpu.vector_store %arg12[%c0_12, %c0_13], %28 {strides = array<i32>} : memref<4x256xf32, #tpu.memory_space<vmem>>, vector<4x256xf32>,
    %c0_i32_14 = arith.constant 0 : i32
    %30 = arith.cmpi eq, %arg1, %c0_i32_14 : i32
    %31 = arith.extui %30 : i1 to i32
    %c0_i32_15 = arith.constant 0 : i32
    %32 = arith.cmpi ne, %31, %c0_i32_15 : i32
    scf.if %32 {
      %c0_16 = arith.constant 0 : index
      %c0_17 = arith.constant 0 : index
      %33 = vector.load %arg12[%c0_16, %c0_17] : memref<4x256xf32, #tpu.memory_space<vmem>>, vector<4x256xf32>
      %c0_18 = arith.constant 0 : index
      %c0_19 = arith.constant 0 : index
      %c0_20 = arith.constant 0 : index
      %34 = vector.load %arg10[%c0_18, %c0_19, %c0_20] : memref<1x4x256xf32, #tpu.memory_space<vmem>>, vector<1x4x256xf32>
      %35 = vector.shape_cast %34 : vector<1x4x256xf32> to vector<4x256xf32>
      %36 = vector.shape_cast %33 : vector<4x256xf32> to vector<1x4x256xf32>
      tpu.vector_store %arg10[%c0_18, %c0_19, %c0_20], %36 {strides = array<i32>} : memref<1x4x256xf32, #tpu.memory_space<vmem>>, vector<1x4x256xf32>,
    } else {
    }
    return
  }
  func.func @transform_0(%arg0: i32, %arg1: i32) -> (i32, i32, i32) {
    %c0_i32 = arith.constant 0 : i32
    %c0_i32_0 = arith.constant 0 : i32
    %c0_i32_1 = arith.constant 0 : i32
    return %arg0, %c0_i32, %c0_i32_0 : i32, i32, i32
  }
  func.func @transform_1(%arg0: i32, %arg1: i32) -> (i32, i32, i32) {
    %c0_i32 = arith.constant 0 : i32
    %c0_i32_0 = arith.constant 0 : i32
    return %arg0, %arg1, %c0_i32 : i32, i32, i32
  }
  func.func @transform_2(%arg0: i32, %arg1: i32) -> (i32, i32) {
    %c0_i32 = arith.constant 0 : i32
    %c0_i32_0 = arith.constant 0 : i32
    %c0_i32_1 = arith.constant 0 : i32
    return %c0_i32, %c0_i32_0 : i32, i32
  }
  func.func @transform_3(%arg0: i32, %arg1: i32) -> (i32, i32) {
    %c0_i32 = arith.constant 0 : i32
    %c0_i32_0 = arith.constant 0 : i32
    %c0_i32_1 = arith.constant 0 : i32
    return %c0_i32, %c0_i32_0 : i32, i32
  }
  func.func @transform_4(%arg0: i32, %arg1: i32) -> (i32, i32) {
    %c0_i32 = arith.constant 0 : i32
    %c0_i32_0 = arith.constant 0 : i32
    %c0_i32_1 = arith.constant 0 : i32
    return %c0_i32, %c0_i32_0 : i32, i32
  }
  func.func @transform_5(%arg0: i32, %arg1: i32) -> (i32, i32) {
    %c0_i32 = arith.constant 0 : i32
    %c0_i32_0 = arith.constant 0 : i32
    %c0_i32_1 = arith.constant 0 : i32
    return %c0_i32, %c0_i32_0 : i32, i32
  }
  func.func @transform_6(%arg0: i32, %arg1: i32) -> (i32, i32) {
    %c0_i32 = arith.constant 0 : i32
    %c0_i32_0 = arith.constant 0 : i32
    %c0_i32_1 = arith.constant 0 : i32
    return %c0_i32, %c0_i32_0 : i32, i32
  }
  func.func @transform_7(%arg0: i32, %arg1: i32) -> (i32, i32) {
    %c0_i32 = arith.constant 0 : i32
    %c0_i32_0 = arith.constant 0 : i32
    %c0_i32_1 = arith.constant 0 : i32
    return %c0_i32, %c0_i32_0 : i32, i32
  }
  func.func @transform_8(%arg0: i32, %arg1: i32) -> (i32, i32, i32) {
    %c0_i32 = arith.constant 0 : i32
    %c0_i32_0 = arith.constant 0 : i32
    %c0_i32_1 = arith.constant 0 : i32
    return %arg0, %c0_i32, %c0_i32_0 : i32, i32, i32
  }
}

</mosaic_0001>

<llo_original>
// kernel: lspm_forward.1
$region0: #{lspm_forward.1}
  #allocation0 [shape = 'u32[]', space=smem, size = 0x4, offset = 0x4, fixed_abs, tag = 'smem constant byte address 0x4 - core index']
  #allocation1 [shape = 'u32[144,128]{1,0:T(1,128)}', space=vmem, size = 0x12000, scoped, tag = 'internal scratch']
  #allocation2 [shape = 'bf16[4,256]{1,0:T(4,128)(2,1)}', space=vmem, size = 0x800, scoped, tag = 'scratch operand']
  #allocation3 [shape = 'f32[4,256]{1,0:T(4,128)}', space=vmem, size = 0x1000, scoped, tag = 'scratch operand']
  %s0 = inlined_call_operand.vmem [shape: bf16[2,4,256], index: 0, kind: input, shape index: {}]
  %s1 = inlined_call_operand.vmem [shape: bf16[2,256,4], index: 1, kind: input, shape index: {}]
  %s2 = inlined_call_operand.vmem [shape: bf16[64,4], index: 2, kind: input, shape index: {}]
  %s3 = inlined_call_operand.vmem [shape: bf16[16,4], index: 3, kind: input, shape index: {}]
  %s4 = inlined_call_operand.vmem [shape: bf16[256,64], index: 4, kind: input, shape index: {}]
  %s5 = inlined_call_operand.vmem [shape: f32[16,64], index: 5, kind: input, shape index: {}]
  %s6 = inlined_call_operand.vmem [shape: bf16[4,4], index: 6, kind: input, shape index: {}]
  %s7 = inlined_call_operand.vmem [shape: bf16[4,16], index: 7, kind: input, shape index: {}]
  %s8 = inlined_call_operand.vmem [shape: f32[2,4,256], index: 8, kind: output, shape index: {}]
  %s9 = sld [smem:[#allocation0]]
  $region73: #{lspm_forward.1} parent=0
    _
  %s11 = ssub.s32 1, %s9
  %s12 = scalar_select 0, %s11, %s9
  loop: start=0, step=1, limit=4
  $region2: #{lspm_forward.1} parent=0 // loop_pre_header
    _
  $region3: #{lspm_forward.1} parent=0 // loop_header
    %s14 = sphi 0, %s18
    %p15 = scmp.ge.s32.totalorder %s14, 4
    %s21 = sphi 0, %s33
    %s22 = sphi 0, %s29
    %s23 = sphi 0, %s21
    %s24 = sphi 0, %s22
    %s25 = sphi 0, %s23
    %s26 = sphi 0, %s24
    %s36 = sphi 0, %s38
    %s39 = sphi 0, %s36
    %s40 = sphi 0, %s39
    %s56 = sphi 0, %s40
    %s64 = sphi 0, %s66
    %s67 = sphi 0, %s64
    %s68 = sphi 0, %s67
    %s84 = sphi 0, %s68
    %s88 = sphi 0, %s88
    %s90 = sphi 0, %s88
    %s91 = sphi 0, %s90
    %s105 = sphi 0, %s91
    %s109 = sphi 0, %s109
    %s111 = sphi 0, %s109
    %s112 = sphi 0, %s111
    %s126 = sphi 0, %s112
    %s130 = sphi 0, %s130
    %s132 = sphi 0, %s130
    %s133 = sphi 0, %s132
    %s147 = sphi 0, %s133
    %s151 = sphi 0, %s151
    %s153 = sphi 0, %s151
    %s154 = sphi 0, %s153
    %s168 = sphi 0, %s154
    %s172 = sphi 0, %s172
    %s174 = sphi 0, %s172
    %s175 = sphi 0, %s174
    %s189 = sphi 0, %s175
    %s193 = sphi 0, %s193
    %s195 = sphi 0, %s193
    %s196 = sphi 0, %s195
    %s210 = sphi 0, %s196
    %s216 = sphi 0, %s218
    %s219 = sphi 0, %s216
    %s220 = sphi 0, %s219
    %s236 = sphi 0, %s220
  $region4: #{lspm_forward.1} parent=0 // loop_header_branch
    %17 = sbr.rel (%p15) target = $region8
  $region5: #{lspm_forward.1} parent=0 // loop_body
    %s19 = ssub.s32 %s14, 1
    %s20 = ssub.s32 %s14, 2
    %s27 = sadd.s32 1, %s22
    %p28 = scmp.ge.s32.totalorder %s27, 1
    %s29 = scalar_select %p28, 0, %s27
    %s30 = sadd.s32 1, %s21
    %s31 = scalar_select %p28, %s30, %s21
    %p32 = scmp.ge.s32.totalorder %s31, 2
    %s33 = scalar_select %p32, 0, %s31
    %s34 = ssub.s32 %s21, %s33
    %p35 = scmp.eq.s32.totalorder %s34, 0
    %s37 = sadd.s32 %s36, 1
    %s38 = scalar_select %p35, %s36, %s37
    %p41 = pneg %p35
    %p42 = scmp.eq.s32.totalorder %s14, 1
    %p43 = por %p41, %p42
    %p44 = scmp.ne.s32.totalorder %s36, %s39
    %p45 = scmp.eq.s32.totalorder %s14, 0
    %p46 = por %p44, %p45
    %p47 = scmp.ne.s32.totalorder %s36, %s39
    %p48 = scmp.eq.s32.totalorder %s19, 1
    %p49 = por %p47, %p48
    %p50 = scmp.ne.s32.totalorder %s39, %s40
    %p51 = scmp.eq.s32.totalorder %s19, 0
    %p52 = por %p50, %p51
    %p53 = scmp.ne.s32.totalorder %s39, %s40
    %p54 = scmp.eq.s32.totalorder %s20, 1
    %p55 = por %p53, %p54
    %p57 = scmp.ne.s32.totalorder %s40, %s56
    %p58 = scmp.eq.s32.totalorder %s20, 0
    %p59 = por %p57, %p58
    %s60 = ssub.s32 %s21, %s33
    %s61 = ssub.s32 %s22, %s29
    %s62 = sor.u32 %s60, %s61
    %p63 = scmp.eq.s32.totalorder %s62, 0
    %s65 = sadd.s32 %s64, 1
    %s66 = scalar_select %p63, %s64, %s65
    %p69 = pneg %p63
    %p70 = scmp.eq.s32.totalorder %s14, 1
    %p71 = por %p69, %p70
    %p72 = scmp.ne.s32.totalorder %s64, %s67
    %p73 = scmp.eq.s32.totalorder %s14, 0
    %p74 = por %p72, %p73
    %p75 = scmp.ne.s32.totalorder %s64, %s67
    %p76 = scmp.eq.s32.totalorder %s19, 1
    %p77 = por %p75, %p76
    %p78 = scmp.ne.s32.totalorder %s67, %s68
    %p79 = scmp.eq.s32.totalorder %s19, 0
    %p80 = por %p78, %p79
    %p81 = scmp.ne.s32.totalorder %s67, %s68
    %p82 = scmp.eq.s32.totalorder %s20, 1
    %p83 = por %p81, %p82
    %p85 = scmp.ne.s32.totalorder %s68, %s84
    %p86 = scmp.eq.s32.totalorder %s20, 0
    %p87 = por %p85, %p86
    %s89 = sadd.s32 %s88, 1
    %p92 = scmp.eq.s32.totalorder %s14, 1
    %p93 = scmp.ne.s32.totalorder %s88, %s90
    %p94 = scmp.eq.s32.totalorder %s14, 0
    %p95 = por %p93, %p94
    %p96 = scmp.ne.s32.totalorder %s88, %s90
    %p97 = scmp.eq.s32.totalorder %s19, 1
    %p98 = por %p96, %p97
    %p99 = scmp.ne.s32.totalorder %s90, %s91
    %p100 = scmp.eq.s32.totalorder %s19, 0
    %p101 = por %p99, %p100
    %p102 = scmp.ne.s32.totalorder %s90, %s91
    %p103 = scmp.eq.s32.totalorder %s20, 1
    %p104 = por %p102, %p103
    %p106 = scmp.ne.s32.totalorder %s91, %s105
    %p107 = scmp.eq.s32.totalorder %s20, 0
    %p108 = por %p106, %p107
    %s110 = sadd.s32 %s109, 1
    %p113 = scmp.eq.s32.totalorder %s14, 1
    %p114 = scmp.ne.s32.totalorder %s109, %s111
    %p115 = scmp.eq.s32.totalorder %s14, 0
    %p116 = por %p114, %p115
    %p117 = scmp.ne.s32.totalorder %s109, %s111
    %p118 = scmp.eq.s32.totalorder %s19, 1
    %p119 = por %p117, %p118
    %p120 = scmp.ne.s32.totalorder %s111, %s112
    %p121 = scmp.eq.s32.totalorder %s19, 0
    %p122 = por %p120, %p121
    %p123 = scmp.ne.s32.totalorder %s111, %s112
    %p124 = scmp.eq.s32.totalorder %s20, 1
    %p125 = por %p123, %p124
    %p127 = scmp.ne.s32.totalorder %s112, %s126
    %p128 = scmp.eq.s32.totalorder %s20, 0
    %p129 = por %p127, %p128
    %s131 = sadd.s32 %s130, 1
    %p134 = scmp.eq.s32.totalorder %s14, 1
    %p135 = scmp.ne.s32.totalorder %s130, %s132
    %p136 = scmp.eq.s32.totalorder %s14, 0
    %p137 = por %p135, %p136
    %p138 = scmp.ne.s32.totalorder %s130, %s132
    %p139 = scmp.eq.s32.totalorder %s19, 1
    %p140 = por %p138, %p139
    %p141 = scmp.ne.s32.totalorder %s132, %s133
    %p142 = scmp.eq.s32.totalorder %s19, 0
    %p143 = por %p141, %p142
    %p144 = scmp.ne.s32.totalorder %s132, %s133
    %p145 = scmp.eq.s32.totalorder %s20, 1
    %p146 = por %p144, %p145
    %p148 = scmp.ne.s32.totalorder %s133, %s147
    %p149 = scmp.eq.s32.totalorder %s20, 0
    %p150 = por %p148, %p149
    %s152 = sadd.s32 %s151, 1
    %p155 = scmp.eq.s32.totalorder %s14, 1
    %p156 = scmp.ne.s32.totalorder %s151, %s153
    %p157 = scmp.eq.s32.totalorder %s14, 0
    %p158 = por %p156, %p157
    %p159 = scmp.ne.s32.totalorder %s151, %s153
    %p160 = scmp.eq.s32.totalorder %s19, 1
    %p161 = por %p159, %p160
    %p162 = scmp.ne.s32.totalorder %s153, %s154
    %p163 = scmp.eq.s32.totalorder %s19, 0
    %p164 = por %p162, %p163
    %p165 = scmp.ne.s32.totalorder %s153, %s154
    %p166 = scmp.eq.s32.totalorder %s20, 1
    %p167 = por %p165, %p166
    %p169 = scmp.ne.s32.totalorder %s154, %s168
    %p170 = scmp.eq.s32.totalorder %s20, 0
    %p171 = por %p169, %p170
    %s173 = sadd.s32 %s172, 1
    %p176 = scmp.eq.s32.totalorder %s14, 1
    %p177 = scmp.ne.s32.totalorder %s172, %s174
    %p178 = scmp.eq.s32.totalorder %s14, 0
    %p179 = por %p177, %p178
    %p180 = scmp.ne.s32.totalorder %s172, %s174
    %p181 = scmp.eq.s32.totalorder %s19, 1
    %p182 = por %p180, %p181
    %p183 = scmp.ne.s32.totalorder %s174, %s175
    %p184 = scmp.eq.s32.totalorder %s19, 0
    %p185 = por %p183, %p184
    %p186 = scmp.ne.s32.totalorder %s174, %s175
    %p187 = scmp.eq.s32.totalorder %s20, 1
    %p188 = por %p186, %p187
    %p190 = scmp.ne.s32.totalorder %s175, %s189
    %p191 = scmp.eq.s32.totalorder %s20, 0
    %p192 = por %p190, %p191
    %s194 = sadd.s32 %s193, 1
    %p197 = scmp.eq.s32.totalorder %s14, 1
    %p198 = scmp.ne.s32.totalorder %s193, %s195
    %p199 = scmp.eq.s32.totalorder %s14, 0
    %p200 = por %p198, %p199
    %p201 = scmp.ne.s32.totalorder %s193, %s195
    %p202 = scmp.eq.s32.totalorder %s19, 1
    %p203 = por %p201, %p202
    %p204 = scmp.ne.s32.totalorder %s195, %s196
    %p205 = scmp.eq.s32.totalorder %s19, 0
    %p206 = por %p204, %p205
    %p207 = scmp.ne.s32.totalorder %s195, %s196
    %p208 = scmp.eq.s32.totalorder %s20, 1
    %p209 = por %p207, %p208
    %p211 = scmp.ne.s32.totalorder %s196, %s210
    %p212 = scmp.eq.s32.totalorder %s20, 0
    %p213 = por %p211, %p212
    %s214 = ssub.s32 %s21, %s33
    %p215 = scmp.eq.s32.totalorder %s214, 0
    %s217 = sadd.s32 %s216, 1
    %s218 = scalar_select %p215, %s216, %s217
    %p221 = pneg %p215
    %p222 = scmp.eq.s32.totalorder %s14, 1
    %p223 = por %p221, %p222
    %p224 = scmp.ne.s32.totalorder %s216, %s219
    %p225 = scmp.eq.s32.totalorder %s14, 0
    %p226 = por %p224, %p225
    %p227 = scmp.ne.s32.totalorder %s216, %s219
    %p228 = scmp.eq.s32.totalorder %s19, 1
    %p229 = por %p227, %p228
    %p230 = scmp.ne.s32.totalorder %s219, %s220
    %p231 = scmp.eq.s32.totalorder %s19, 0
    %p232 = por %p230, %p231
    %p233 = scmp.ne.s32.totalorder %s219, %s220
    %p234 = scmp.eq.s32.totalorder %s20, 1
    %p235 = por %p233, %p234
    %p237 = scmp.ne.s32.totalorder %s220, %s236
    %p238 = scmp.eq.s32.totalorder %s20, 0
    %p239 = por %p237, %p238
    %p240 = scmp.le.s32.totalorder 1, %s14
    %p241 = scmp.lt.s32.totalorder %s14, 3
    %p242 = pnand %p240, %p241
    %p243 = pneg %p242
    // Predicated region
    $region9: #{lspm_forward.1} parent=5 // pred_check
      _
    $region10: #{lspm_forward.1} parent=5 // pred_check_branch
      %245 = sbr.rel (%p242) target = $region12
    $region11: #{lspm_forward.1} parent=5 // pred_region
      %s246 = ssub.s32 %s14, 1
      // Predicated region
      $region13: #{lspm_forward.1} parent=11 // pred_check
        %p247 = pneg %p101
      $region14: #{lspm_forward.1} parent=11 // pred_check_branch
        %249 = sbr.rel (%p247) target = $region16
      $region15: #{lspm_forward.1} parent=11 // pred_region
        _
      $region16: #{lspm_forward.1} parent=11 // pred_fallthru
        _
      // Predicated region
      $region17: #{lspm_forward.1} parent=11 // pred_check
        %p250 = pneg %p122
      $region18: #{lspm_forward.1} parent=11 // pred_check_branch
        %252 = sbr.rel (%p250) target = $region20
      $region19: #{lspm_forward.1} parent=11 // pred_region
        _
      $region20: #{lspm_forward.1} parent=11 // pred_fallthru
        _
      // Predicated region
      $region21: #{lspm_forward.1} parent=11 // pred_check
        %p253 = pneg %p143
      $region22: #{lspm_forward.1} parent=11 // pred_check_branch
        %255 = sbr.rel (%p253) target = $region24
      $region23: #{lspm_forward.1} parent=11 // pred_region
        _
      $region24: #{lspm_forward.1} parent=11 // pred_fallthru
        _
      // Predicated region
      $region25: #{lspm_forward.1} parent=11 // pred_check
        %p256 = pneg %p164
      $region26: #{lspm_forward.1} parent=11 // pred_check_branch
        %258 = sbr.rel (%p256) target = $region28
      $region27: #{lspm_forward.1} parent=11 // pred_region
        _
      $region28: #{lspm_forward.1} parent=11 // pred_fallthru
        _
      // Predicated region
      $region29: #{lspm_forward.1} parent=11 // pred_check
        %p259 = pneg %p185
      $region30: #{lspm_forward.1} parent=11 // pred_check_branch
        %261 = sbr.rel (%p259) target = $region32
      $region31: #{lspm_forward.1} parent=11 // pred_region
        _
      $region32: #{lspm_forward.1} parent=11 // pred_fallthru
        _
      // Predicated region
      $region33: #{lspm_forward.1} parent=11 // pred_check
        %p262 = pneg %p206
      $region34: #{lspm_forward.1} parent=11 // pred_check_branch
        %264 = sbr.rel (%p262) target = $region36
      $region35: #{lspm_forward.1} parent=11 // pred_region
        _
      $region36: #{lspm_forward.1} parent=11 // pred_fallthru
        _
    $region12: #{lspm_forward.1} parent=5 // pred_fallthru
      _
    %p265 = scmp.lt.s32.totalorder %s14, 2
    // Predicated region
    $region37: #{lspm_forward.1} parent=5 // pred_check
      %p266 = pneg %p265
    $region38: #{lspm_forward.1} parent=5 // pred_check_branch
      %268 = sbr.rel (%p266) target = $region40
    $region39: #{lspm_forward.1} parent=5 // pred_region
      // Predicated region
      $region41: #{lspm_forward.1} parent=39 // pred_check
        %p269 = pneg %p46
      $region42: #{lspm_forward.1} parent=39 // pred_check_branch
        %271 = sbr.rel (%p269) target = $region44
      $region43: #{lspm_forward.1} parent=39 // pred_region
        %p272 = scmp.lt.s32.totalorder %s21, 1
        %s273 = scalar_select %p272, %s21, 1
        %s274 = smul.addr %s273, 2
        %s275 = smul.addr %s274, 2
        %s276 = scalar_lea.vmem %s0, %s275
      $region44: #{lspm_forward.1} parent=39 // pred_fallthru
        _
      // Predicated region
      $region45: #{lspm_forward.1} parent=39 // pred_check
        %p277 = pneg %p74
      $region46: #{lspm_forward.1} parent=39 // pred_check_branch
        %279 = sbr.rel (%p277) target = $region48
      $region47: #{lspm_forward.1} parent=39 // pred_region
        %s280 = smul.u32 32, %s22
        %p281 = scmp.lt.s32.totalorder %s21, 1
        %s282 = scalar_select %p281, %s21, 1
        %p283 = scmp.lt.s32.totalorder %s280, 31
        %s284 = scalar_select %p283, %s280, 31
        %s285 = smul.addr %s282, 32
        %s286 = sadd.s32 %s284, %s285
        %s287 = smul.addr %s286, 4
        %s288 = scalar_lea.vmem %s1, %s287
        %s289 = smul.u32 32, %s22
      $region48: #{lspm_forward.1} parent=39 // pred_fallthru
        _
    $region40: #{lspm_forward.1} parent=5 // pred_fallthru
      _
    %p290 = scmp.le.s32.totalorder 1, %s14
    %p291 = scmp.lt.s32.totalorder %s14, 3
    %p292 = pnand %p290, %p291
    %p293 = pneg %p292
    // Predicated region
    $region49: #{lspm_forward.1} parent=5 // pred_check
      _
    $region50: #{lspm_forward.1} parent=5 // pred_check_branch
      %295 = sbr.rel (%p292) target = $region52
    $region51: #{lspm_forward.1} parent=5 // pred_region
      %s296 = ssub.s32 %s14, 1
      %p297 = scmp.lt.s32.totalorder %s23, 1
      %s298 = scalar_select %p297, %s23, 1
      %s299 = smul.addr %s298, 2
      %s300 = smul.addr %s299, 2
      %s301 = scalar_lea.vmem %s0, %s300
      %p302 = pneg %p52
      %p303 = pneg %p49
      %s304 = smul.u32 32, %s24
      %p305 = scmp.lt.s32.totalorder %s23, 1
      %s306 = scalar_select %p305, %s23, 1
      %p307 = scmp.lt.s32.totalorder %s304, 31
      %s308 = scalar_select %p307, %s304, 31
      %s309 = smul.addr %s306, 32
      %s310 = sadd.s32 %s308, %s309
      %s311 = smul.addr %s310, 4
      %s312 = scalar_lea.vmem %s1, %s311
      %p313 = pneg %p80
      %p314 = pneg %p77
      %p315 = pneg %p101
      %p316 = pneg %p98
      %p317 = pneg %p122
      %p318 = pneg %p119
      %p319 = pneg %p143
      %p320 = pneg %p140
      %p321 = pneg %p164
      %p322 = pneg %p161
      %p323 = pneg %p185
      %p324 = pneg %p182
      %p325 = pneg %p206
      %p326 = pneg %p203
      %p327 = pneg %p232
      %p328 = pneg %p229
      %p329 = scmp.lt.s32.totalorder %s23, 1
      %s330 = scalar_select %p329, %s23, 1
      %s331 = smul.addr %s330, 2
      %s332 = smul.addr %s331, 4
      %s333 = scalar_lea.vmem %s8, %s332
      %p334 = scmp.lt.s32.totalorder %s23, 1
      %s335 = scalar_select %p334, %s23, 1
      %s336 = smul.addr %s335, 2
      %s337 = smul.addr %s336, 2
      %s338 = scalar_lea.vmem %s0, %s337
      %s339 = smul.u32 32, %s24
      %p340 = scmp.lt.s32.totalorder %s23, 1
      %s341 = scalar_select %p340, %s23, 1
      %p342 = scmp.lt.s32.totalorder %s339, 31
      %s343 = scalar_select %p342, %s339, 31
      %s344 = smul.addr %s341, 32
      %s345 = sadd.s32 %s343, %s344
      %s346 = smul.addr %s345, 4
      %s347 = scalar_lea.vmem %s1, %s346
      %s348 = smul.u32 32, %s24
      %p349 = scmp.lt.s32.totalorder %s23, 1
      %s350 = scalar_select %p349, %s23, 1
      %s351 = smul.addr %s350, 2
      %s352 = smul.addr %s351, 4
      %s353 = scalar_lea.vmem %s8, %s352
      %p355 = scmp.eq.s32.totalorder %s24, 0
      // Predicated region
      $region53: #{lspm_forward.1} parent=51 // pred_check
        %p356 = pneg %p355
      $region54: #{lspm_forward.1} parent=51 // pred_check_branch
        %358 = sbr.rel (%p356) target = $region56
      $region55: #{lspm_forward.1} parent=51 // pred_region
        %v359 = vld [vmem:[%s338] sm:$0xf]
        %v360 = vld [vmem:[%s2] sm:$0xf]
        %v361 = vld [vmem:[%s2 + $0x4] sm:$0xf]
        %v362 = vld [vmem:[%s2 + $0x8] sm:$0xf]
        %v363 = vld [vmem:[%s2 + $0xc] sm:$0xf]
        %v364 = vld [vmem:[%s2 + $0x10] sm:$0xf]
        %v365 = vld [vmem:[%s2 + $0x14] sm:$0xf]
        %v366 = vld [vmem:[%s2 + $0x18] sm:$0xf]
        %v367 = vld [vmem:[%s2 + $0x1c] sm:$0xf]
        %v376 = vunpack.c.l.b16 %v360
        %v377 = vunpack.c.l.b16 %v361
        %v378 = vunpack.c.l.b16 %v362
        %v379 = vunpack.c.l.b16 %v363
        %v380 = vunpack.c.l.b16 %v364
        %v381 = vunpack.c.l.b16 %v365
        %v382 = vunpack.c.l.b16 %v366
        %v383 = vunpack.c.l.b16 %v367
        %v384 = vpack.c.b16 %v377, %v376
        %v385 = vpack.c.b16 %v379, %v378
        %v386 = vpack.c.b16 %v381, %v380
        %v387 = vpack.c.b16 %v383, %v382
        %v390 = vunpack.c.l.s4 1983009808
        %v391 = vunpack.c.0.s8 %v390
        %v392 = vlaneseq
        %v393 = vshrl.u32 %v392, 7
        %v394 = vsub.s32 %v391, %v393
        %v395 = vrot.slane %v359, %v394
        %v396 = vcombine.high %v395, %v395
        %vm397 = vcmask 31744
        %v399 = vsel %vm397, %v384, 0
        %v402 = vsel %vm397, %v385, 0
        %v405 = vsel %vm397, %v386, 0
        %v408 = vsel %vm397, %v387, 0
        %vm410 = vcmask 1041408
        %v412 = vsel %vm410, %v395, 0
        %v415 = vsel %vm410, %v396, 0
        %417 = vmatprep.subr.bf16.mxu0 0
        %418 = vmatpush1.bf16.msra.mxu0 0
        %419 = vmatprep.subr.bf16.mxu0 0
        %420 = vmatpush1.bf16.msra.mxu0 0
        %421 = vmatprep.subr.bf16.mxu0 0
        %422 = vmatpush1.bf16.msra.mxu0 0
        %423 = vmatprep.subr.bf16.mxu0 0
        %424 = vmatpush1.bf16.msra.mxu0 0
        %425 = vmatprep.subr.bf16.mxu0 0
        %426 = vmatpush1.bf16.msra.mxu0 0
        %427 = vmatprep.subr.bf16.mxu0 0
        %428 = vmatpush1.bf16.msra.mxu0 0
        %429 = vmatprep.subr.bf16.mxu0 0
        %430 = vmatpush1.bf16.msra.mxu0 0
        %431 = vmatprep.subr.bf16.mxu0 %v415
        %432 = vmatpush1.bf16.msra.mxu0 %v412
        %433 = vmatprep.subr.bf16.mxu0 0
        %434 = vmatpush2.bf16.msra.mxu0 0
        %435 = vmatprep.subr.bf16.mxu0 0
        %436 = vmatpush2.bf16.msra.mxu0 0
        %437 = vmatprep.subr.bf16.mxu0 0
        %438 = vmatpush2.bf16.msra.mxu0 0
        %439 = vmatprep.subr.bf16.mxu0 0
        %440 = vmatpush2.bf16.msra.mxu0 0
        %441 = vmatprep.subr.bf16.mxu0 0
        %442 = vmatpush2.bf16.msra.mxu0 0
        %443 = vmatprep.subr.bf16.mxu0 0
        %444 = vmatpush2.bf16.msra.mxu0 0
        %445 = vmatprep.subr.bf16.mxu0 0
        %446 = vmatpush2.bf16.msra.mxu0 0
        %447 = vmatprep.subr.bf16.mxu0 0
        %448 = vmatpush2.bf16.msra.mxu0 0
        %449 = vmatprep.mubr.bf16.mxu0 0
        %450 = vmatmul.mubr.bf16.gmra.mxu0 %v399
        %v451 = vpop.f32.mrf.mxu0
        %v452 = vadd.f32 0.0, %v451
        %v453 = vpop.f32.mrf.mxu0
        %v454 = vadd.f32 0.0, %v453
        %v455 = vpop.f32.mrf.mxu0
        %v456 = vadd.f32 0.0, %v455
        %v457 = vpop.f32.mrf.mxu0
        %v458 = vadd.f32 0.0, %v457
        %459 = vmatprep.mubr.bf16.mxu0 0
        %460 = vmatmul.mubr.bf16.gmra.mxu0 %v402
        %v461 = vpop.f32.mrf.mxu0
        %v462 = vadd.f32 0.0, %v461
        %v463 = vpop.f32.mrf.mxu0
        %v464 = vadd.f32 0.0, %v463
        %v465 = vpop.f32.mrf.mxu0
        %v466 = vadd.f32 0.0, %v465
        %v467 = vpop.f32.mrf.mxu0
        %v468 = vadd.f32 0.0, %v467
        %469 = vmatprep.mubr.bf16.mxu0 0
        %470 = vmatmul.mubr.bf16.gmra.mxu0 %v405
        %v471 = vpop.f32.mrf.mxu0
        %v472 = vadd.f32 0.0, %v471
        %v473 = vpop.f32.mrf.mxu0
        %v474 = vadd.f32 0.0, %v473
        %v475 = vpop.f32.mrf.mxu0
        %v476 = vadd.f32 0.0, %v475
        %v477 = vpop.f32.mrf.mxu0
        %v478 = vadd.f32 0.0, %v477
        %479 = vmatprep.mubr.bf16.mxu0 0
        %480 = vmatmul.mubr.bf16.gmra.mxu0 %v408
        %v481 = vpop.f32.mrf.mxu0
        %v482 = vadd.f32 0.0, %v481
        %v483 = vpop.f32.mrf.mxu0
        %v484 = vadd.f32 0.0, %v483
        %v485 = vpop.f32.mrf.mxu0
        %v486 = vadd.f32 0.0, %v485
        %v487 = vpop.f32.mrf.mxu0
        %v488 = vadd.f32 0.0, %v487
        %489 = vdwg.mxu0
        %v490 = vld [vmem:[%s4] sm:$0xf]
        %v491 = vld [vmem:[%s4 + $0x4] sm:$0xf]
        %v492 = vld [vmem:[%s4 + $0x8] sm:$0xf]
        %v493 = vld [vmem:[%s4 + $0xc] sm:$0xf]
        %v494 = vld [vmem:[%s4 + $0x10] sm:$0xf]
        %v495 = vld [vmem:[%s4 + $0x14] sm:$0xf]
        %v496 = vld [vmem:[%s4 + $0x18] sm:$0xf]
        %v497 = vld [vmem:[%s4 + $0x1c] sm:$0xf]
        %v498 = vld [vmem:[%s4 + $0x20] sm:$0xf]
        %v499 = vld [vmem:[%s4 + $0x24] sm:$0xf]
        %v500 = vld [vmem:[%s4 + $0x28] sm:$0xf]
        %v501 = vld [vmem:[%s4 + $0x2c] sm:$0xf]
        %v502 = vld [vmem:[%s4 + $0x30] sm:$0xf]
        %v503 = vld [vmem:[%s4 + $0x34] sm:$0xf]
        %v504 = vld [vmem:[%s4 + $0x38] sm:$0xf]
        %v505 = vld [vmem:[%s4 + $0x3c] sm:$0xf]
        %v506 = vld [vmem:[%s4 + $0x40] sm:$0xf]
        %v507 = vld [vmem:[%s4 + $0x44] sm:$0xf]
        %v508 = vld [vmem:[%s4 + $0x48] sm:$0xf]
        %v509 = vld [vmem:[%s4 + $0x4c] sm:$0xf]
        %v510 = vld [vmem:[%s4 + $0x50] sm:$0xf]
        %v511 = vld [vmem:[%s4 + $0x54] sm:$0xf]
        %v512 = vld [vmem:[%s4 + $0x58] sm:$0xf]
        %v513 = vld [vmem:[%s4 + $0x5c] sm:$0xf]
        %v514 = vld [vmem:[%s4 + $0x60] sm:$0xf]
        %v515 = vld [vmem:[%s4 + $0x64] sm:$0xf]
        %v516 = vld [vmem:[%s4 + $0x68] sm:$0xf]
        %v517 = vld [vmem:[%s4 + $0x6c] sm:$0xf]
        %v518 = vld [vmem:[%s4 + $0x70] sm:$0xf]
        %v519 = vld [vmem:[%s4 + $0x74] sm:$0xf]
        %v520 = vld [vmem:[%s4 + $0x78] sm:$0xf]
        %v521 = vld [vmem:[%s4 + $0x7c] sm:$0xf]
        %v556 = vunpack.c.l.b16 %v490
        %v557 = vunpack.c.l.b16 %v491
        %v558 = vunpack.c.l.b16 %v492
        %v559 = vunpack.c.l.b16 %v493
        %v560 = vunpack.c.l.b16 %v494
        %v561 = vunpack.c.l.b16 %v495
        %v562 = vunpack.c.l.b16 %v496
        %v563 = vunpack.c.l.b16 %v497
        %v564 = vunpack.c.l.b16 %v498
        %v565 = vunpack.c.l.b16 %v499
        %v566 = vunpack.c.l.b16 %v500
        %v567 = vunpack.c.l.b16 %v501
        %v568 = vunpack.c.l.b16 %v502
        %v569 = vunpack.c.l.b16 %v503
        %v570 = vunpack.c.l.b16 %v504
        %v571 = vunpack.c.l.b16 %v505
        %v572 = vunpack.c.l.b16 %v506
        %v573 = vunpack.c.l.b16 %v507
        %v574 = vunpack.c.l.b16 %v508
        %v575 = vunpack.c.l.b16 %v509
        %v576 = vunpack.c.l.b16 %v510
        %v577 = vunpack.c.l.b16 %v511
        %v578 = vunpack.c.l.b16 %v512
        %v579 = vunpack.c.l.b16 %v513
        %v580 = vunpack.c.l.b16 %v514
        %v581 = vunpack.c.l.b16 %v515
        %v582 = vunpack.c.l.b16 %v516
        %v583 = vunpack.c.l.b16 %v517
        %v584 = vunpack.c.l.b16 %v518
        %v585 = vunpack.c.l.b16 %v519
        %v586 = vunpack.c.l.b16 %v520
        %v587 = vunpack.c.l.b16 %v521
        %v588 = vpack.c.b16 %v557, %v556
        %v589 = vpack.c.b16 %v559, %v558
        %v590 = vpack.c.b16 %v561, %v560
        %v591 = vpack.c.b16 %v563, %v562
        %v592 = vpack.c.b16 %v565, %v564
        %v593 = vpack.c.b16 %v567, %v566
        %v594 = vpack.c.b16 %v569, %v568
        %v595 = vpack.c.b16 %v571, %v570
        %v596 = vpack.c.b16 %v573, %v572
        %v597 = vpack.c.b16 %v575, %v574
        %v598 = vpack.c.b16 %v577, %v576
        %v599 = vpack.c.b16 %v579, %v578
        %v600 = vpack.c.b16 %v581, %v580
        %v601 = vpack.c.b16 %v583, %v582
        %v602 = vpack.c.b16 %v585, %v584
        %v603 = vpack.c.b16 %v587, %v586
        %620 = vmatprep.subr.bf16.mxu0 0
        %621 = vmatpush1.bf16.msra.mxu0 %v595
        %622 = vmatprep.subr.bf16.mxu0 0
        %623 = vmatpush1.bf16.msra.mxu0 %v594
        %624 = vmatprep.subr.bf16.mxu0 0
        %625 = vmatpush1.bf16.msra.mxu0 %v593
        %626 = vmatprep.subr.bf16.mxu0 0
        %627 = vmatpush1.bf16.msra.mxu0 %v592
        %628 = vmatprep.subr.bf16.mxu0 0
        %629 = vmatpush1.bf16.msra.mxu0 %v591
        %630 = vmatprep.subr.bf16.mxu0 0
        %631 = vmatpush1.bf16.msra.mxu0 %v590
        %632 = vmatprep.subr.bf16.mxu0 0
        %633 = vmatpush1.bf16.msra.mxu0 %v589
        %634 = vmatprep.subr.bf16.mxu0 0
        %635 = vmatpush1.bf16.msra.mxu0 %v588
        %636 = vmatprep.subr.bf16.mxu0 0
        %637 = vmatpush2.bf16.msra.mxu0 %v603
        %638 = vmatprep.subr.bf16.mxu0 0
        %639 = vmatpush2.bf16.msra.mxu0 %v602
        %640 = vmatprep.subr.bf16.mxu0 0
        %641 = vmatpush2.bf16.msra.mxu0 %v601
        %642 = vmatprep.subr.bf16.mxu0 0
        %643 = vmatpush2.bf16.msra.mxu0 %v600
        %644 = vmatprep.subr.bf16.mxu0 0
        %645 = vmatpush2.bf16.msra.mxu0 %v599
        %646 = vmatprep.subr.bf16.mxu0 0
        %647 = vmatpush2.bf16.msra.mxu0 %v598
        %648 = vmatprep.subr.bf16.mxu0 0
        %649 = vmatpush2.bf16.msra.mxu0 %v597
        %650 = vmatprep.subr.bf16.mxu0 0
        %651 = vmatpush2.bf16.msra.mxu0 %v596
        %652 = vmatprep.mubr.bf16.mxu0 %v396
        %653 = vmatmul.mubr.bf16.gmra.mxu0 %v395
        %v654 = vpop.f32.mrf.mxu0
        %v655 = vadd.f32 0.0, %v654
        %v656 = vpop.f32.mrf.mxu0
        %v657 = vpop.f32.mrf.mxu0
        %v658 = vpop.f32.mrf.mxu0
        %659 = vdwg.mxu0
        %v660 = vld [vmem:[%s3] sm:$0xf]
        %v661 = vld [vmem:[%s3 + $0x4] sm:$0xf]
        %v662 = vpack.c.bf16 %v655, %v655
        %v665 = vunpack.c.l.b16 %v660
        %v666 = vunpack.c.l.b16 %v661
        %v667 = vpack.c.b16 %v666, %v665
        %v669 = vsel %vm397, %v667, 0
        %v672 = vsel %vm410, %v662, 0
        %674 = vmatprep.subr.bf16.mxu0 0
        %675 = vmatpush1.bf16.msra.mxu0 0
        %676 = vmatprep.subr.bf16.mxu0 0
        %677 = vmatpush1.bf16.msra.mxu0 0
        %678 = vmatprep.subr.bf16.mxu0 0
        %679 = vmatpush1.bf16.msra.mxu0 0
        %680 = vmatprep.subr.bf16.mxu0 0
        %681 = vmatpush1.bf16.msra.mxu0 0
        %682 = vmatprep.subr.bf16.mxu0 0
        %683 = vmatpush1.bf16.msra.mxu0 0
        %684 = vmatprep.subr.bf16.mxu0 0
        %685 = vmatpush1.bf16.msra.mxu0 0
        %686 = vmatprep.subr.bf16.mxu0 0
        %687 = vmatpush1.bf16.msra.mxu0 0
        %688 = vmatprep.subr.bf16.mxu0 0
        %689 = vmatpush1.bf16.msra.mxu0 %v672
        %690 = vmatprep.subr.bf16.mxu0 0
        %691 = vmatpush2.bf16.msra.mxu0 0
        %692 = vmatprep.subr.bf16.mxu0 0
        %693 = vmatpush2.bf16.msra.mxu0 0
        %694 = vmatprep.subr.bf16.mxu0 0
        %695 = vmatpush2.bf16.msra.mxu0 0
        %696 = vmatprep.subr.bf16.mxu0 0
        %697 = vmatpush2.bf16.msra.mxu0 0
        %698 = vmatprep.subr.bf16.mxu0 0
        %699 = vmatpush2.bf16.msra.mxu0 0
        %700 = vmatprep.subr.bf16.mxu0 0
        %701 = vmatpush2.bf16.msra.mxu0 0
        %702 = vmatprep.subr.bf16.mxu0 0
        %703 = vmatpush2.bf16.msra.mxu0 0
        %704 = vmatprep.subr.bf16.mxu0 0
        %705 = vmatpush2.bf16.msra.mxu0 0
        %706 = vmatprep.mubr.bf16.mxu0 0
        %707 = vmatmul.mubr.bf16.gmra.mxu0 %v669
        %v708 = vpop.f32.mrf.mxu0
        %v709 = vadd.f32 0.0, %v708
        %v710 = vpop.f32.mrf.mxu0
        %v711 = vpop.f32.mrf.mxu0
        %v712 = vadd.f32 0.0, %v711
        %v713 = vpop.f32.mrf.mxu0
        %714 = vdwg.mxu0
        %v715 = vmax.f32 %v709, 0.0
        %v716 = vmax.f32 %v712, 0.0
        %v717 = vld [vmem:[%s5] sm:$0xff]
        %v718 = vld [vmem:[%s5 + $0x8] sm:$0xff]
        %v719 = vmul.f32 %v715, %v717
        %v720 = vmul.f32 %v716, %v718
        %v721 = vld [vmem:[%s7] sm:$0x3]
        %v722 = vpack.c.bf16 %v720, %v719
        %vm723 = vcmask 130048
        %v725 = vsel %vm723, %v721, 0
        %727 = vmatprep.subr.bf16.mxu0 0
        %728 = vmatpush1.bf16.msra.mxu0 0
        %729 = vmatprep.subr.bf16.mxu0 0
        %730 = vmatpush1.bf16.msra.mxu0 0
        %731 = vmatprep.subr.bf16.mxu0 0
        %732 = vmatpush1.bf16.msra.mxu0 0
        %733 = vmatprep.subr.bf16.mxu0 0
        %734 = vmatpush1.bf16.msra.mxu0 0
        %735 = vmatprep.subr.bf16.mxu0 0
        %736 = vmatpush1.bf16.msra.mxu0 0
        %737 = vmatprep.subr.bf16.mxu0 0
        %738 = vmatpush1.bf16.msra.mxu0 0
        %739 = vmatprep.subr.bf16.mxu0 0
        %740 = vmatpush1.bf16.msra.mxu0 0
        %741 = vmatprep.subr.bf16.mxu0 0
        %742 = vmatpush1.bf16.msra.mxu0 %v722
        %743 = vmatprep.subr.bf16.mxu0 0
        %744 = vmatpush2.bf16.msra.mxu0 0
        %745 = vmatprep.subr.bf16.mxu0 0
        %746 = vmatpush2.bf16.msra.mxu0 0
        %747 = vmatprep.subr.bf16.mxu0 0
        %748 = vmatpush2.bf16.msra.mxu0 0
        %749 = vmatprep.subr.bf16.mxu0 0
        %750 = vmatpush2.bf16.msra.mxu0 0
        %751 = vmatprep.subr.bf16.mxu0 0
        %752 = vmatpush2.bf16.msra.mxu0 0
        %753 = vmatprep.subr.bf16.mxu0 0
        %754 = vmatpush2.bf16.msra.mxu0 0
        %755 = vmatprep.subr.bf16.mxu0 0
        %756 = vmatpush2.bf16.msra.mxu0 0
        %757 = vmatprep.subr.bf16.mxu0 0
        %758 = vmatpush2.bf16.msra.mxu0 0
        %759 = vmatprep.mubr.bf16.mxu0 0
        %760 = vmatmul.mubr.bf16.gmra.mxu0 %v725
        %v761 = vpop.f32.mrf.mxu0
        %v762 = vadd.f32 0.0, %v761
        %v763 = vpop.f32.mrf.mxu0
        %v764 = vpop.f32.mrf.mxu0
        %v765 = vpop.f32.mrf.mxu0
        %766 = vdwg.mxu0
        %v767 = vpack.c.bf16 %v762, %v762
        %v768 = vpack.c.bf16 %v456, %v452
        %v769 = vpack.c.bf16 %v458, %v454
        %v770 = vpack.c.bf16 %v466, %v462
        %v771 = vpack.c.bf16 %v468, %v464
        %v772 = vpack.c.bf16 %v476, %v472
        %v773 = vpack.c.bf16 %v478, %v474
        %v774 = vpack.c.bf16 %v486, %v482
        %v775 = vpack.c.bf16 %v488, %v484
        %vm776 = vcmask 523264
        %v778 = vsel %vm776, %v767, 0
        %780 = vmatprep.subr.bf16.mxu0 0
        %781 = vmatpush1.bf16.msra.mxu0 0
        %782 = vmatprep.subr.bf16.mxu0 0
        %783 = vmatpush1.bf16.msra.mxu0 0
        %784 = vmatprep.subr.bf16.mxu0 0
        %785 = vmatpush1.bf16.msra.mxu0 0
        %786 = vmatprep.subr.bf16.mxu0 0
        %787 = vmatpush1.bf16.msra.mxu0 0
        %788 = vmatprep.subr.bf16.mxu0 %v775
        %789 = vmatpush1.bf16.msra.mxu0 %v774
        %790 = vmatprep.subr.bf16.mxu0 %v773
        %791 = vmatpush1.bf16.msra.mxu0 %v772
        %792 = vmatprep.subr.bf16.mxu0 %v771
        %793 = vmatpush1.bf16.msra.mxu0 %v770
        %794 = vmatprep.subr.bf16.mxu0 %v769
        %795 = vmatpush1.bf16.msra.mxu0 %v768
        %796 = vmatprep.subr.bf16.mxu0 0
        %797 = vmatpush2.bf16.msra.mxu0 0
        %798 = vmatprep.subr.bf16.mxu0 0
        %799 = vmatpush2.bf16.msra.mxu0 0
        %800 = vmatprep.subr.bf16.mxu0 0
        %801 = vmatpush2.bf16.msra.mxu0 0
        %802 = vmatprep.subr.bf16.mxu0 0
        %803 = vmatpush2.bf16.msra.mxu0 0
        %804 = vmatprep.subr.bf16.mxu0 0
        %805 = vmatpush2.bf16.msra.mxu0 0
        %806 = vmatprep.subr.bf16.mxu0 0
        %807 = vmatpush2.bf16.msra.mxu0 0
        %808 = vmatprep.subr.bf16.mxu0 0
        %809 = vmatpush2.bf16.msra.mxu0 0
        %810 = vmatprep.subr.bf16.mxu0 0
        %811 = vmatpush2.bf16.msra.mxu0 0
        %812 = vmatprep.mubr.bf16.mxu0 0
        %813 = vmatmul.mubr.bf16.gmra.mxu0 %v778
        %v814 = vpop.f32.mrf.mxu0
        %v815 = vadd.f32 0.0, %v814
        %v816 = vpop.f32.mrf.mxu0
        %v817 = vadd.f32 0.0, %v816
        %v818 = vpop.f32.mrf.mxu0
        %v819 = vpop.f32.mrf.mxu0
        %820 = vdwg.mxu0
        %v821 = vpack.c.bf16 %v815, %v815
        %v822 = vpack.c.bf16 %v817, %v817
        %v825 = vcombine.low %v821, %v822
        %v827 = vunpack.c.l.s4 1983009808
        %v828 = vunpack.c.0.s8 %v827
        %v829 = vlaneseq
        %v830 = vshrl.u32 %v829, 7
        %v831 = vsub.s32 %v828, %v830
        %v832 = vrot.slane %v825, %v831
        %834 = vst [vmem:[#allocation2] sm:$0xf] %v832
        %v835 = vld [vmem:[%s6] sm:$0x3]
        %v837 = vsel %vm397, %v835, 0
        %839 = vmatprep.subr.bf16.mxu0 0
        %840 = vmatpush1.bf16.msra.mxu0 0
        %841 = vmatprep.subr.bf16.mxu0 0
        %842 = vmatpush1.bf16.msra.mxu0 0
        %843 = vmatprep.subr.bf16.mxu0 0
        %844 = vmatpush1.bf16.msra.mxu0 0
        %845 = vmatprep.subr.bf16.mxu0 0
        %846 = vmatpush1.bf16.msra.mxu0 0
        %847 = vmatprep.subr.bf16.mxu0 0
        %848 = vmatpush1.bf16.msra.mxu0 0
        %849 = vmatprep.subr.bf16.mxu0 0
        %850 = vmatpush1.bf16.msra.mxu0 0
        %851 = vmatprep.subr.bf16.mxu0 0
        %852 = vmatpush1.bf16.msra.mxu0 0
        %853 = vmatprep.subr.bf16.mxu0 %v415
        %854 = vmatpush1.bf16.msra.mxu0 %v412
        %855 = vmatprep.subr.bf16.mxu0 0
        %856 = vmatpush2.bf16.msra.mxu0 0
        %857 = vmatprep.subr.bf16.mxu0 0
        %858 = vmatpush2.bf16.msra.mxu0 0
        %859 = vmatprep.subr.bf16.mxu0 0
        %860 = vmatpush2.bf16.msra.mxu0 0
        %861 = vmatprep.subr.bf16.mxu0 0
        %862 = vmatpush2.bf16.msra.mxu0 0
        %863 = vmatprep.subr.bf16.mxu0 0
        %864 = vmatpush2.bf16.msra.mxu0 0
        %865 = vmatprep.subr.bf16.mxu0 0
        %866 = vmatpush2.bf16.msra.mxu0 0
        %867 = vmatprep.subr.bf16.mxu0 0
        %868 = vmatpush2.bf16.msra.mxu0 0
        %869 = vmatprep.subr.bf16.mxu0 0
        %870 = vmatpush2.bf16.msra.mxu0 0
        %871 = vmatprep.mubr.bf16.mxu0 0
        %872 = vmatmul.mubr.bf16.gmra.mxu0 %v837
        %v873 = vpop.f32.mrf.mxu0
        %v874 = vadd.f32 0.0, %v873
        %v875 = vpop.f32.mrf.mxu0
        %v876 = vadd.f32 0.0, %v875
        %v877 = vpop.f32.mrf.mxu0
        %v878 = vpop.f32.mrf.mxu0
        %879 = vdwg.mxu0
        %v882 = vcombine.low %v874, %v876
        %884 = vst [vmem:[#allocation3] sm:$0xff] %v882
      $region56: #{lspm_forward.1} parent=51 // pred_fallthru
        _
      %v885 = vld [vmem:[%s347] sm:$0xf]
      %v886 = vld [vmem:[%s347 + $0x4] sm:$0xf]
      %v887 = vld [vmem:[%s347 + $0x8] sm:$0xf]
      %v888 = vld [vmem:[%s347 + $0xc] sm:$0xf]
      %v889 = vld [vmem:[%s347 + $0x10] sm:$0xf]
      %v890 = vld [vmem:[%s347 + $0x14] sm:$0xf]
      %v891 = vld [vmem:[%s347 + $0x18] sm:$0xf]
      %v892 = vld [vmem:[%s347 + $0x1c] sm:$0xf]
      %v893 = vld [vmem:[%s347 + $0x20] sm:$0xf]
      %v894 = vld [vmem:[%s347 + $0x24] sm:$0xf]
      %v895 = vld [vmem:[%s347 + $0x28] sm:$0xf]
      %v896 = vld [vmem:[%s347 + $0x2c] sm:$0xf]
      %v897 = vld [vmem:[%s347 + $0x30] sm:$0xf]
      %v898 = vld [vmem:[%s347 + $0x34] sm:$0xf]
      %v899 = vld [vmem:[%s347 + $0x38] sm:$0xf]
      %v900 = vld [vmem:[%s347 + $0x3c] sm:$0xf]
      %v901 = vld [vmem:[%s347 + $0x40] sm:$0xf]
      %v902 = vld [vmem:[%s347 + $0x44] sm:$0xf]
      %v903 = vld [vmem:[%s347 + $0x48] sm:$0xf]
      %v904 = vld [vmem:[%s347 + $0x4c] sm:$0xf]
      %v905 = vld [vmem:[%s347 + $0x50] sm:$0xf]
      %v906 = vld [vmem:[%s347 + $0x54] sm:$0xf]
      %v907 = vld [vmem:[%s347 + $0x58] sm:$0xf]
      %v908 = vld [vmem:[%s347 + $0x5c] sm:$0xf]
      %v909 = vld [vmem:[%s347 + $0x60] sm:$0xf]
      %v910 = vld [vmem:[%s347 + $0x64] sm:$0xf]
      %v911 = vld [vmem:[%s347 + $0x68] sm:$0xf]
      %v912 = vld [vmem:[%s347 + $0x6c] sm:$0xf]
      %v913 = vld [vmem:[%s347 + $0x70] sm:$0xf]
      %v914 = vld [vmem:[%s347 + $0x74] sm:$0xf]
      %v915 = vld [vmem:[%s347 + $0x78] sm:$0xf]
      %v916 = vld [vmem:[%s347 + $0x7c] sm:$0xf]
      %v917 = vld [vmem:[%s338] sm:$0xf]
      %v950 = vunpack.c.l.b16 %v885
      %v951 = vunpack.c.l.b16 %v886
      %v952 = vunpack.c.l.b16 %v887
      %v953 = vunpack.c.l.b16 %v888
      %v954 = vunpack.c.l.b16 %v889
      %v955 = vunpack.c.l.b16 %v890
      %v956 = vunpack.c.l.b16 %v891
      %v957 = vunpack.c.l.b16 %v892
      %v958 = vunpack.c.l.b16 %v893
      %v959 = vunpack.c.l.b16 %v894
      %v960 = vunpack.c.l.b16 %v895
      %v961 = vunpack.c.l.b16 %v896
      %v962 = vunpack.c.l.b16 %v897
      %v963 = vunpack.c.l.b16 %v898
      %v964 = vunpack.c.l.b16 %v899
      %v965 = vunpack.c.l.b16 %v900
      %v966 = vunpack.c.l.b16 %v901
      %v967 = vunpack.c.l.b16 %v902
      %v968 = vunpack.c.l.b16 %v903
      %v969 = vunpack.c.l.b16 %v904
      %v970 = vunpack.c.l.b16 %v905
      %v971 = vunpack.c.l.b16 %v906
      %v972 = vunpack.c.l.b16 %v907
      %v973 = vunpack.c.l.b16 %v908
      %v974 = vunpack.c.l.b16 %v909
      %v975 = vunpack.c.l.b16 %v910
      %v976 = vunpack.c.l.b16 %v911
      %v977 = vunpack.c.l.b16 %v912
      %v978 = vunpack.c.l.b16 %v913
      %v979 = vunpack.c.l.b16 %v914
      %v980 = vunpack.c.l.b16 %v915
      %v981 = vunpack.c.l.b16 %v916
      %v982 = vpack.c.b16 %v951, %v950
      %v983 = vpack.c.b16 %v953, %v952
      %v984 = vpack.c.b16 %v955, %v954
      %v985 = vpack.c.b16 %v957, %v956
      %v986 = vpack.c.b16 %v959, %v958
      %v987 = vpack.c.b16 %v961, %v960
      %v988 = vpack.c.b16 %v963, %v962
      %v989 = vpack.c.b16 %v965, %v964
      %v990 = vpack.c.b16 %v967, %v966
      %v991 = vpack.c.b16 %v969, %v968
      %v992 = vpack.c.b16 %v971, %v970
      %v993 = vpack.c.b16 %v973, %v972
      %v994 = vpack.c.b16 %v975, %v974
      %v995 = vpack.c.b16 %v977, %v976
      %v996 = vpack.c.b16 %v979, %v978
      %v997 = vpack.c.b16 %v981, %v980
      %v1000 = vunpack.c.l.s4 1983009808
      %v1001 = vunpack.c.0.s8 %v1000
      %v1002 = vlaneseq
      %v1003 = vshrl.u32 %v1002, 7
      %v1004 = vsub.s32 %v1001, %v1003
      %v1005 = vrot.slane %v917, %v1004
      %v1006 = vcombine.high %v1005, %v1005
      %vm1007 = vcmask 31744
      %v1009 = vsel %vm1007, %v982, 0
      %v1012 = vsel %vm1007, %v983, 0
      %v1015 = vsel %vm1007, %v984, 0
      %v1018 = vsel %vm1007, %v985, 0
      %v1021 = vsel %vm1007, %v986, 0
      %v1024 = vsel %vm1007, %v987, 0
      %v1027 = vsel %vm1007, %v988, 0
      %v1030 = vsel %vm1007, %v989, 0
      %v1033 = vsel %vm1007, %v990, 0
      %v1036 = vsel %vm1007, %v991, 0
      %v1039 = vsel %vm1007, %v992, 0
      %v1042 = vsel %vm1007, %v993, 0
      %v1045 = vsel %vm1007, %v994, 0
      %v1048 = vsel %vm1007, %v995, 0
      %v1051 = vsel %vm1007, %v996, 0
      %v1054 = vsel %vm1007, %v997, 0
      %vm1056 = vcmask 1041408
      %v1058 = vsel %vm1056, %v1005, 0
      %v1061 = vsel %vm1056, %v1006, 0
      %1063 = vmatprep.subr.bf16.mxu0 0
      %1064 = vmatpush1.bf16.msra.mxu0 0
      %1065 = vmatprep.subr.bf16.mxu0 0
      %1066 = vmatpush1.bf16.msra.mxu0 0
      %1067 = vmatprep.subr.bf16.mxu0 0
      %1068 = vmatpush1.bf16.msra.mxu0 0
      %1069 = vmatprep.subr.bf16.mxu0 0
      %1070 = vmatpush1.bf16.msra.mxu0 0
      %1071 = vmatprep.subr.bf16.mxu0 0
      %1072 = vmatpush1.bf16.msra.mxu0 0
      %1073 = vmatprep.subr.bf16.mxu0 0
      %1074 = vmatpush1.bf16.msra.mxu0 0
      %1075 = vmatprep.subr.bf16.mxu0 0
      %1076 = vmatpush1.bf16.msra.mxu0 0
      %1077 = vmatprep.subr.bf16.mxu0 %v1061
      %1078 = vmatpush1.bf16.msra.mxu0 %v1058
      %1079 = vmatprep.subr.bf16.mxu0 0
      %1080 = vmatpush2.bf16.msra.mxu0 0
      %1081 = vmatprep.subr.bf16.mxu0 0
      %1082 = vmatpush2.bf16.msra.mxu0 0
      %1083 = vmatprep.subr.bf16.mxu0 0
      %1084 = vmatpush2.bf16.msra.mxu0 0
      %1085 = vmatprep.subr.bf16.mxu0 0
      %1086 = vmatpush2.bf16.msra.mxu0 0
      %1087 = vmatprep.subr.bf16.mxu0 0
      %1088 = vmatpush2.bf16.msra.mxu0 0
      %1089 = vmatprep.subr.bf16.mxu0 0
      %1090 = vmatpush2.bf16.msra.mxu0 0
      %1091 = vmatprep.subr.bf16.mxu0 0
      %1092 = vmatpush2.bf16.msra.mxu0 0
      %1093 = vmatprep.subr.bf16.mxu0 0
      %1094 = vmatpush2.bf16.msra.mxu0 0
      %1095 = vmatprep.mubr.bf16.mxu0 0
      %1096 = vmatmul.mubr.bf16.gmra.mxu0 %v1009
      %v1097 = vpop.f32.mrf.mxu0
      %v1098 = vadd.f32 0.0, %v1097
      %v1099 = vpop.f32.mrf.mxu0
      %v1100 = vadd.f32 0.0, %v1099
      %v1101 = vpop.f32.mrf.mxu0
      %v1102 = vadd.f32 0.0, %v1101
      %v1103 = vpop.f32.mrf.mxu0
      %v1104 = vadd.f32 0.0, %v1103
      %1105 = vmatprep.mubr.bf16.mxu0 0
      %1106 = vmatmul.mubr.bf16.gmra.mxu0 %v1012
      %v1107 = vpop.f32.mrf.mxu0
      %v1108 = vadd.f32 0.0, %v1107
      %v1109 = vpop.f32.mrf.mxu0
      %v1110 = vadd.f32 0.0, %v1109
      %v1111 = vpop.f32.mrf.mxu0
      %v1112 = vadd.f32 0.0, %v1111
      %v1113 = vpop.f32.mrf.mxu0
      %v1114 = vadd.f32 0.0, %v1113
      %1115 = vmatprep.mubr.bf16.mxu0 0
      %1116 = vmatmul.mubr.bf16.gmra.mxu0 %v1015
      %v1117 = vpop.f32.mrf.mxu0
      %v1118 = vadd.f32 0.0, %v1117
      %v1119 = vpop.f32.mrf.mxu0
      %v1120 = vadd.f32 0.0, %v1119
      %v1121 = vpop.f32.mrf.mxu0
      %v1122 = vadd.f32 0.0, %v1121
      %v1123 = vpop.f32.mrf.mxu0
      %v1124 = vadd.f32 0.0, %v1123
      %1125 = vmatprep.mubr.bf16.mxu0 0
      %1126 = vmatmul.mubr.bf16.gmra.mxu0 %v1018
      %v1127 = vpop.f32.mrf.mxu0
      %v1128 = vadd.f32 0.0, %v1127
      %v1129 = vpop.f32.mrf.mxu0
      %v1130 = vadd.f32 0.0, %v1129
      %v1131 = vpop.f32.mrf.mxu0
      %v1132 = vadd.f32 0.0, %v1131
      %v1133 = vpop.f32.mrf.mxu0
      %v1134 = vadd.f32 0.0, %v1133
      %1135 = vmatprep.mubr.bf16.mxu0 0
      %1136 = vmatmul.mubr.bf16.gmra.mxu0 %v1021
      %v1137 = vpop.f32.mrf.mxu0
      %v1138 = vadd.f32 0.0, %v1137
      %v1139 = vpop.f32.mrf.mxu0
      %v1140 = vadd.f32 0.0, %v1139
      %v1141 = vpop.f32.mrf.mxu0
      %v1142 = vadd.f32 0.0, %v1141
      %v1143 = vpop.f32.mrf.mxu0
      %v1144 = vadd.f32 0.0, %v1143
      %1145 = vmatprep.mubr.bf16.mxu0 0
      %1146 = vmatmul.mubr.bf16.gmra.mxu0 %v1024
      %v1147 = vpop.f32.mrf.mxu0
      %v1148 = vadd.f32 0.0, %v1147
      %v1149 = vpop.f32.mrf.mxu0
      %v1150 = vadd.f32 0.0, %v1149
      %v1151 = vpop.f32.mrf.mxu0
      %v1152 = vadd.f32 0.0, %v1151
      %v1153 = vpop.f32.mrf.mxu0
      %v1154 = vadd.f32 0.0, %v1153
      %1155 = vmatprep.mubr.bf16.mxu0 0
      %1156 = vmatmul.mubr.bf16.gmra.mxu0 %v1027
      %v1157 = vpop.f32.mrf.mxu0
      %v1158 = vadd.f32 0.0, %v1157
      %v1159 = vpop.f32.mrf.mxu0
      %v1160 = vadd.f32 0.0, %v1159
      %v1161 = vpop.f32.mrf.mxu0
      %v1162 = vadd.f32 0.0, %v1161
      %v1163 = vpop.f32.mrf.mxu0
      %v1164 = vadd.f32 0.0, %v1163
      %1165 = vmatprep.mubr.bf16.mxu0 0
      %1166 = vmatmul.mubr.bf16.gmra.mxu0 %v1030
      %v1167 = vpop.f32.mrf.mxu0
      %v1168 = vadd.f32 0.0, %v1167
      %v1169 = vpop.f32.mrf.mxu0
      %v1170 = vadd.f32 0.0, %v1169
      %v1171 = vpop.f32.mrf.mxu0
      %v1172 = vadd.f32 0.0, %v1171
      %v1173 = vpop.f32.mrf.mxu0
      %v1174 = vadd.f32 0.0, %v1173
      %1175 = vmatprep.mubr.bf16.mxu0 0
      %1176 = vmatmul.mubr.bf16.gmra.mxu0 %v1033
      %v1177 = vpop.f32.mrf.mxu0
      %v1178 = vadd.f32 0.0, %v1177
      %v1179 = vpop.f32.mrf.mxu0
      %v1180 = vadd.f32 0.0, %v1179
      %v1181 = vpop.f32.mrf.mxu0
      %v1182 = vadd.f32 0.0, %v1181
      %v1183 = vpop.f32.mrf.mxu0
      %v1184 = vadd.f32 0.0, %v1183
      %1185 = vmatprep.mubr.bf16.mxu0 0
      %1186 = vmatmul.mubr.bf16.gmra.mxu0 %v1036
      %v1187 = vpop.f32.mrf.mxu0
      %v1188 = vadd.f32 0.0, %v1187
      %v1189 = vpop.f32.mrf.mxu0
      %v1190 = vadd.f32 0.0, %v1189
      %v1191 = vpop.f32.mrf.mxu0
      %v1192 = vadd.f32 0.0, %v1191
      %v1193 = vpop.f32.mrf.mxu0
      %v1194 = vadd.f32 0.0, %v1193
      %1195 = vmatprep.mubr.bf16.mxu0 0
      %1196 = vmatmul.mubr.bf16.gmra.mxu0 %v1039
      %v1197 = vpop.f32.mrf.mxu0
      %v1198 = vadd.f32 0.0, %v1197
      %v1199 = vpop.f32.mrf.mxu0
      %v1200 = vadd.f32 0.0, %v1199
      %v1201 = vpop.f32.mrf.mxu0
      %v1202 = vadd.f32 0.0, %v1201
      %v1203 = vpop.f32.mrf.mxu0
      %v1204 = vadd.f32 0.0, %v1203
      %1205 = vmatprep.mubr.bf16.mxu0 0
      %1206 = vmatmul.mubr.bf16.gmra.mxu0 %v1042
      %v1207 = vpop.f32.mrf.mxu0
      %v1208 = vadd.f32 0.0, %v1207
      %v1209 = vpop.f32.mrf.mxu0
      %v1210 = vadd.f32 0.0, %v1209
      %v1211 = vpop.f32.mrf.mxu0
      %v1212 = vadd.f32 0.0, %v1211
      %v1213 = vpop.f32.mrf.mxu0
      %v1214 = vadd.f32 0.0, %v1213
      %1215 = vmatprep.mubr.bf16.mxu0 0
      %1216 = vmatmul.mubr.bf16.gmra.mxu0 %v1045
      %v1217 = vpop.f32.mrf.mxu0
      %v1218 = vadd.f32 0.0, %v1217
      %v1219 = vpop.f32.mrf.mxu0
      %v1220 = vadd.f32 0.0, %v1219
      %v1221 = vpop.f32.mrf.mxu0
      %v1222 = vadd.f32 0.0, %v1221
      %v1223 = vpop.f32.mrf.mxu0
      %v1224 = vadd.f32 0.0, %v1223
      %1225 = vmatprep.mubr.bf16.mxu0 0
      %1226 = vmatmul.mubr.bf16.gmra.mxu0 %v1048
      %v1227 = vpop.f32.mrf.mxu0
      %v1228 = vadd.f32 0.0, %v1227
      %v1229 = vpop.f32.mrf.mxu0
      %v1230 = vadd.f32 0.0, %v1229
      %v1231 = vpop.f32.mrf.mxu0
      %v1232 = vadd.f32 0.0, %v1231
      %v1233 = vpop.f32.mrf.mxu0
      %v1234 = vadd.f32 0.0, %v1233
      %1235 = vmatprep.mubr.bf16.mxu0 0
      %1236 = vmatmul.mubr.bf16.gmra.mxu0 %v1051
      %v1237 = vpop.f32.mrf.mxu0
      %v1238 = vadd.f32 0.0, %v1237
      %v1239 = vpop.f32.mrf.mxu0
      %v1240 = vadd.f32 0.0, %v1239
      %v1241 = vpop.f32.mrf.mxu0
      %v1242 = vadd.f32 0.0, %v1241
      %v1243 = vpop.f32.mrf.mxu0
      %v1244 = vadd.f32 0.0, %v1243
      %1245 = vmatprep.mubr.bf16.mxu0 0
      %1246 = vmatmul.mubr.bf16.gmra.mxu0 %v1054
      %v1247 = vpop.f32.mrf.mxu0
      %v1248 = vadd.f32 0.0, %v1247
      %v1249 = vpop.f32.mrf.mxu0
      %v1250 = vadd.f32 0.0, %v1249
      %v1251 = vpop.f32.mrf.mxu0
      %v1252 = vadd.f32 0.0, %v1251
      %v1253 = vpop.f32.mrf.mxu0
      %v1254 = vadd.f32 0.0, %v1253
      %1255 = vdwg.mxu0
      %v1256 = vmax.f32 %v1098, %v1100
      %1257 = vmax.xlane.f32.xlu0 %v1256
      %v1258 = vpop.xlane.xlu0 %1257
      %v1259 = vmax.f32 %v1102, %v1104
      %1260 = vmax.xlane.f32.xlu0 %v1259
      %v1261 = vpop.xlane.xlu0 %1260
      %v1262 = vmax.f32 %v1108, %v1110
      %1263 = vmax.xlane.f32.xlu0 %v1262
      %v1264 = vpop.xlane.xlu0 %1263
      %v1265 = vmax.f32 %v1112, %v1114
      %1266 = vmax.xlane.f32.xlu0 %v1265
      %v1267 = vpop.xlane.xlu0 %1266
      %v1268 = vmax.f32 %v1118, %v1120
      %1269 = vmax.xlane.f32.xlu0 %v1268
      %v1270 = vpop.xlane.xlu0 %1269
      %v1271 = vmax.f32 %v1122, %v1124
      %1272 = vmax.xlane.f32.xlu0 %v1271
      %v1273 = vpop.xlane.xlu0 %1272
      %v1274 = vmax.f32 %v1128, %v1130
      %1275 = vmax.xlane.f32.xlu0 %v1274
      %v1276 = vpop.xlane.xlu0 %1275
      %v1277 = vmax.f32 %v1132, %v1134
      %1278 = vmax.xlane.f32.xlu0 %v1277
      %v1279 = vpop.xlane.xlu0 %1278
      %v1280 = vmax.f32 %v1138, %v1140
      %1281 = vmax.xlane.f32.xlu0 %v1280
      %v1282 = vpop.xlane.xlu0 %1281
      %v1283 = vmax.f32 %v1142, %v1144
      %1284 = vmax.xlane.f32.xlu0 %v1283
      %v1285 = vpop.xlane.xlu0 %1284
      %v1286 = vmax.f32 %v1148, %v1150
      %1287 = vmax.xlane.f32.xlu0 %v1286
      %v1288 = vpop.xlane.xlu0 %1287
      %v1289 = vmax.f32 %v1152, %v1154
      %1290 = vmax.xlane.f32.xlu0 %v1289
      %v1291 = vpop.xlane.xlu0 %1290
      %v1292 = vmax.f32 %v1158, %v1160
      %1293 = vmax.xlane.f32.xlu0 %v1292
      %v1294 = vpop.xlane.xlu0 %1293
      %v1295 = vmax.f32 %v1162, %v1164
      %1296 = vmax.xlane.f32.xlu0 %v1295
      %v1297 = vpop.xlane.xlu0 %1296
      %v1298 = vmax.f32 %v1168, %v1170
      %1299 = vmax.xlane.f32.xlu0 %v1298
      %v1300 = vpop.xlane.xlu0 %1299
      %v1301 = vmax.f32 %v1172, %v1174
      %1302 = vmax.xlane.f32.xlu0 %v1301
      %v1303 = vpop.xlane.xlu0 %1302
      %v1304 = vmax.f32 %v1178, %v1180
      %1305 = vmax.xlane.f32.xlu0 %v1304
      %v1306 = vpop.xlane.xlu0 %1305
      %v1307 = vmax.f32 %v1182, %v1184
      %1308 = vmax.xlane.f32.xlu0 %v1307
      %v1309 = vpop.xlane.xlu0 %1308
      %v1310 = vmax.f32 %v1188, %v1190
      %1311 = vmax.xlane.f32.xlu0 %v1310
      %v1312 = vpop.xlane.xlu0 %1311
      %v1313 = vmax.f32 %v1192, %v1194
      %1314 = vmax.xlane.f32.xlu0 %v1313
      %v1315 = vpop.xlane.xlu0 %1314
      %v1316 = vmax.f32 %v1198, %v1200
      %1317 = vmax.xlane.f32.xlu0 %v1316
      %v1318 = vpop.xlane.xlu0 %1317
      %v1319 = vmax.f32 %v1202, %v1204
      %1320 = vmax.xlane.f32.xlu0 %v1319
      %v1321 = vpop.xlane.xlu0 %1320
      %v1322 = vmax.f32 %v1208, %v1210
      %1323 = vmax.xlane.f32.xlu0 %v1322
      %v1324 = vpop.xlane.xlu0 %1323
      %v1325 = vmax.f32 %v1212, %v1214
      %1326 = vmax.xlane.f32.xlu0 %v1325
      %v1327 = vpop.xlane.xlu0 %1326
      %v1328 = vmax.f32 %v1218, %v1220
      %1329 = vmax.xlane.f32.xlu0 %v1328
      %v1330 = vpop.xlane.xlu0 %1329
      %v1331 = vmax.f32 %v1222, %v1224
      %1332 = vmax.xlane.f32.xlu0 %v1331
      %v1333 = vpop.xlane.xlu0 %1332
      %v1334 = vmax.f32 %v1228, %v1230
      %1335 = vmax.xlane.f32.xlu0 %v1334
      %v1336 = vpop.xlane.xlu0 %1335
      %v1337 = vmax.f32 %v1232, %v1234
      %1338 = vmax.xlane.f32.xlu0 %v1337
      %v1339 = vpop.xlane.xlu0 %1338
      %v1340 = vmax.f32 %v1238, %v1240
      %1341 = vmax.xlane.f32.xlu0 %v1340
      %v1342 = vpop.xlane.xlu0 %1341
      %v1343 = vmax.f32 %v1242, %v1244
      %1344 = vmax.xlane.f32.xlu0 %v1343
      %v1345 = vpop.xlane.xlu0 %1344
      %v1346 = vmax.f32 %v1248, %v1250
      %1347 = vmax.xlane.f32.xlu0 %v1346
      %v1348 = vpop.xlane.xlu0 %1347
      %v1349 = vmax.f32 %v1252, %v1254
      %1350 = vmax.xlane.f32.xlu0 %v1349
      %v1351 = vpop.xlane.xlu0 %1350
      %v1352 = vsub.f32 %v1098, %v1258
      %v1353 = vsub.f32 %v1100, %v1258
      %v1354 = vsub.f32 %v1102, %v1261
      %v1355 = vsub.f32 %v1104, %v1261
      %v1356 = vsub.f32 %v1108, %v1264
      %v1357 = vsub.f32 %v1110, %v1264
      %v1358 = vsub.f32 %v1112, %v1267
      %v1359 = vsub.f32 %v1114, %v1267
      %v1360 = vsub.f32 %v1118, %v1270
      %v1361 = vsub.f32 %v1120, %v1270
      %v1362 = vsub.f32 %v1122, %v1273
      %v1363 = vsub.f32 %v1124, %v1273
      %v1364 = vsub.f32 %v1128, %v1276
      %v1365 = vsub.f32 %v1130, %v1276
      %v1366 = vsub.f32 %v1132, %v1279
      %v1367 = vsub.f32 %v1134, %v1279
      %v1368 = vsub.f32 %v1138, %v1282
      %v1369 = vsub.f32 %v1140, %v1282
      %v1370 = vsub.f32 %v1142, %v1285
      %v1371 = vsub.f32 %v1144, %v1285
      %v1372 = vsub.f32 %v1148, %v1288
      %v1373 = vsub.f32 %v1150, %v1288
      %v1374 = vsub.f32 %v1152, %v1291
      %v1375 = vsub.f32 %v1154, %v1291
      %v1376 = vsub.f32 %v1158, %v1294
      %v1377 = vsub.f32 %v1160, %v1294
      %v1378 = vsub.f32 %v1162, %v1297
      %v1379 = vsub.f32 %v1164, %v1297
      %v1380 = vsub.f32 %v1168, %v1300
      %v1381 = vsub.f32 %v1170, %v1300
      %v1382 = vsub.f32 %v1172, %v1303
      %v1383 = vsub.f32 %v1174, %v1303
      %v1384 = vsub.f32 %v1178, %v1306
      %v1385 = vsub.f32 %v1180, %v1306
      %v1386 = vsub.f32 %v1182, %v1309
      %v1387 = vsub.f32 %v1184, %v1309
      %v1388 = vsub.f32 %v1188, %v1312
      %v1389 = vsub.f32 %v1190, %v1312
      %v1390 = vsub.f32 %v1192, %v1315
      %v1391 = vsub.f32 %v1194, %v1315
      %v1392 = vsub.f32 %v1198, %v1318
      %v1393 = vsub.f32 %v1200, %v1318
      %v1394 = vsub.f32 %v1202, %v1321
      %v1395 = vsub.f32 %v1204, %v1321
      %v1396 = vsub.f32 %v1208, %v1324
      %v1397 = vsub.f32 %v1210, %v1324
      %v1398 = vsub.f32 %v1212, %v1327
      %v1399 = vsub.f32 %v1214, %v1327
      %v1400 = vsub.f32 %v1218, %v1330
      %v1401 = vsub.f32 %v1220, %v1330
      %v1402 = vsub.f32 %v1222, %v1333
      %v1403 = vsub.f32 %v1224, %v1333
      %v1404 = vsub.f32 %v1228, %v1336
      %v1405 = vsub.f32 %v1230, %v1336
      %v1406 = vsub.f32 %v1232, %v1339
      %v1407 = vsub.f32 %v1234, %v1339
      %v1408 = vsub.f32 %v1238, %v1342
      %v1409 = vsub.f32 %v1240, %v1342
      %v1410 = vsub.f32 %v1242, %v1345
      %v1411 = vsub.f32 %v1244, %v1345
      %v1412 = vsub.f32 %v1248, %v1348
      %v1413 = vsub.f32 %v1250, %v1348
      %v1414 = vsub.f32 %v1252, %v1351
      %v1415 = vsub.f32 %v1254, %v1351
      %v1416 = vmul.f32 %v1352, 1.442695
      %v1417 = vpow.pop %v1416
      %v1418 = vmul.f32 %v1353, 1.442695
      %v1419 = vpow.pop %v1418
      %v1420 = vmul.f32 %v1354, 1.442695
      %v1421 = vpow.pop %v1420
      %v1422 = vmul.f32 %v1355, 1.442695
      %v1423 = vpow.pop %v1422
      %v1424 = vmul.f32 %v1356, 1.442695
      %v1425 = vpow.pop %v1424
      %v1426 = vmul.f32 %v1357, 1.442695
      %v1427 = vpow.pop %v1426
      %v1428 = vmul.f32 %v1358, 1.442695
      %v1429 = vpow.pop %v1428
      %v1430 = vmul.f32 %v1359, 1.442695
      %v1431 = vpow.pop %v1430
      %v1432 = vmul.f32 %v1360, 1.442695
      %v1433 = vpow.pop %v1432
      %v1434 = vmul.f32 %v1361, 1.442695
      %v1435 = vpow.pop %v1434
      %v1436 = vmul.f32 %v1362, 1.442695
      %v1437 = vpow.pop %v1436
      %v1438 = vmul.f32 %v1363, 1.442695
      %v1439 = vpow.pop %v1438
      %v1440 = vmul.f32 %v1364, 1.442695
      %v1441 = vpow.pop %v1440
      %v1442 = vmul.f32 %v1365, 1.442695
      %v1443 = vpow.pop %v1442
      %v1444 = vmul.f32 %v1366, 1.442695
      %v1445 = vpow.pop %v1444
      %v1446 = vmul.f32 %v1367, 1.442695
      %v1447 = vpow.pop %v1446
      %v1448 = vmul.f32 %v1368, 1.442695
      %v1449 = vpow.pop %v1448
      %v1450 = vmul.f32 %v1369, 1.442695
      %v1451 = vpow.pop %v1450
      %v1452 = vmul.f32 %v1370, 1.442695
      %v1453 = vpow.pop %v1452
      %v1454 = vmul.f32 %v1371, 1.442695
      %v1455 = vpow.pop %v1454
      %v1456 = vmul.f32 %v1372, 1.442695
      %v1457 = vpow.pop %v1456
      %v1458 = vmul.f32 %v1373, 1.442695
      %v1459 = vpow.pop %v1458
      %v1460 = vmul.f32 %v1374, 1.442695
      %v1461 = vpow.pop %v1460
      %v1462 = vmul.f32 %v1375, 1.442695
      %v1463 = vpow.pop %v1462
      %v1464 = vmul.f32 %v1376, 1.442695
      %v1465 = vpow.pop %v1464
      %v1466 = vmul.f32 %v1377, 1.442695
      %v1467 = vpow.pop %v1466
      %v1468 = vmul.f32 %v1378, 1.442695
      %v1469 = vpow.pop %v1468
      %v1470 = vmul.f32 %v1379, 1.442695
      %v1471 = vpow.pop %v1470
      %v1472 = vmul.f32 %v1380, 1.442695
      %v1473 = vpow.pop %v1472
      %v1474 = vmul.f32 %v1381, 1.442695
      %v1475 = vpow.pop %v1474
      %v1476 = vmul.f32 %v1382, 1.442695
      %v1477 = vpow.pop %v1476
      %v1478 = vmul.f32 %v1383, 1.442695
      %v1479 = vpow.pop %v1478
      %v1480 = vmul.f32 %v1384, 1.442695
      %v1481 = vpow.pop %v1480
      %v1482 = vmul.f32 %v1385, 1.442695
      %v1483 = vpow.pop %v1482
      %v1484 = vmul.f32 %v1386, 1.442695
      %v1485 = vpow.pop %v1484
      %v1486 = vmul.f32 %v1387, 1.442695
      %v1487 = vpow.pop %v1486
      %v1488 = vmul.f32 %v1388, 1.442695
      %v1489 = vpow.pop %v1488
      %v1490 = vmul.f32 %v1389, 1.442695
      %v1491 = vpow.pop %v1490
      %v1492 = vmul.f32 %v1390, 1.442695
      %v1493 = vpow.pop %v1492
      %v1494 = vmul.f32 %v1391, 1.442695
      %v1495 = vpow.pop %v1494
      %v1496 = vmul.f32 %v1392, 1.442695
      %v1497 = vpow.pop %v1496
      %v1498 = vmul.f32 %v1393, 1.442695
      %v1499 = vpow.pop %v1498
      %v1500 = vmul.f32 %v1394, 1.442695
      %v1501 = vpow.pop %v1500
      %v1502 = vmul.f32 %v1395, 1.442695
      %v1503 = vpow.pop %v1502
      %v1504 = vmul.f32 %v1396, 1.442695
      %v1505 = vpow.pop %v1504
      %v1506 = vmul.f32 %v1397, 1.442695
      %v1507 = vpow.pop %v1506
      %v1508 = vmul.f32 %v1398, 1.442695
      %v1509 = vpow.pop %v1508
      %v1510 = vmul.f32 %v1399, 1.442695
      %v1511 = vpow.pop %v1510
      %v1512 = vmul.f32 %v1400, 1.442695
      %v1513 = vpow.pop %v1512
      %v1514 = vmul.f32 %v1401, 1.442695
      %v1515 = vpow.pop %v1514
      %v1516 = vmul.f32 %v1402, 1.442695
      %v1517 = vpow.pop %v1516
      %v1518 = vmul.f32 %v1403, 1.442695
      %v1519 = vpow.pop %v1518
      %v1520 = vmul.f32 %v1404, 1.442695
      %v1521 = vpow.pop %v1520
      %v1522 = vmul.f32 %v1405, 1.442695
      %v1523 = vpow.pop %v1522
      %v1524 = vmul.f32 %v1406, 1.442695
      %v1525 = vpow.pop %v1524
      %v1526 = vmul.f32 %v1407, 1.442695
      %v1527 = vpow.pop %v1526
      %v1528 = vmul.f32 %v1408, 1.442695
      %v1529 = vpow.pop %v1528
      %v1530 = vmul.f32 %v1409, 1.442695
      %v1531 = vpow.pop %v1530
      %v1532 = vmul.f32 %v1410, 1.442695
      %v1533 = vpow.pop %v1532
      %v1534 = vmul.f32 %v1411, 1.442695
      %v1535 = vpow.pop %v1534
      %v1536 = vmul.f32 %v1412, 1.442695
      %v1537 = vpow.pop %v1536
      %v1538 = vmul.f32 %v1413, 1.442695
      %v1539 = vpow.pop %v1538
      %v1540 = vmul.f32 %v1414, 1.442695
      %v1541 = vpow.pop %v1540
      %v1542 = vmul.f32 %v1415, 1.442695
      %v1543 = vpow.pop %v1542
      %v1544 = vadd.f32 %v1417, %v1419
      %1545 = vadd.xlane.f32.xlu0 %v1544
      %v1546 = vpop.xlane.xlu0 %1545
      %v1547 = vadd.f32 %v1421, %v1423
      %1548 = vadd.xlane.f32.xlu0 %v1547
      %v1549 = vpop.xlane.xlu0 %1548
      %v1550 = vadd.f32 %v1425, %v1427
      %1551 = vadd.xlane.f32.xlu0 %v1550
      %v1552 = vpop.xlane.xlu0 %1551
      %v1553 = vadd.f32 %v1429, %v1431
      %1554 = vadd.xlane.f32.xlu0 %v1553
      %v1555 = vpop.xlane.xlu0 %1554
      %v1556 = vadd.f32 %v1433, %v1435
      %1557 = vadd.xlane.f32.xlu0 %v1556
      %v1558 = vpop.xlane.xlu0 %1557
      %v1559 = vadd.f32 %v1437, %v1439
      %1560 = vadd.xlane.f32.xlu0 %v1559
      %v1561 = vpop.xlane.xlu0 %1560
      %v1562 = vadd.f32 %v1441, %v1443
      %1563 = vadd.xlane.f32.xlu0 %v1562
      %v1564 = vpop.xlane.xlu0 %1563
      %v1565 = vadd.f32 %v1445, %v1447
      %1566 = vadd.xlane.f32.xlu0 %v1565
      %v1567 = vpop.xlane.xlu0 %1566
      %v1568 = vadd.f32 %v1449, %v1451
      %1569 = vadd.xlane.f32.xlu0 %v1568
      %v1570 = vpop.xlane.xlu0 %1569
      %v1571 = vadd.f32 %v1453, %v1455
      %1572 = vadd.xlane.f32.xlu0 %v1571
      %v1573 = vpop.xlane.xlu0 %1572
      %v1574 = vadd.f32 %v1457, %v1459
      %1575 = vadd.xlane.f32.xlu0 %v1574
      %v1576 = vpop.xlane.xlu0 %1575
      %v1577 = vadd.f32 %v1461, %v1463
      %1578 = vadd.xlane.f32.xlu0 %v1577
      %v1579 = vpop.xlane.xlu0 %1578
      %v1580 = vadd.f32 %v1465, %v1467
      %1581 = vadd.xlane.f32.xlu0 %v1580
      %v1582 = vpop.xlane.xlu0 %1581
      %v1583 = vadd.f32 %v1469, %v1471
      %1584 = vadd.xlane.f32.xlu0 %v1583
      %v1585 = vpop.xlane.xlu0 %1584
      %v1586 = vadd.f32 %v1473, %v1475
      %1587 = vadd.xlane.f32.xlu0 %v1586
      %v1588 = vpop.xlane.xlu0 %1587
      %v1589 = vadd.f32 %v1477, %v1479
      %1590 = vadd.xlane.f32.xlu0 %v1589
      %v1591 = vpop.xlane.xlu0 %1590
      %v1592 = vadd.f32 %v1481, %v1483
      %1593 = vadd.xlane.f32.xlu0 %v1592
      %v1594 = vpop.xlane.xlu0 %1593
      %v1595 = vadd.f32 %v1485, %v1487
      %1596 = vadd.xlane.f32.xlu0 %v1595
      %v1597 = vpop.xlane.xlu0 %1596
      %v1598 = vadd.f32 %v1489, %v1491
      %1599 = vadd.xlane.f32.xlu0 %v1598
      %v1600 = vpop.xlane.xlu0 %1599
      %v1601 = vadd.f32 %v1493, %v1495
      %1602 = vadd.xlane.f32.xlu0 %v1601
      %v1603 = vpop.xlane.xlu0 %1602
      %v1604 = vadd.f32 %v1497, %v1499
      %1605 = vadd.xlane.f32.xlu0 %v1604
      %v1606 = vpop.xlane.xlu0 %1605
      %v1607 = vadd.f32 %v1501, %v1503
      %1608 = vadd.xlane.f32.xlu0 %v1607
      %v1609 = vpop.xlane.xlu0 %1608
      %v1610 = vadd.f32 %v1505, %v1507
      %1611 = vadd.xlane.f32.xlu0 %v1610
      %v1612 = vpop.xlane.xlu0 %1611
      %v1613 = vadd.f32 %v1509, %v1511
      %1614 = vadd.xlane.f32.xlu0 %v1613
      %v1615 = vpop.xlane.xlu0 %1614
      %v1616 = vadd.f32 %v1513, %v1515
      %1617 = vadd.xlane.f32.xlu0 %v1616
      %v1618 = vpop.xlane.xlu0 %1617
      %v1619 = vadd.f32 %v1517, %v1519
      %1620 = vadd.xlane.f32.xlu0 %v1619
      %v1621 = vpop.xlane.xlu0 %1620
      %v1622 = vadd.f32 %v1521, %v1523
      %1623 = vadd.xlane.f32.xlu0 %v1622
      %v1624 = vpop.xlane.xlu0 %1623
      %v1625 = vadd.f32 %v1525, %v1527
      %1626 = vadd.xlane.f32.xlu0 %v1625
      %v1627 = vpop.xlane.xlu0 %1626
      %v1628 = vadd.f32 %v1529, %v1531
      %1629 = vadd.xlane.f32.xlu0 %v1628
      %v1630 = vpop.xlane.xlu0 %1629
      %v1631 = vadd.f32 %v1533, %v1535
      %1632 = vadd.xlane.f32.xlu0 %v1631
      %v1633 = vpop.xlane.xlu0 %1632
      %v1634 = vadd.f32 %v1537, %v1539
      %1635 = vadd.xlane.f32.xlu0 %v1634
      %v1636 = vpop.xlane.xlu0 %1635
      %v1637 = vadd.f32 %v1541, %v1543
      %1638 = vadd.xlane.f32.xlu0 %v1637
      %v1639 = vpop.xlane.xlu0 %1638
      %v1640 = vrcp.pop %v1546
      %v1641 = vrcp.pop %v1549
      %v1642 = vrcp.pop %v1552
      %v1643 = vrcp.pop %v1555
      %v1644 = vrcp.pop %v1558
      %v1645 = vrcp.pop %v1561
      %v1646 = vrcp.pop %v1564
      %v1647 = vrcp.pop %v1567
      %v1648 = vrcp.pop %v1570
      %v1649 = vrcp.pop %v1573
      %v1650 = vrcp.pop %v1576
      %v1651 = vrcp.pop %v1579
      %v1652 = vrcp.pop %v1582
      %v1653 = vrcp.pop %v1585
      %v1654 = vrcp.pop %v1588
      %v1655 = vrcp.pop %v1591
      %v1656 = vrcp.pop %v1594
      %v1657 = vrcp.pop %v1597
      %v1658 = vrcp.pop %v1600
      %v1659 = vrcp.pop %v1603
      %v1660 = vrcp.pop %v1606
      %v1661 = vrcp.pop %v1609
      %v1662 = vrcp.pop %v1612
      %v1663 = vrcp.pop %v1615
      %v1664 = vrcp.pop %v1618
      %v1665 = vrcp.pop %v1621
      %v1666 = vrcp.pop %v1624
      %v1667 = vrcp.pop %v1627
      %v1668 = vrcp.pop %v1630
      %v1669 = vrcp.pop %v1633
      %v1670 = vrcp.pop %v1636
      %v1671 = vrcp.pop %v1639
      %s1672 = smul.u32 %s24, 256
      %s1673 = sshra.s32 %s1672, 7
      %s1674 = sand.u32 %s1672, 127
      %s1675 = smul.addr %s1673, 2
      %s1676 = scalar_lea.vmem [#allocation2], %s1675
      %v1677 = vld [vmem:[%s1676] sm:$0xf]
      %v1678 = vunpack.c.l.bf16 %v1677
      %v1712 = vunpack.c.l.s4 839922192
      %v1713 = vunpack.c.0.s8 %v1712
      %v1714 = vlaneseq
      %v1715 = vshrl.u32 %v1714, 7
      %v1716 = vsub.s32 %v1713, %v1715
      %v1717 = vrot.slane %v1640, %v1716
      %v1719 = vunpack.c.l.s4 1985246804
      %v1720 = vunpack.c.0.s8 %v1719
      %v1721 = vlaneseq
      %v1722 = vshrl.u32 %v1721, 7
      %v1723 = vsub.s32 %v1720, %v1722
      %v1724 = vrot.slane %v1640, %v1723
      %v1726 = vunpack.c.l.s4 839922192
      %v1727 = vunpack.c.0.s8 %v1726
      %v1728 = vlaneseq
      %v1729 = vshrl.u32 %v1728, 7
      %v1730 = vsub.s32 %v1727, %v1729
      %v1731 = vrot.slane %v1641, %v1730
      %v1733 = vunpack.c.l.s4 1985246804
      %v1734 = vunpack.c.0.s8 %v1733
      %v1735 = vlaneseq
      %v1736 = vshrl.u32 %v1735, 7
      %v1737 = vsub.s32 %v1734, %v1736
      %v1738 = vrot.slane %v1641, %v1737
      %v1740 = vunpack.c.l.s4 839922192
      %v1741 = vunpack.c.0.s8 %v1740
      %v1742 = vlaneseq
      %v1743 = vshrl.u32 %v1742, 7
      %v1744 = vsub.s32 %v1741, %v1743
      %v1745 = vrot.slane %v1642, %v1744
      %v1747 = vunpack.c.l.s4 1985246804
      %v1748 = vunpack.c.0.s8 %v1747
      %v1749 = vlaneseq
      %v1750 = vshrl.u32 %v1749, 7
      %v1751 = vsub.s32 %v1748, %v1750
      %v1752 = vrot.slane %v1642, %v1751
      %v1754 = vunpack.c.l.s4 839922192
      %v1755 = vunpack.c.0.s8 %v1754
      %v1756 = vlaneseq
      %v1757 = vshrl.u32 %v1756, 7
      %v1758 = vsub.s32 %v1755, %v1757
      %v1759 = vrot.slane %v1643, %v1758
      %v1761 = vunpack.c.l.s4 1985246804
      %v1762 = vunpack.c.0.s8 %v1761
      %v1763 = vlaneseq
      %v1764 = vshrl.u32 %v1763, 7
      %v1765 = vsub.s32 %v1762, %v1764
      %v1766 = vrot.slane %v1643, %v1765
      %v1768 = vunpack.c.l.s4 839922192
      %v1769 = vunpack.c.0.s8 %v1768
      %v1770 = vlaneseq
      %v1771 = vshrl.u32 %v1770, 7
      %v1772 = vsub.s32 %v1769, %v1771
      %v1773 = vrot.slane %v1644, %v1772
      %v1775 = vunpack.c.l.s4 1985246804
      %v1776 = vunpack.c.0.s8 %v1775
      %v1777 = vlaneseq
      %v1778 = vshrl.u32 %v1777, 7
      %v1779 = vsub.s32 %v1776, %v1778
      %v1780 = vrot.slane %v1644, %v1779
      %v1782 = vunpack.c.l.s4 839922192
      %v1783 = vunpack.c.0.s8 %v1782
      %v1784 = vlaneseq
      %v1785 = vshrl.u32 %v1784, 7
      %v1786 = vsub.s32 %v1783, %v1785
      %v1787 = vrot.slane %v1645, %v1786
      %v1789 = vunpack.c.l.s4 1985246804
      %v1790 = vunpack.c.0.s8 %v1789
      %v1791 = vlaneseq
      %v1792 = vshrl.u32 %v1791, 7
      %v1793 = vsub.s32 %v1790, %v1792
      %v1794 = vrot.slane %v1645, %v1793
      %v1796 = vunpack.c.l.s4 839922192
      %v1797 = vunpack.c.0.s8 %v1796
      %v1798 = vlaneseq
      %v1799 = vshrl.u32 %v1798, 7
      %v1800 = vsub.s32 %v1797, %v1799
      %v1801 = vrot.slane %v1646, %v1800
      %v1803 = vunpack.c.l.s4 1985246804
      %v1804 = vunpack.c.0.s8 %v1803
      %v1805 = vlaneseq
      %v1806 = vshrl.u32 %v1805, 7
      %v1807 = vsub.s32 %v1804, %v1806
      %v1808 = vrot.slane %v1646, %v1807
      %v1810 = vunpack.c.l.s4 839922192
      %v1811 = vunpack.c.0.s8 %v1810
      %v1812 = vlaneseq
      %v1813 = vshrl.u32 %v1812, 7
      %v1814 = vsub.s32 %v1811, %v1813
      %v1815 = vrot.slane %v1647, %v1814
      %v1817 = vunpack.c.l.s4 1985246804
      %v1818 = vunpack.c.0.s8 %v1817
      %v1819 = vlaneseq
      %v1820 = vshrl.u32 %v1819, 7
      %v1821 = vsub.s32 %v1818, %v1820
      %v1822 = vrot.slane %v1647, %v1821
      %v1824 = vunpack.c.l.s4 839922192
      %v1825 = vunpack.c.0.s8 %v1824
      %v1826 = vlaneseq
      %v1827 = vshrl.u32 %v1826, 7
      %v1828 = vsub.s32 %v1825, %v1827
      %v1829 = vrot.slane %v1648, %v1828
      %v1831 = vunpack.c.l.s4 1985246804
      %v1832 = vunpack.c.0.s8 %v1831
      %v1833 = vlaneseq
      %v1834 = vshrl.u32 %v1833, 7
      %v1835 = vsub.s32 %v1832, %v1834
      %v1836 = vrot.slane %v1648, %v1835
      %v1838 = vunpack.c.l.s4 839922192
      %v1839 = vunpack.c.0.s8 %v1838
      %v1840 = vlaneseq
      %v1841 = vshrl.u32 %v1840, 7
      %v1842 = vsub.s32 %v1839, %v1841
      %v1843 = vrot.slane %v1649, %v1842
      %v1845 = vunpack.c.l.s4 1985246804
      %v1846 = vunpack.c.0.s8 %v1845
      %v1847 = vlaneseq
      %v1848 = vshrl.u32 %v1847, 7
      %v1849 = vsub.s32 %v1846, %v1848
      %v1850 = vrot.slane %v1649, %v1849
      %v1852 = vunpack.c.l.s4 839922192
      %v1853 = vunpack.c.0.s8 %v1852
      %v1854 = vlaneseq
      %v1855 = vshrl.u32 %v1854, 7
      %v1856 = vsub.s32 %v1853, %v1855
      %v1857 = vrot.slane %v1650, %v1856
      %v1859 = vunpack.c.l.s4 1985246804
      %v1860 = vunpack.c.0.s8 %v1859
      %v1861 = vlaneseq
      %v1862 = vshrl.u32 %v1861, 7
      %v1863 = vsub.s32 %v1860, %v1862
      %v1864 = vrot.slane %v1650, %v1863
      %v1866 = vunpack.c.l.s4 839922192
      %v1867 = vunpack.c.0.s8 %v1866
      %v1868 = vlaneseq
      %v1869 = vshrl.u32 %v1868, 7
      %v1870 = vsub.s32 %v1867, %v1869
      %v1871 = vrot.slane %v1651, %v1870
      %v1873 = vunpack.c.l.s4 1985246804
      %v1874 = vunpack.c.0.s8 %v1873
      %v1875 = vlaneseq
      %v1876 = vshrl.u32 %v1875, 7
      %v1877 = vsub.s32 %v1874, %v1876
      %v1878 = vrot.slane %v1651, %v1877
      %v1880 = vunpack.c.l.s4 839922192
      %v1881 = vunpack.c.0.s8 %v1880
      %v1882 = vlaneseq
      %v1883 = vshrl.u32 %v1882, 7
      %v1884 = vsub.s32 %v1881, %v1883
      %v1885 = vrot.slane %v1652, %v1884
      %v1887 = vunpack.c.l.s4 1985246804
      %v1888 = vunpack.c.0.s8 %v1887
      %v1889 = vlaneseq
      %v1890 = vshrl.u32 %v1889, 7
      %v1891 = vsub.s32 %v1888, %v1890
      %v1892 = vrot.slane %v1652, %v1891
      %v1894 = vunpack.c.l.s4 839922192
      %v1895 = vunpack.c.0.s8 %v1894
      %v1896 = vlaneseq
      %v1897 = vshrl.u32 %v1896, 7
      %v1898 = vsub.s32 %v1895, %v1897
      %v1899 = vrot.slane %v1653, %v1898
      %v1901 = vunpack.c.l.s4 1985246804
      %v1902 = vunpack.c.0.s8 %v1901
      %v1903 = vlaneseq
      %v1904 = vshrl.u32 %v1903, 7
      %v1905 = vsub.s32 %v1902, %v1904
      %v1906 = vrot.slane %v1653, %v1905
      %v1908 = vunpack.c.l.s4 839922192
      %v1909 = vunpack.c.0.s8 %v1908
      %v1910 = vlaneseq
      %v1911 = vshrl.u32 %v1910, 7
      %v1912 = vsub.s32 %v1909, %v1911
      %v1913 = vrot.slane %v1654, %v1912
      %v1915 = vunpack.c.l.s4 1985246804
      %v1916 = vunpack.c.0.s8 %v1915
      %v1917 = vlaneseq
      %v1918 = vshrl.u32 %v1917, 7
      %v1919 = vsub.s32 %v1916, %v1918
      %v1920 = vrot.slane %v1654, %v1919
      %v1922 = vunpack.c.l.s4 839922192
      %v1923 = vunpack.c.0.s8 %v1922
      %v1924 = vlaneseq
      %v1925 = vshrl.u32 %v1924, 7
      %v1926 = vsub.s32 %v1923, %v1925
      %v1927 = vrot.slane %v1655, %v1926
      %v1929 = vunpack.c.l.s4 1985246804
      %v1930 = vunpack.c.0.s8 %v1929
      %v1931 = vlaneseq
      %v1932 = vshrl.u32 %v1931, 7
      %v1933 = vsub.s32 %v1930, %v1932
      %v1934 = vrot.slane %v1655, %v1933
      %v1936 = vunpack.c.l.s4 839922192
      %v1937 = vunpack.c.0.s8 %v1936
      %v1938 = vlaneseq
      %v1939 = vshrl.u32 %v1938, 7
      %v1940 = vsub.s32 %v1937, %v1939
      %v1941 = vrot.slane %v1656, %v1940
      %v1943 = vunpack.c.l.s4 1985246804
      %v1944 = vunpack.c.0.s8 %v1943
      %v1945 = vlaneseq
      %v1946 = vshrl.u32 %v1945, 7
      %v1947 = vsub.s32 %v1944, %v1946
      %v1948 = vrot.slane %v1656, %v1947
      %v1950 = vunpack.c.l.s4 839922192
      %v1951 = vunpack.c.0.s8 %v1950
      %v1952 = vlaneseq
      %v1953 = vshrl.u32 %v1952, 7
      %v1954 = vsub.s32 %v1951, %v1953
      %v1955 = vrot.slane %v1657, %v1954
      %v1957 = vunpack.c.l.s4 1985246804
      %v1958 = vunpack.c.0.s8 %v1957
      %v1959 = vlaneseq
      %v1960 = vshrl.u32 %v1959, 7
      %v1961 = vsub.s32 %v1958, %v1960
      %v1962 = vrot.slane %v1657, %v1961
      %v1964 = vunpack.c.l.s4 839922192
      %v1965 = vunpack.c.0.s8 %v1964
      %v1966 = vlaneseq
      %v1967 = vshrl.u32 %v1966, 7
      %v1968 = vsub.s32 %v1965, %v1967
      %v1969 = vrot.slane %v1658, %v1968
      %v1971 = vunpack.c.l.s4 1985246804
      %v1972 = vunpack.c.0.s8 %v1971
      %v1973 = vlaneseq
      %v1974 = vshrl.u32 %v1973, 7
      %v1975 = vsub.s32 %v1972, %v1974
      %v1976 = vrot.slane %v1658, %v1975
      %v1978 = vunpack.c.l.s4 839922192
      %v1979 = vunpack.c.0.s8 %v1978
      %v1980 = vlaneseq
      %v1981 = vshrl.u32 %v1980, 7
      %v1982 = vsub.s32 %v1979, %v1981
      %v1983 = vrot.slane %v1659, %v1982
      %v1985 = vunpack.c.l.s4 1985246804
      %v1986 = vunpack.c.0.s8 %v1985
      %v1987 = vlaneseq
      %v1988 = vshrl.u32 %v1987, 7
      %v1989 = vsub.s32 %v1986, %v1988
      %v1990 = vrot.slane %v1659, %v1989
      %v1992 = vunpack.c.l.s4 839922192
      %v1993 = vunpack.c.0.s8 %v1992
      %v1994 = vlaneseq
      %v1995 = vshrl.u32 %v1994, 7
      %v1996 = vsub.s32 %v1993, %v1995
      %v1997 = vrot.slane %v1660, %v1996
      %v1999 = vunpack.c.l.s4 1985246804
      %v2000 = vunpack.c.0.s8 %v1999
      %v2001 = vlaneseq
      %v2002 = vshrl.u32 %v2001, 7
      %v2003 = vsub.s32 %v2000, %v2002
      %v2004 = vrot.slane %v1660, %v2003
      %v2006 = vunpack.c.l.s4 839922192
      %v2007 = vunpack.c.0.s8 %v2006
      %v2008 = vlaneseq
      %v2009 = vshrl.u32 %v2008, 7
      %v2010 = vsub.s32 %v2007, %v2009
      %v2011 = vrot.slane %v1661, %v2010
      %v2013 = vunpack.c.l.s4 1985246804
      %v2014 = vunpack.c.0.s8 %v2013
      %v2015 = vlaneseq
      %v2016 = vshrl.u32 %v2015, 7
      %v2017 = vsub.s32 %v2014, %v2016
      %v2018 = vrot.slane %v1661, %v2017
      %v2020 = vunpack.c.l.s4 839922192
      %v2021 = vunpack.c.0.s8 %v2020
      %v2022 = vlaneseq
      %v2023 = vshrl.u32 %v2022, 7
      %v2024 = vsub.s32 %v2021, %v2023
      %v2025 = vrot.slane %v1662, %v2024
      %v2027 = vunpack.c.l.s4 1985246804
      %v2028 = vunpack.c.0.s8 %v2027
      %v2029 = vlaneseq
      %v2030 = vshrl.u32 %v2029, 7
      %v2031 = vsub.s32 %v2028, %v2030
      %v2032 = vrot.slane %v1662, %v2031
      %v2034 = vunpack.c.l.s4 839922192
      %v2035 = vunpack.c.0.s8 %v2034
      %v2036 = vlaneseq
      %v2037 = vshrl.u32 %v2036, 7
      %v2038 = vsub.s32 %v2035, %v2037
      %v2039 = vrot.slane %v1663, %v2038
      %v2041 = vunpack.c.l.s4 1985246804
      %v2042 = vunpack.c.0.s8 %v2041
      %v2043 = vlaneseq
      %v2044 = vshrl.u32 %v2043, 7
      %v2045 = vsub.s32 %v2042, %v2044
      %v2046 = vrot.slane %v1663, %v2045
      %v2048 = vunpack.c.l.s4 839922192
      %v2049 = vunpack.c.0.s8 %v2048
      %v2050 = vlaneseq
      %v2051 = vshrl.u32 %v2050, 7
      %v2052 = vsub.s32 %v2049, %v2051
      %v2053 = vrot.slane %v1664, %v2052
      %v2055 = vunpack.c.l.s4 1985246804
      %v2056 = vunpack.c.0.s8 %v2055
      %v2057 = vlaneseq
      %v2058 = vshrl.u32 %v2057, 7
      %v2059 = vsub.s32 %v2056, %v2058
      %v2060 = vrot.slane %v1664, %v2059
      %v2062 = vunpack.c.l.s4 839922192
      %v2063 = vunpack.c.0.s8 %v2062
      %v2064 = vlaneseq
      %v2065 = vshrl.u32 %v2064, 7
      %v2066 = vsub.s32 %v2063, %v2065
      %v2067 = vrot.slane %v1665, %v2066
      %v2069 = vunpack.c.l.s4 1985246804
      %v2070 = vunpack.c.0.s8 %v2069
      %v2071 = vlaneseq
      %v2072 = vshrl.u32 %v2071, 7
      %v2073 = vsub.s32 %v2070, %v2072
      %v2074 = vrot.slane %v1665, %v2073
      %v2076 = vunpack.c.l.s4 839922192
      %v2077 = vunpack.c.0.s8 %v2076
      %v2078 = vlaneseq
      %v2079 = vshrl.u32 %v2078, 7
      %v2080 = vsub.s32 %v2077, %v2079
      %v2081 = vrot.slane %v1666, %v2080
      %v2083 = vunpack.c.l.s4 1985246804
      %v2084 = vunpack.c.0.s8 %v2083
      %v2085 = vlaneseq
      %v2086 = vshrl.u32 %v2085, 7
      %v2087 = vsub.s32 %v2084, %v2086
      %v2088 = vrot.slane %v1666, %v2087
      %v2090 = vunpack.c.l.s4 839922192
      %v2091 = vunpack.c.0.s8 %v2090
      %v2092 = vlaneseq
      %v2093 = vshrl.u32 %v2092, 7
      %v2094 = vsub.s32 %v2091, %v2093
      %v2095 = vrot.slane %v1667, %v2094
      %v2097 = vunpack.c.l.s4 1985246804
      %v2098 = vunpack.c.0.s8 %v2097
      %v2099 = vlaneseq
      %v2100 = vshrl.u32 %v2099, 7
      %v2101 = vsub.s32 %v2098, %v2100
      %v2102 = vrot.slane %v1667, %v2101
      %v2104 = vunpack.c.l.s4 839922192
      %v2105 = vunpack.c.0.s8 %v2104
      %v2106 = vlaneseq
      %v2107 = vshrl.u32 %v2106, 7
      %v2108 = vsub.s32 %v2105, %v2107
      %v2109 = vrot.slane %v1668, %v2108
      %v2111 = vunpack.c.l.s4 1985246804
      %v2112 = vunpack.c.0.s8 %v2111
      %v2113 = vlaneseq
      %v2114 = vshrl.u32 %v2113, 7
      %v2115 = vsub.s32 %v2112, %v2114
      %v2116 = vrot.slane %v1668, %v2115
      %v2118 = vunpack.c.l.s4 839922192
      %v2119 = vunpack.c.0.s8 %v2118
      %v2120 = vlaneseq
      %v2121 = vshrl.u32 %v2120, 7
      %v2122 = vsub.s32 %v2119, %v2121
      %v2123 = vrot.slane %v1669, %v2122
      %v2125 = vunpack.c.l.s4 1985246804
      %v2126 = vunpack.c.0.s8 %v2125
      %v2127 = vlaneseq
      %v2128 = vshrl.u32 %v2127, 7
      %v2129 = vsub.s32 %v2126, %v2128
      %v2130 = vrot.slane %v1669, %v2129
      %v2132 = vunpack.c.l.s4 839922192
      %v2133 = vunpack.c.0.s8 %v2132
      %v2134 = vlaneseq
      %v2135 = vshrl.u32 %v2134, 7
      %v2136 = vsub.s32 %v2133, %v2135
      %v2137 = vrot.slane %v1670, %v2136
      %v2139 = vunpack.c.l.s4 1985246804
      %v2140 = vunpack.c.0.s8 %v2139
      %v2141 = vlaneseq
      %v2142 = vshrl.u32 %v2141, 7
      %v2143 = vsub.s32 %v2140, %v2142
      %v2144 = vrot.slane %v1670, %v2143
      %v2146 = vunpack.c.l.s4 839922192
      %v2147 = vunpack.c.0.s8 %v2146
      %v2148 = vlaneseq
      %v2149 = vshrl.u32 %v2148, 7
      %v2150 = vsub.s32 %v2147, %v2149
      %v2151 = vrot.slane %v1671, %v2150
      %v2153 = vunpack.c.l.s4 1985246804
      %v2154 = vunpack.c.0.s8 %v2153
      %v2155 = vlaneseq
      %v2156 = vshrl.u32 %v2155, 7
      %v2157 = vsub.s32 %v2154, %v2156
      %v2158 = vrot.slane %v1671, %v2157
      %v2159 = vcombine.low %v1717, %v1724
      %v2160 = vcombine.low %v1731, %v1738
      %v2161 = vcombine.low %v1745, %v1752
      %v2162 = vcombine.low %v1759, %v1766
      %v2163 = vcombine.low %v1773, %v1780
      %v2164 = vcombine.low %v1787, %v1794
      %v2165 = vcombine.low %v1801, %v1808
      %v2166 = vcombine.low %v1815, %v1822
      %v2167 = vcombine.low %v1829, %v1836
      %v2168 = vcombine.low %v1843, %v1850
      %v2169 = vcombine.low %v1857, %v1864
      %v2170 = vcombine.low %v1871, %v1878
      %v2171 = vcombine.low %v1885, %v1892
      %v2172 = vcombine.low %v1899, %v1906
      %v2173 = vcombine.low %v1913, %v1920
      %v2174 = vcombine.low %v1927, %v1934
      %v2175 = vcombine.low %v1941, %v1948
      %v2176 = vcombine.low %v1955, %v1962
      %v2177 = vcombine.low %v1969, %v1976
      %v2178 = vcombine.low %v1983, %v1990
      %v2179 = vcombine.low %v1997, %v2004
      %v2180 = vcombine.low %v2011, %v2018
      %v2181 = vcombine.low %v2025, %v2032
      %v2182 = vcombine.low %v2039, %v2046
      %v2183 = vcombine.low %v2053, %v2060
      %v2184 = vcombine.low %v2067, %v2074
      %v2185 = vcombine.low %v2081, %v2088
      %v2186 = vcombine.low %v2095, %v2102
      %v2187 = vcombine.low %v2109, %v2116
      %v2188 = vcombine.low %v2123, %v2130
      %v2189 = vcombine.low %v2137, %v2144
      %v2190 = vcombine.low %v2151, %v2158
      %2191 = vset.pattern.permute.xlu0 0
      %2192 = vperm.xlu0 %2191, %v2159
      %v2193 = vpop.permute.xlu0 %2192
      %2194 = vset.pattern.permute.xlu0 0
      %2195 = vperm.xlu0 %2194, %v2160
      %v2196 = vpop.permute.xlu0 %2195
      %2197 = vset.pattern.permute.xlu0 0
      %2198 = vperm.xlu0 %2197, %v2161
      %v2199 = vpop.permute.xlu0 %2198
      %2200 = vset.pattern.permute.xlu0 0
      %2201 = vperm.xlu0 %2200, %v2162
      %v2202 = vpop.permute.xlu0 %2201
      %2203 = vset.pattern.permute.xlu0 0
      %2204 = vperm.xlu0 %2203, %v2163
      %v2205 = vpop.permute.xlu0 %2204
      %2206 = vset.pattern.permute.xlu0 0
      %2207 = vperm.xlu0 %2206, %v2164
      %v2208 = vpop.permute.xlu0 %2207
      %2209 = vset.pattern.permute.xlu0 0
      %2210 = vperm.xlu0 %2209, %v2165
      %v2211 = vpop.permute.xlu0 %2210
      %2212 = vset.pattern.permute.xlu0 0
      %2213 = vperm.xlu0 %2212, %v2166
      %v2214 = vpop.permute.xlu0 %2213
      %2215 = vset.pattern.permute.xlu0 0
      %2216 = vperm.xlu0 %2215, %v2167
      %v2217 = vpop.permute.xlu0 %2216
      %2218 = vset.pattern.permute.xlu0 0
      %2219 = vperm.xlu0 %2218, %v2168
      %v2220 = vpop.permute.xlu0 %2219
      %2221 = vset.pattern.permute.xlu0 0
      %2222 = vperm.xlu0 %2221, %v2169
      %v2223 = vpop.permute.xlu0 %2222
      %2224 = vset.pattern.permute.xlu0 0
      %2225 = vperm.xlu0 %2224, %v2170
      %v2226 = vpop.permute.xlu0 %2225
      %2227 = vset.pattern.permute.xlu0 0
      %2228 = vperm.xlu0 %2227, %v2171
      %v2229 = vpop.permute.xlu0 %2228
      %2230 = vset.pattern.permute.xlu0 0
      %2231 = vperm.xlu0 %2230, %v2172
      %v2232 = vpop.permute.xlu0 %2231
      %2233 = vset.pattern.permute.xlu0 0
      %2234 = vperm.xlu0 %2233, %v2173
      %v2235 = vpop.permute.xlu0 %2234
      %2236 = vset.pattern.permute.xlu0 0
      %2237 = vperm.xlu0 %2236, %v2174
      %v2238 = vpop.permute.xlu0 %2237
      %2239 = vset.pattern.permute.xlu0 0
      %2240 = vperm.xlu0 %2239, %v2175
      %v2241 = vpop.permute.xlu0 %2240
      %2242 = vset.pattern.permute.xlu0 0
      %2243 = vperm.xlu0 %2242, %v2176
      %v2244 = vpop.permute.xlu0 %2243
      %2245 = vset.pattern.permute.xlu0 0
      %2246 = vperm.xlu0 %2245, %v2177
      %v2247 = vpop.permute.xlu0 %2246
      %2248 = vset.pattern.permute.xlu0 0
      %2249 = vperm.xlu0 %2248, %v2178
      %v2250 = vpop.permute.xlu0 %2249
      %2251 = vset.pattern.permute.xlu0 0
      %2252 = vperm.xlu0 %2251, %v2179
      %v2253 = vpop.permute.xlu0 %2252
      %2254 = vset.pattern.permute.xlu0 0
      %2255 = vperm.xlu0 %2254, %v2180
      %v2256 = vpop.permute.xlu0 %2255
      %2257 = vset.pattern.permute.xlu0 0
      %2258 = vperm.xlu0 %2257, %v2181
      %v2259 = vpop.permute.xlu0 %2258
      %2260 = vset.pattern.permute.xlu0 0
      %2261 = vperm.xlu0 %2260, %v2182
      %v2262 = vpop.permute.xlu0 %2261
      %2263 = vset.pattern.permute.xlu0 0
      %2264 = vperm.xlu0 %2263, %v2183
      %v2265 = vpop.permute.xlu0 %2264
      %2266 = vset.pattern.permute.xlu0 0
      %2267 = vperm.xlu0 %2266, %v2184
      %v2268 = vpop.permute.xlu0 %2267
      %2269 = vset.pattern.permute.xlu0 0
      %2270 = vperm.xlu0 %2269, %v2185
      %v2271 = vpop.permute.xlu0 %2270
      %2272 = vset.pattern.permute.xlu0 0
      %2273 = vperm.xlu0 %2272, %v2186
      %v2274 = vpop.permute.xlu0 %2273
      %2275 = vset.pattern.permute.xlu0 0
      %2276 = vperm.xlu0 %2275, %v2187
      %v2277 = vpop.permute.xlu0 %2276
      %2278 = vset.pattern.permute.xlu0 0
      %2279 = vperm.xlu0 %2278, %v2188
      %v2280 = vpop.permute.xlu0 %2279
      %2281 = vset.pattern.permute.xlu0 0
      %2282 = vperm.xlu0 %2281, %v2189
      %v2283 = vpop.permute.xlu0 %2282
      %2284 = vset.pattern.permute.xlu0 0
      %2285 = vperm.xlu0 %2284, %v2190
      %v2286 = vpop.permute.xlu0 %2285
      %2287 = vset.pattern.permute.xlu0 0
      %2288 = vperm.xlu0 %2287, %v2159
      %v2289 = vpop.permute.xlu0 %2288
      %2290 = vset.pattern.permute.xlu0 0
      %2291 = vperm.xlu0 %2290, %v2160
      %v2292 = vpop.permute.xlu0 %2291
      %2293 = vset.pattern.permute.xlu0 0
      %2294 = vperm.xlu0 %2293, %v2161
      %v2295 = vpop.permute.xlu0 %2294
      %2296 = vset.pattern.permute.xlu0 0
      %2297 = vperm.xlu0 %2296, %v2162
      %v2298 = vpop.permute.xlu0 %2297
      %2299 = vset.pattern.permute.xlu0 0
      %2300 = vperm.xlu0 %2299, %v2163
      %v2301 = vpop.permute.xlu0 %2300
      %2302 = vset.pattern.permute.xlu0 0
      %2303 = vperm.xlu0 %2302, %v2164
      %v2304 = vpop.permute.xlu0 %2303
      %2305 = vset.pattern.permute.xlu0 0
      %2306 = vperm.xlu0 %2305, %v2165
      %v2307 = vpop.permute.xlu0 %2306
      %2308 = vset.pattern.permute.xlu0 0
      %2309 = vperm.xlu0 %2308, %v2166
      %v2310 = vpop.permute.xlu0 %2309
      %2311 = vset.pattern.permute.xlu0 0
      %2312 = vperm.xlu0 %2311, %v2167
      %v2313 = vpop.permute.xlu0 %2312
      %2314 = vset.pattern.permute.xlu0 0
      %2315 = vperm.xlu0 %2314, %v2168
      %v2316 = vpop.permute.xlu0 %2315
      %2317 = vset.pattern.permute.xlu0 0
      %2318 = vperm.xlu0 %2317, %v2169
      %v2319 = vpop.permute.xlu0 %2318
      %2320 = vset.pattern.permute.xlu0 0
      %2321 = vperm.xlu0 %2320, %v2170
      %v2322 = vpop.permute.xlu0 %2321
      %2323 = vset.pattern.permute.xlu0 0
      %2324 = vperm.xlu0 %2323, %v2171
      %v2325 = vpop.permute.xlu0 %2324
      %2326 = vset.pattern.permute.xlu0 0
      %2327 = vperm.xlu0 %2326, %v2172
      %v2328 = vpop.permute.xlu0 %2327
      %2329 = vset.pattern.permute.xlu0 0
      %2330 = vperm.xlu0 %2329, %v2173
      %v2331 = vpop.permute.xlu0 %2330
      %2332 = vset.pattern.permute.xlu0 0
      %2333 = vperm.xlu0 %2332, %v2174
      %v2334 = vpop.permute.xlu0 %2333
      %2335 = vset.pattern.permute.xlu0 0
      %2336 = vperm.xlu0 %2335, %v2175
      %v2337 = vpop.permute.xlu0 %2336
      %2338 = vset.pattern.permute.xlu0 0
      %2339 = vperm.xlu0 %2338, %v2176
      %v2340 = vpop.permute.xlu0 %2339
      %2341 = vset.pattern.permute.xlu0 0
      %2342 = vperm.xlu0 %2341, %v2177
      %v2343 = vpop.permute.xlu0 %2342
      %2344 = vset.pattern.permute.xlu0 0
      %2345 = vperm.xlu0 %2344, %v2178
      %v2346 = vpop.permute.xlu0 %2345
      %2347 = vset.pattern.permute.xlu0 0
      %2348 = vperm.xlu0 %2347, %v2179
      %v2349 = vpop.permute.xlu0 %2348
      %2350 = vset.pattern.permute.xlu0 0
      %2351 = vperm.xlu0 %2350, %v2180
      %v2352 = vpop.permute.xlu0 %2351
      %2353 = vset.pattern.permute.xlu0 0
      %2354 = vperm.xlu0 %2353, %v2181
      %v2355 = vpop.permute.xlu0 %2354
      %2356 = vset.pattern.permute.xlu0 0
      %2357 = vperm.xlu0 %2356, %v2182
      %v2358 = vpop.permute.xlu0 %2357
      %2359 = vset.pattern.permute.xlu0 0
      %2360 = vperm.xlu0 %2359, %v2183
      %v2361 = vpop.permute.xlu0 %2360
      %2362 = vset.pattern.permute.xlu0 0
      %2363 = vperm.xlu0 %2362, %v2184
      %v2364 = vpop.permute.xlu0 %2363
      %2365 = vset.pattern.permute.xlu0 0
      %2366 = vperm.xlu0 %2365, %v2185
      %v2367 = vpop.permute.xlu0 %2366
      %2368 = vset.pattern.permute.xlu0 0
      %2369 = vperm.xlu0 %2368, %v2186
      %v2370 = vpop.permute.xlu0 %2369
      %2371 = vset.pattern.permute.xlu0 0
      %2372 = vperm.xlu0 %2371, %v2187
      %v2373 = vpop.permute.xlu0 %2372
      %2374 = vset.pattern.permute.xlu0 0
      %2375 = vperm.xlu0 %2374, %v2188
      %v2376 = vpop.permute.xlu0 %2375
      %2377 = vset.pattern.permute.xlu0 0
      %2378 = vperm.xlu0 %2377, %v2189
      %v2379 = vpop.permute.xlu0 %2378
      %2380 = vset.pattern.permute.xlu0 0
      %2381 = vperm.xlu0 %2380, %v2190
      %v2382 = vpop.permute.xlu0 %2381
      %2383 = vset.pattern.permute.xlu0 0
      %2384 = vperm.xlu0 %2383, %v2159
      %v2385 = vpop.permute.xlu0 %2384
      %2386 = vset.pattern.permute.xlu0 0
      %2387 = vperm.xlu0 %2386, %v2160
      %v2388 = vpop.permute.xlu0 %2387
      %2389 = vset.pattern.permute.xlu0 0
      %2390 = vperm.xlu0 %2389, %v2161
      %v2391 = vpop.permute.xlu0 %2390
      %2392 = vset.pattern.permute.xlu0 0
      %2393 = vperm.xlu0 %2392, %v2162
      %v2394 = vpop.permute.xlu0 %2393
      %2395 = vset.pattern.permute.xlu0 0
      %2396 = vperm.xlu0 %2395, %v2163
      %v2397 = vpop.permute.xlu0 %2396
      %2398 = vset.pattern.permute.xlu0 0
      %2399 = vperm.xlu0 %2398, %v2164
      %v2400 = vpop.permute.xlu0 %2399
      %2401 = vset.pattern.permute.xlu0 0
      %2402 = vperm.xlu0 %2401, %v2165
      %v2403 = vpop.permute.xlu0 %2402
      %2404 = vset.pattern.permute.xlu0 0
      %2405 = vperm.xlu0 %2404, %v2166
      %v2406 = vpop.permute.xlu0 %2405
      %2407 = vset.pattern.permute.xlu0 0
      %2408 = vperm.xlu0 %2407, %v2167
      %v2409 = vpop.permute.xlu0 %2408
      %2410 = vset.pattern.permute.xlu0 0
      %2411 = vperm.xlu0 %2410, %v2168
      %v2412 = vpop.permute.xlu0 %2411
      %2413 = vset.pattern.permute.xlu0 0
      %2414 = vperm.xlu0 %2413, %v2169
      %v2415 = vpop.permute.xlu0 %2414
      %2416 = vset.pattern.permute.xlu0 0
      %2417 = vperm.xlu0 %2416, %v2170
      %v2418 = vpop.permute.xlu0 %2417
      %2419 = vset.pattern.permute.xlu0 0
      %2420 = vperm.xlu0 %2419, %v2171
      %v2421 = vpop.permute.xlu0 %2420
      %2422 = vset.pattern.permute.xlu0 0
      %2423 = vperm.xlu0 %2422, %v2172
      %v2424 = vpop.permute.xlu0 %2423
      %2425 = vset.pattern.permute.xlu0 0
      %2426 = vperm.xlu0 %2425, %v2173
      %v2427 = vpop.permute.xlu0 %2426
      %2428 = vset.pattern.permute.xlu0 0
      %2429 = vperm.xlu0 %2428, %v2174
      %v2430 = vpop.permute.xlu0 %2429
      %2431 = vset.pattern.permute.xlu0 0
      %2432 = vperm.xlu0 %2431, %v2175
      %v2433 = vpop.permute.xlu0 %2432
      %2434 = vset.pattern.permute.xlu0 0
      %2435 = vperm.xlu0 %2434, %v2176
      %v2436 = vpop.permute.xlu0 %2435
      %2437 = vset.pattern.permute.xlu0 0
      %2438 = vperm.xlu0 %2437, %v2177
      %v2439 = vpop.permute.xlu0 %2438
      %2440 = vset.pattern.permute.xlu0 0
      %2441 = vperm.xlu0 %2440, %v2178
      %v2442 = vpop.permute.xlu0 %2441
      %2443 = vset.pattern.permute.xlu0 0
      %2444 = vperm.xlu0 %2443, %v2179
      %v2445 = vpop.permute.xlu0 %2444
      %2446 = vset.pattern.permute.xlu0 0
      %2447 = vperm.xlu0 %2446, %v2180
      %v2448 = vpop.permute.xlu0 %2447
      %2449 = vset.pattern.permute.xlu0 0
      %2450 = vperm.xlu0 %2449, %v2181
      %v2451 = vpop.permute.xlu0 %2450
      %2452 = vset.pattern.permute.xlu0 0
      %2453 = vperm.xlu0 %2452, %v2182
      %v2454 = vpop.permute.xlu0 %2453
      %2455 = vset.pattern.permute.xlu0 0
      %2456 = vperm.xlu0 %2455, %v2183
      %v2457 = vpop.permute.xlu0 %2456
      %2458 = vset.pattern.permute.xlu0 0
      %2459 = vperm.xlu0 %2458, %v2184
      %v2460 = vpop.permute.xlu0 %2459
      %2461 = vset.pattern.permute.xlu0 0
      %2462 = vperm.xlu0 %2461, %v2185
      %v2463 = vpop.permute.xlu0 %2462
      %2464 = vset.pattern.permute.xlu0 0
      %2465 = vperm.xlu0 %2464, %v2186
      %v2466 = vpop.permute.xlu0 %2465
      %2467 = vset.pattern.permute.xlu0 0
      %2468 = vperm.xlu0 %2467, %v2187
      %v2469 = vpop.permute.xlu0 %2468
      %2470 = vset.pattern.permute.xlu0 0
      %2471 = vperm.xlu0 %2470, %v2188
      %v2472 = vpop.permute.xlu0 %2471
      %2473 = vset.pattern.permute.xlu0 0
      %2474 = vperm.xlu0 %2473, %v2189
      %v2475 = vpop.permute.xlu0 %2474
      %2476 = vset.pattern.permute.xlu0 0
      %2477 = vperm.xlu0 %2476, %v2190
      %v2478 = vpop.permute.xlu0 %2477
      %2479 = vset.pattern.permute.xlu0 0
      %2480 = vperm.xlu0 %2479, %v2159
      %v2481 = vpop.permute.xlu0 %2480
      %2482 = vset.pattern.permute.xlu0 0
      %2483 = vperm.xlu0 %2482, %v2160
      %v2484 = vpop.permute.xlu0 %2483
      %2485 = vset.pattern.permute.xlu0 0
      %2486 = vperm.xlu0 %2485, %v2161
      %v2487 = vpop.permute.xlu0 %2486
      %2488 = vset.pattern.permute.xlu0 0
      %2489 = vperm.xlu0 %2488, %v2162
      %v2490 = vpop.permute.xlu0 %2489
      %2491 = vset.pattern.permute.xlu0 0
      %2492 = vperm.xlu0 %2491, %v2163
      %v2493 = vpop.permute.xlu0 %2492
      %2494 = vset.pattern.permute.xlu0 0
      %2495 = vperm.xlu0 %2494, %v2164
      %v2496 = vpop.permute.xlu0 %2495
      %2497 = vset.pattern.permute.xlu0 0
      %2498 = vperm.xlu0 %2497, %v2165
      %v2499 = vpop.permute.xlu0 %2498
      %2500 = vset.pattern.permute.xlu0 0
      %2501 = vperm.xlu0 %2500, %v2166
      %v2502 = vpop.permute.xlu0 %2501
      %2503 = vset.pattern.permute.xlu0 0
      %2504 = vperm.xlu0 %2503, %v2167
      %v2505 = vpop.permute.xlu0 %2504
      %2506 = vset.pattern.permute.xlu0 0
      %2507 = vperm.xlu0 %2506, %v2168
      %v2508 = vpop.permute.xlu0 %2507
      %2509 = vset.pattern.permute.xlu0 0
      %2510 = vperm.xlu0 %2509, %v2169
      %v2511 = vpop.permute.xlu0 %2510
      %2512 = vset.pattern.permute.xlu0 0
      %2513 = vperm.xlu0 %2512, %v2170
      %v2514 = vpop.permute.xlu0 %2513
      %2515 = vset.pattern.permute.xlu0 0
      %2516 = vperm.xlu0 %2515, %v2171
      %v2517 = vpop.permute.xlu0 %2516
      %2518 = vset.pattern.permute.xlu0 0
      %2519 = vperm.xlu0 %2518, %v2172
      %v2520 = vpop.permute.xlu0 %2519
      %2521 = vset.pattern.permute.xlu0 0
      %2522 = vperm.xlu0 %2521, %v2173
      %v2523 = vpop.permute.xlu0 %2522
      %2524 = vset.pattern.permute.xlu0 0
      %2525 = vperm.xlu0 %2524, %v2174
      %v2526 = vpop.permute.xlu0 %2525
      %2527 = vset.pattern.permute.xlu0 0
      %2528 = vperm.xlu0 %2527, %v2175
      %v2529 = vpop.permute.xlu0 %2528
      %2530 = vset.pattern.permute.xlu0 0
      %2531 = vperm.xlu0 %2530, %v2176
      %v2532 = vpop.permute.xlu0 %2531
      %2533 = vset.pattern.permute.xlu0 0
      %2534 = vperm.xlu0 %2533, %v2177
      %v2535 = vpop.permute.xlu0 %2534
      %2536 = vset.pattern.permute.xlu0 0
      %2537 = vperm.xlu0 %2536, %v2178
      %v2538 = vpop.permute.xlu0 %2537
      %2539 = vset.pattern.permute.xlu0 0
      %2540 = vperm.xlu0 %2539, %v2179
      %v2541 = vpop.permute.xlu0 %2540
      %2542 = vset.pattern.permute.xlu0 0
      %2543 = vperm.xlu0 %2542, %v2180
      %v2544 = vpop.permute.xlu0 %2543
      %2545 = vset.pattern.permute.xlu0 0
      %2546 = vperm.xlu0 %2545, %v2181
      %v2547 = vpop.permute.xlu0 %2546
      %2548 = vset.pattern.permute.xlu0 0
      %2549 = vperm.xlu0 %2548, %v2182
      %v2550 = vpop.permute.xlu0 %2549
      %2551 = vset.pattern.permute.xlu0 0
      %2552 = vperm.xlu0 %2551, %v2183
      %v2553 = vpop.permute.xlu0 %2552
      %2554 = vset.pattern.permute.xlu0 0
      %2555 = vperm.xlu0 %2554, %v2184
      %v2556 = vpop.permute.xlu0 %2555
      %2557 = vset.pattern.permute.xlu0 0
      %2558 = vperm.xlu0 %2557, %v2185
      %v2559 = vpop.permute.xlu0 %2558
      %2560 = vset.pattern.permute.xlu0 0
      %2561 = vperm.xlu0 %2560, %v2186
      %v2562 = vpop.permute.xlu0 %2561
      %2563 = vset.pattern.permute.xlu0 0
      %2564 = vperm.xlu0 %2563, %v2187
      %v2565 = vpop.permute.xlu0 %2564
      %2566 = vset.pattern.permute.xlu0 0
      %2567 = vperm.xlu0 %2566, %v2188
      %v2568 = vpop.permute.xlu0 %2567
      %2569 = vset.pattern.permute.xlu0 0
      %2570 = vperm.xlu0 %2569, %v2189
      %v2571 = vpop.permute.xlu0 %2570
      %2572 = vset.pattern.permute.xlu0 0
      %2573 = vperm.xlu0 %2572, %v2190
      %v2574 = vpop.permute.xlu0 %2573
      %v2575 = vlaneseq
      %v2576 = vand.u32 %v2575, 127
      %v2577 = vlaneseq
      %v2578 = vshrl.u32 %v2577, 7
      %v2579 = vsub.s32 %v2576, %v2578
      %v2580 = vrot.slane %v2193, %v2579
      %v2581 = vadd.s32 %v2576, 4294967288
      %v2582 = vlaneseq
      %v2583 = vshrl.u32 %v2582, 7
      %v2584 = vsub.s32 %v2581, %v2583
      %v2585 = vrot.slane %v2196, %v2584
      %vm2586 = vcmask 130112
      %v2587 = vsel %vm2586, %v2585, %v2580
      %v2588 = vadd.s32 %v2576, 4294967280
      %v2589 = vlaneseq
      %v2590 = vshrl.u32 %v2589, 7
      %v2591 = vsub.s32 %v2588, %v2590
      %v2592 = vrot.slane %v2199, %v2591
      %vm2593 = vcmask 195712
      %v2594 = vsel %vm2593, %v2592, %v2587
      %v2595 = vadd.s32 %v2576, 4294967272
      %v2596 = vlaneseq
      %v2597 = vshrl.u32 %v2596, 7
      %v2598 = vsub.s32 %v2595, %v2597
      %v2599 = vrot.slane %v2202, %v2598
      %vm2600 = vcmask 261312
      %v2601 = vsel %vm2600, %v2599, %v2594
      %v2602 = vadd.s32 %v2576, 4294967264
      %v2603 = vlaneseq
      %v2604 = vshrl.u32 %v2603, 7
      %v2605 = vsub.s32 %v2602, %v2604
      %v2606 = vrot.slane %v2205, %v2605
      %vm2607 = vcmask 326912
      %v2608 = vsel %vm2607, %v2606, %v2601
      %v2609 = vadd.s32 %v2576, 4294967256
      %v2610 = vlaneseq
      %v2611 = vshrl.u32 %v2610, 7
      %v2612 = vsub.s32 %v2609, %v2611
      %v2613 = vrot.slane %v2208, %v2612
      %vm2614 = vcmask 392512
      %v2615 = vsel %vm2614, %v2613, %v2608
      %v2616 = vadd.s32 %v2576, 4294967248
      %v2617 = vlaneseq
      %v2618 = vshrl.u32 %v2617, 7
      %v2619 = vsub.s32 %v2616, %v2618
      %v2620 = vrot.slane %v2211, %v2619
      %vm2621 = vcmask 458112
      %v2622 = vsel %vm2621, %v2620, %v2615
      %v2623 = vadd.s32 %v2576, 4294967240
      %v2624 = vlaneseq
      %v2625 = vshrl.u32 %v2624, 7
      %v2626 = vsub.s32 %v2623, %v2625
      %v2627 = vrot.slane %v2214, %v2626
      %vm2628 = vcmask 523712
      %v2629 = vsel %vm2628, %v2627, %v2622
      %v2630 = vadd.s32 %v2576, 4294967232
      %v2631 = vlaneseq
      %v2632 = vshrl.u32 %v2631, 7
      %v2633 = vsub.s32 %v2630, %v2632
      %v2634 = vrot.slane %v2217, %v2633
      %vm2635 = vcmask 589312
      %v2636 = vsel %vm2635, %v2634, %v2629
      %v2637 = vadd.s32 %v2576, 4294967224
      %v2638 = vlaneseq
      %v2639 = vshrl.u32 %v2638, 7
      %v2640 = vsub.s32 %v2637, %v2639
      %v2641 = vrot.slane %v2220, %v2640
      %vm2642 = vcmask 654912
      %v2643 = vsel %vm2642, %v2641, %v2636
      %v2644 = vadd.s32 %v2576, 4294967216
      %v2645 = vlaneseq
      %v2646 = vshrl.u32 %v2645, 7
      %v2647 = vsub.s32 %v2644, %v2646
      %v2648 = vrot.slane %v2223, %v2647
      %vm2649 = vcmask 720512
      %v2650 = vsel %vm2649, %v2648, %v2643
      %v2651 = vadd.s32 %v2576, 4294967208
      %v2652 = vlaneseq
      %v2653 = vshrl.u32 %v2652, 7
      %v2654 = vsub.s32 %v2651, %v2653
      %v2655 = vrot.slane %v2226, %v2654
      %vm2656 = vcmask 786112
      %v2657 = vsel %vm2656, %v2655, %v2650
      %v2658 = vadd.s32 %v2576, 4294967200
      %v2659 = vlaneseq
      %v2660 = vshrl.u32 %v2659, 7
      %v2661 = vsub.s32 %v2658, %v2660
      %v2662 = vrot.slane %v2229, %v2661
      %vm2663 = vcmask 851712
      %v2664 = vsel %vm2663, %v2662, %v2657
      %v2665 = vadd.s32 %v2576, 4294967192
      %v2666 = vlaneseq
      %v2667 = vshrl.u32 %v2666, 7
      %v2668 = vsub.s32 %v2665, %v2667
      %v2669 = vrot.slane %v2232, %v2668
      %vm2670 = vcmask 917312
      %v2671 = vsel %vm2670, %v2669, %v2664
      %v2672 = vadd.s32 %v2576, 4294967184
      %v2673 = vlaneseq
      %v2674 = vshrl.u32 %v2673, 7
      %v2675 = vsub.s32 %v2672, %v2674
      %v2676 = vrot.slane %v2235, %v2675
      %vm2677 = vcmask 982912
      %v2678 = vsel %vm2677, %v2676, %v2671
      %v2679 = vadd.s32 %v2576, 4294967176
      %v2680 = vlaneseq
      %v2681 = vshrl.u32 %v2680, 7
      %v2682 = vsub.s32 %v2679, %v2681
      %v2683 = vrot.slane %v2238, %v2682
      %vm2684 = vcmask 1048512
      %v2685 = vsel %vm2684, %v2683, %v2678
      %v2686 = vlaneseq
      %v2687 = vshrl.u32 %v2686, 7
      %v2688 = vsub.s32 %v2576, %v2687
      %v2689 = vrot.slane %v2241, %v2688
      %v2690 = vlaneseq
      %v2691 = vshrl.u32 %v2690, 7
      %v2692 = vsub.s32 %v2581, %v2691
      %v2693 = vrot.slane %v2244, %v2692
      %v2694 = vsel %vm2586, %v2693, %v2689
      %v2695 = vlaneseq
      %v2696 = vshrl.u32 %v2695, 7
      %v2697 = vsub.s32 %v2588, %v2696
      %v2698 = vrot.slane %v2247, %v2697
      %v2699 = vsel %vm2593, %v2698, %v2694
      %v2700 = vlaneseq
      %v2701 = vshrl.u32 %v2700, 7
      %v2702 = vsub.s32 %v2595, %v2701
      %v2703 = vrot.slane %v2250, %v2702
      %v2704 = vsel %vm2600, %v2703, %v2699
      %v2705 = vlaneseq
      %v2706 = vshrl.u32 %v2705, 7
      %v2707 = vsub.s32 %v2602, %v2706
      %v2708 = vrot.slane %v2253, %v2707
      %v2709 = vsel %vm2607, %v2708, %v2704
      %v2710 = vlaneseq
      %v2711 = vshrl.u32 %v2710, 7
      %v2712 = vsub.s32 %v2609, %v2711
      %v2713 = vrot.slane %v2256, %v2712
      %v2714 = vsel %vm2614, %v2713, %v2709
      %v2715 = vlaneseq
      %v2716 = vshrl.u32 %v2715, 7
      %v2717 = vsub.s32 %v2616, %v2716
      %v2718 = vrot.slane %v2259, %v2717
      %v2719 = vsel %vm2621, %v2718, %v2714
      %v2720 = vlaneseq
      %v2721 = vshrl.u32 %v2720, 7
      %v2722 = vsub.s32 %v2623, %v2721
      %v2723 = vrot.slane %v2262, %v2722
      %v2724 = vsel %vm2628, %v2723, %v2719
      %v2725 = vlaneseq
      %v2726 = vshrl.u32 %v2725, 7
      %v2727 = vsub.s32 %v2630, %v2726
      %v2728 = vrot.slane %v2265, %v2727
      %v2729 = vsel %vm2635, %v2728, %v2724
      %v2730 = vlaneseq
      %v2731 = vshrl.u32 %v2730, 7
      %v2732 = vsub.s32 %v2637, %v2731
      %v2733 = vrot.slane %v2268, %v2732
      %v2734 = vsel %vm2642, %v2733, %v2729
      %v2735 = vlaneseq
      %v2736 = vshrl.u32 %v2735, 7
      %v2737 = vsub.s32 %v2644, %v2736
      %v2738 = vrot.slane %v2271, %v2737
      %v2739 = vsel %vm2649, %v2738, %v2734
      %v2740 = vlaneseq
      %v2741 = vshrl.u32 %v2740, 7
      %v2742 = vsub.s32 %v2651, %v2741
      %v2743 = vrot.slane %v2274, %v2742
      %v2744 = vsel %vm2656, %v2743, %v2739
      %v2745 = vlaneseq
      %v2746 = vshrl.u32 %v2745, 7
      %v2747 = vsub.s32 %v2658, %v2746
      %v2748 = vrot.slane %v2277, %v2747
      %v2749 = vsel %vm2663, %v2748, %v2744
      %v2750 = vlaneseq
      %v2751 = vshrl.u32 %v2750, 7
      %v2752 = vsub.s32 %v2665, %v2751
      %v2753 = vrot.slane %v2280, %v2752
      %v2754 = vsel %vm2670, %v2753, %v2749
      %v2755 = vlaneseq
      %v2756 = vshrl.u32 %v2755, 7
      %v2757 = vsub.s32 %v2672, %v2756
      %v2758 = vrot.slane %v2283, %v2757
      %v2759 = vsel %vm2677, %v2758, %v2754
      %v2760 = vlaneseq
      %v2761 = vshrl.u32 %v2760, 7
      %v2762 = vsub.s32 %v2679, %v2761
      %v2763 = vrot.slane %v2286, %v2762
      %v2764 = vsel %vm2684, %v2763, %v2759
      %v2765 = vlaneseq
      %v2766 = vshrl.u32 %v2765, 7
      %v2767 = vsub.s32 %v2576, %v2766
      %v2768 = vrot.slane %v2289, %v2767
      %v2769 = vlaneseq
      %v2770 = vshrl.u32 %v2769, 7
      %v2771 = vsub.s32 %v2581, %v2770
      %v2772 = vrot.slane %v2292, %v2771
      %v2773 = vsel %vm2586, %v2772, %v2768
      %v2774 = vlaneseq
      %v2775 = vshrl.u32 %v2774, 7
      %v2776 = vsub.s32 %v2588, %v2775
      %v2777 = vrot.slane %v2295, %v2776
      %v2778 = vsel %vm2593, %v2777, %v2773
      %v2779 = vlaneseq
      %v2780 = vshrl.u32 %v2779, 7
      %v2781 = vsub.s32 %v2595, %v2780
      %v2782 = vrot.slane %v2298, %v2781
      %v2783 = vsel %vm2600, %v2782, %v2778
      %v2784 = vlaneseq
      %v2785 = vshrl.u32 %v2784, 7
      %v2786 = vsub.s32 %v2602, %v2785
      %v2787 = vrot.slane %v2301, %v2786
      %v2788 = vsel %vm2607, %v2787, %v2783
      %v2789 = vlaneseq
      %v2790 = vshrl.u32 %v2789, 7
      %v2791 = vsub.s32 %v2609, %v2790
      %v2792 = vrot.slane %v2304, %v2791
      %v2793 = vsel %vm2614, %v2792, %v2788
      %v2794 = vlaneseq
      %v2795 = vshrl.u32 %v2794, 7
      %v2796 = vsub.s32 %v2616, %v2795
      %v2797 = vrot.slane %v2307, %v2796
      %v2798 = vsel %vm2621, %v2797, %v2793
      %v2799 = vlaneseq
      %v2800 = vshrl.u32 %v2799, 7
      %v2801 = vsub.s32 %v2623, %v2800
      %v2802 = vrot.slane %v2310, %v2801
      %v2803 = vsel %vm2628, %v2802, %v2798
      %v2804 = vlaneseq
      %v2805 = vshrl.u32 %v2804, 7
      %v2806 = vsub.s32 %v2630, %v2805
      %v2807 = vrot.slane %v2313, %v2806
      %v2808 = vsel %vm2635, %v2807, %v2803
      %v2809 = vlaneseq
      %v2810 = vshrl.u32 %v2809, 7
      %v2811 = vsub.s32 %v2637, %v2810
      %v2812 = vrot.slane %v2316, %v2811
      %v2813 = vsel %vm2642, %v2812, %v2808
      %v2814 = vlaneseq
      %v2815 = vshrl.u32 %v2814, 7
      %v2816 = vsub.s32 %v2644, %v2815
      %v2817 = vrot.slane %v2319, %v2816
      %v2818 = vsel %vm2649, %v2817, %v2813
      %v2819 = vlaneseq
      %v2820 = vshrl.u32 %v2819, 7
      %v2821 = vsub.s32 %v2651, %v2820
      %v2822 = vrot.slane %v2322, %v2821
      %v2823 = vsel %vm2656, %v2822, %v2818
      %v2824 = vlaneseq
      %v2825 = vshrl.u32 %v2824, 7
      %v2826 = vsub.s32 %v2658, %v2825
      %v2827 = vrot.slane %v2325, %v2826
      %v2828 = vsel %vm2663, %v2827, %v2823
      %v2829 = vlaneseq
      %v2830 = vshrl.u32 %v2829, 7
      %v2831 = vsub.s32 %v2665, %v2830
      %v2832 = vrot.slane %v2328, %v2831
      %v2833 = vsel %vm2670, %v2832, %v2828
      %v2834 = vlaneseq
      %v2835 = vshrl.u32 %v2834, 7
      %v2836 = vsub.s32 %v2672, %v2835
      %v2837 = vrot.slane %v2331, %v2836
      %v2838 = vsel %vm2677, %v2837, %v2833
      %v2839 = vlaneseq
      %v2840 = vshrl.u32 %v2839, 7
      %v2841 = vsub.s32 %v2679, %v2840
      %v2842 = vrot.slane %v2334, %v2841
      %v2843 = vsel %vm2684, %v2842, %v2838
      %v2844 = vlaneseq
      %v2845 = vshrl.u32 %v2844, 7
      %v2846 = vsub.s32 %v2576, %v2845
      %v2847 = vrot.slane %v2337, %v2846
      %v2848 = vlaneseq
      %v2849 = vshrl.u32 %v2848, 7
      %v2850 = vsub.s32 %v2581, %v2849
      %v2851 = vrot.slane %v2340, %v2850
      %v2852 = vsel %vm2586, %v2851, %v2847
      %v2853 = vlaneseq
      %v2854 = vshrl.u32 %v2853, 7
      %v2855 = vsub.s32 %v2588, %v2854
      %v2856 = vrot.slane %v2343, %v2855
      %v2857 = vsel %vm2593, %v2856, %v2852
      %v2858 = vlaneseq
      %v2859 = vshrl.u32 %v2858, 7
      %v2860 = vsub.s32 %v2595, %v2859
      %v2861 = vrot.slane %v2346, %v2860
      %v2862 = vsel %vm2600, %v2861, %v2857
      %v2863 = vlaneseq
      %v2864 = vshrl.u32 %v2863, 7
      %v2865 = vsub.s32 %v2602, %v2864
      %v2866 = vrot.slane %v2349, %v2865
      %v2867 = vsel %vm2607, %v2866, %v2862
      %v2868 = vlaneseq
      %v2869 = vshrl.u32 %v2868, 7
      %v2870 = vsub.s32 %v2609, %v2869
      %v2871 = vrot.slane %v2352, %v2870
      %v2872 = vsel %vm2614, %v2871, %v2867
      %v2873 = vlaneseq
      %v2874 = vshrl.u32 %v2873, 7
      %v2875 = vsub.s32 %v2616, %v2874
      %v2876 = vrot.slane %v2355, %v2875
      %v2877 = vsel %vm2621, %v2876, %v2872
      %v2878 = vlaneseq
      %v2879 = vshrl.u32 %v2878, 7
      %v2880 = vsub.s32 %v2623, %v2879
      %v2881 = vrot.slane %v2358, %v2880
      %v2882 = vsel %vm2628, %v2881, %v2877
      %v2883 = vlaneseq
      %v2884 = vshrl.u32 %v2883, 7
      %v2885 = vsub.s32 %v2630, %v2884
      %v2886 = vrot.slane %v2361, %v2885
      %v2887 = vsel %vm2635, %v2886, %v2882
      %v2888 = vlaneseq
      %v2889 = vshrl.u32 %v2888, 7
      %v2890 = vsub.s32 %v2637, %v2889
      %v2891 = vrot.slane %v2364, %v2890
      %v2892 = vsel %vm2642, %v2891, %v2887
      %v2893 = vlaneseq
      %v2894 = vshrl.u32 %v2893, 7
      %v2895 = vsub.s32 %v2644, %v2894
      %v2896 = vrot.slane %v2367, %v2895
      %v2897 = vsel %vm2649, %v2896, %v2892
      %v2898 = vlaneseq
      %v2899 = vshrl.u32 %v2898, 7
      %v2900 = vsub.s32 %v2651, %v2899
      %v2901 = vrot.slane %v2370, %v2900
      %v2902 = vsel %vm2656, %v2901, %v2897
      %v2903 = vlaneseq
      %v2904 = vshrl.u32 %v2903, 7
      %v2905 = vsub.s32 %v2658, %v2904
      %v2906 = vrot.slane %v2373, %v2905
      %v2907 = vsel %vm2663, %v2906, %v2902
      %v2908 = vlaneseq
      %v2909 = vshrl.u32 %v2908, 7
      %v2910 = vsub.s32 %v2665, %v2909
      %v2911 = vrot.slane %v2376, %v2910
      %v2912 = vsel %vm2670, %v2911, %v2907
      %v2913 = vlaneseq
      %v2914 = vshrl.u32 %v2913, 7
      %v2915 = vsub.s32 %v2672, %v2914
      %v2916 = vrot.slane %v2379, %v2915
      %v2917 = vsel %vm2677, %v2916, %v2912
      %v2918 = vlaneseq
      %v2919 = vshrl.u32 %v2918, 7
      %v2920 = vsub.s32 %v2679, %v2919
      %v2921 = vrot.slane %v2382, %v2920
      %v2922 = vsel %vm2684, %v2921, %v2917
      %v2923 = vlaneseq
      %v2924 = vshrl.u32 %v2923, 7
      %v2925 = vsub.s32 %v2576, %v2924
      %v2926 = vrot.slane %v2385, %v2925
      %v2927 = vlaneseq
      %v2928 = vshrl.u32 %v2927, 7
      %v2929 = vsub.s32 %v2581, %v2928
      %v2930 = vrot.slane %v2388, %v2929
      %v2931 = vsel %vm2586, %v2930, %v2926
      %v2932 = vlaneseq
      %v2933 = vshrl.u32 %v2932, 7
      %v2934 = vsub.s32 %v2588, %v2933
      %v2935 = vrot.slane %v2391, %v2934
      %v2936 = vsel %vm2593, %v2935, %v2931
      %v2937 = vlaneseq
      %v2938 = vshrl.u32 %v2937, 7
      %v2939 = vsub.s32 %v2595, %v2938
      %v2940 = vrot.slane %v2394, %v2939
      %v2941 = vsel %vm2600, %v2940, %v2936
      %v2942 = vlaneseq
      %v2943 = vshrl.u32 %v2942, 7
      %v2944 = vsub.s32 %v2602, %v2943
      %v2945 = vrot.slane %v2397, %v2944
      %v2946 = vsel %vm2607, %v2945, %v2941
      %v2947 = vlaneseq
      %v2948 = vshrl.u32 %v2947, 7
      %v2949 = vsub.s32 %v2609, %v2948
      %v2950 = vrot.slane %v2400, %v2949
      %v2951 = vsel %vm2614, %v2950, %v2946
      %v2952 = vlaneseq
      %v2953 = vshrl.u32 %v2952, 7
      %v2954 = vsub.s32 %v2616, %v2953
      %v2955 = vrot.slane %v2403, %v2954
      %v2956 = vsel %vm2621, %v2955, %v2951
      %v2957 = vlaneseq
      %v2958 = vshrl.u32 %v2957, 7
      %v2959 = vsub.s32 %v2623, %v2958
      %v2960 = vrot.slane %v2406, %v2959
      %v2961 = vsel %vm2628, %v2960, %v2956
      %v2962 = vlaneseq
      %v2963 = vshrl.u32 %v2962, 7
      %v2964 = vsub.s32 %v2630, %v2963
      %v2965 = vrot.slane %v2409, %v2964
      %v2966 = vsel %vm2635, %v2965, %v2961
      %v2967 = vlaneseq
      %v2968 = vshrl.u32 %v2967, 7
      %v2969 = vsub.s32 %v2637, %v2968
      %v2970 = vrot.slane %v2412, %v2969
      %v2971 = vsel %vm2642, %v2970, %v2966
      %v2972 = vlaneseq
      %v2973 = vshrl.u32 %v2972, 7
      %v2974 = vsub.s32 %v2644, %v2973
      %v2975 = vrot.slane %v2415, %v2974
      %v2976 = vsel %vm2649, %v2975, %v2971
      %v2977 = vlaneseq
      %v2978 = vshrl.u32 %v2977, 7
      %v2979 = vsub.s32 %v2651, %v2978
      %v2980 = vrot.slane %v2418, %v2979
      %v2981 = vsel %vm2656, %v2980, %v2976
      %v2982 = vlaneseq
      %v2983 = vshrl.u32 %v2982, 7
      %v2984 = vsub.s32 %v2658, %v2983
      %v2985 = vrot.slane %v2421, %v2984
      %v2986 = vsel %vm2663, %v2985, %v2981
      %v2987 = vlaneseq
      %v2988 = vshrl.u32 %v2987, 7
      %v2989 = vsub.s32 %v2665, %v2988
      %v2990 = vrot.slane %v2424, %v2989
      %v2991 = vsel %vm2670, %v2990, %v2986
      %v2992 = vlaneseq
      %v2993 = vshrl.u32 %v2992, 7
      %v2994 = vsub.s32 %v2672, %v2993
      %v2995 = vrot.slane %v2427, %v2994
      %v2996 = vsel %vm2677, %v2995, %v2991
      %v2997 = vlaneseq
      %v2998 = vshrl.u32 %v2997, 7
      %v2999 = vsub.s32 %v2679, %v2998
      %v3000 = vrot.slane %v2430, %v2999
      %v3001 = vsel %vm2684, %v3000, %v2996
      %v3002 = vlaneseq
      %v3003 = vshrl.u32 %v3002, 7
      %v3004 = vsub.s32 %v2576, %v3003
      %v3005 = vrot.slane %v2433, %v3004
      %v3006 = vlaneseq
      %v3007 = vshrl.u32 %v3006, 7
      %v3008 = vsub.s32 %v2581, %v3007
      %v3009 = vrot.slane %v2436, %v3008
      %v3010 = vsel %vm2586, %v3009, %v3005
      %v3011 = vlaneseq
      %v3012 = vshrl.u32 %v3011, 7
      %v3013 = vsub.s32 %v2588, %v3012
      %v3014 = vrot.slane %v2439, %v3013
      %v3015 = vsel %vm2593, %v3014, %v3010
      %v3016 = vlaneseq
      %v3017 = vshrl.u32 %v3016, 7
      %v3018 = vsub.s32 %v2595, %v3017
      %v3019 = vrot.slane %v2442, %v3018
      %v3020 = vsel %vm2600, %v3019, %v3015
      %v3021 = vlaneseq
      %v3022 = vshrl.u32 %v3021, 7
      %v3023 = vsub.s32 %v2602, %v3022
      %v3024 = vrot.slane %v2445, %v3023
      %v3025 = vsel %vm2607, %v3024, %v3020
      %v3026 = vlaneseq
      %v3027 = vshrl.u32 %v3026, 7
      %v3028 = vsub.s32 %v2609, %v3027
      %v3029 = vrot.slane %v2448, %v3028
      %v3030 = vsel %vm2614, %v3029, %v3025
      %v3031 = vlaneseq
      %v3032 = vshrl.u32 %v3031, 7
      %v3033 = vsub.s32 %v2616, %v3032
      %v3034 = vrot.slane %v2451, %v3033
      %v3035 = vsel %vm2621, %v3034, %v3030
      %v3036 = vlaneseq
      %v3037 = vshrl.u32 %v3036, 7
      %v3038 = vsub.s32 %v2623, %v3037
      %v3039 = vrot.slane %v2454, %v3038
      %v3040 = vsel %vm2628, %v3039, %v3035
      %v3041 = vlaneseq
      %v3042 = vshrl.u32 %v3041, 7
      %v3043 = vsub.s32 %v2630, %v3042
      %v3044 = vrot.slane %v2457, %v3043
      %v3045 = vsel %vm2635, %v3044, %v3040
      %v3046 = vlaneseq
      %v3047 = vshrl.u32 %v3046, 7
      %v3048 = vsub.s32 %v2637, %v3047
      %v3049 = vrot.slane %v2460, %v3048
      %v3050 = vsel %vm2642, %v3049, %v3045
      %v3051 = vlaneseq
      %v3052 = vshrl.u32 %v3051, 7
      %v3053 = vsub.s32 %v2644, %v3052
      %v3054 = vrot.slane %v2463, %v3053
      %v3055 = vsel %vm2649, %v3054, %v3050
      %v3056 = vlaneseq
      %v3057 = vshrl.u32 %v3056, 7
      %v3058 = vsub.s32 %v2651, %v3057
      %v3059 = vrot.slane %v2466, %v3058
      %v3060 = vsel %vm2656, %v3059, %v3055
      %v3061 = vlaneseq
      %v3062 = vshrl.u32 %v3061, 7
      %v3063 = vsub.s32 %v2658, %v3062
      %v3064 = vrot.slane %v2469, %v3063
      %v3065 = vsel %vm2663, %v3064, %v3060
      %v3066 = vlaneseq
      %v3067 = vshrl.u32 %v3066, 7
      %v3068 = vsub.s32 %v2665, %v3067
      %v3069 = vrot.slane %v2472, %v3068
      %v3070 = vsel %vm2670, %v3069, %v3065
      %v3071 = vlaneseq
      %v3072 = vshrl.u32 %v3071, 7
      %v3073 = vsub.s32 %v2672, %v3072
      %v3074 = vrot.slane %v2475, %v3073
      %v3075 = vsel %vm2677, %v3074, %v3070
      %v3076 = vlaneseq
      %v3077 = vshrl.u32 %v3076, 7
      %v3078 = vsub.s32 %v2679, %v3077
      %v3079 = vrot.slane %v2478, %v3078
      %v3080 = vsel %vm2684, %v3079, %v3075
      %v3081 = vlaneseq
      %v3082 = vshrl.u32 %v3081, 7
      %v3083 = vsub.s32 %v2576, %v3082
      %v3084 = vrot.slane %v2481, %v3083
      %v3085 = vlaneseq
      %v3086 = vshrl.u32 %v3085, 7
      %v3087 = vsub.s32 %v2581, %v3086
      %v3088 = vrot.slane %v2484, %v3087
      %v3089 = vsel %vm2586, %v3088, %v3084
      %v3090 = vlaneseq
      %v3091 = vshrl.u32 %v3090, 7
      %v3092 = vsub.s32 %v2588, %v3091
      %v3093 = vrot.slane %v2487, %v3092
      %v3094 = vsel %vm2593, %v3093, %v3089
      %v3095 = vlaneseq
      %v3096 = vshrl.u32 %v3095, 7
      %v3097 = vsub.s32 %v2595, %v3096
      %v3098 = vrot.slane %v2490, %v3097
      %v3099 = vsel %vm2600, %v3098, %v3094
      %v3100 = vlaneseq
      %v3101 = vshrl.u32 %v3100, 7
      %v3102 = vsub.s32 %v2602, %v3101
      %v3103 = vrot.slane %v2493, %v3102
      %v3104 = vsel %vm2607, %v3103, %v3099
      %v3105 = vlaneseq
      %v3106 = vshrl.u32 %v3105, 7
      %v3107 = vsub.s32 %v2609, %v3106
      %v3108 = vrot.slane %v2496, %v3107
      %v3109 = vsel %vm2614, %v3108, %v3104
      %v3110 = vlaneseq
      %v3111 = vshrl.u32 %v3110, 7
      %v3112 = vsub.s32 %v2616, %v3111
      %v3113 = vrot.slane %v2499, %v3112
      %v3114 = vsel %vm2621, %v3113, %v3109
      %v3115 = vlaneseq
      %v3116 = vshrl.u32 %v3115, 7
      %v3117 = vsub.s32 %v2623, %v3116
      %v3118 = vrot.slane %v2502, %v3117
      %v3119 = vsel %vm2628, %v3118, %v3114
      %v3120 = vlaneseq
      %v3121 = vshrl.u32 %v3120, 7
      %v3122 = vsub.s32 %v2630, %v3121
      %v3123 = vrot.slane %v2505, %v3122
      %v3124 = vsel %vm2635, %v3123, %v3119
      %v3125 = vlaneseq
      %v3126 = vshrl.u32 %v3125, 7
      %v3127 = vsub.s32 %v2637, %v3126
      %v3128 = vrot.slane %v2508, %v3127
      %v3129 = vsel %vm2642, %v3128, %v3124
      %v3130 = vlaneseq
      %v3131 = vshrl.u32 %v3130, 7
      %v3132 = vsub.s32 %v2644, %v3131
      %v3133 = vrot.slane %v2511, %v3132
      %v3134 = vsel %vm2649, %v3133, %v3129
      %v3135 = vlaneseq
      %v3136 = vshrl.u32 %v3135, 7
      %v3137 = vsub.s32 %v2651, %v3136
      %v3138 = vrot.slane %v2514, %v3137
      %v3139 = vsel %vm2656, %v3138, %v3134
      %v3140 = vlaneseq
      %v3141 = vshrl.u32 %v3140, 7
      %v3142 = vsub.s32 %v2658, %v3141
      %v3143 = vrot.slane %v2517, %v3142
      %v3144 = vsel %vm2663, %v3143, %v3139
      %v3145 = vlaneseq
      %v3146 = vshrl.u32 %v3145, 7
      %v3147 = vsub.s32 %v2665, %v3146
      %v3148 = vrot.slane %v2520, %v3147
      %v3149 = vsel %vm2670, %v3148, %v3144
      %v3150 = vlaneseq
      %v3151 = vshrl.u32 %v3150, 7
      %v3152 = vsub.s32 %v2672, %v3151
      %v3153 = vrot.slane %v2523, %v3152
      %v3154 = vsel %vm2677, %v3153, %v3149
      %v3155 = vlaneseq
      %v3156 = vshrl.u32 %v3155, 7
      %v3157 = vsub.s32 %v2679, %v3156
      %v3158 = vrot.slane %v2526, %v3157
      %v3159 = vsel %vm2684, %v3158, %v3154
      %v3160 = vlaneseq
      %v3161 = vshrl.u32 %v3160, 7
      %v3162 = vsub.s32 %v2576, %v3161
      %v3163 = vrot.slane %v2529, %v3162
      %v3164 = vlaneseq
      %v3165 = vshrl.u32 %v3164, 7
      %v3166 = vsub.s32 %v2581, %v3165
      %v3167 = vrot.slane %v2532, %v3166
      %v3168 = vsel %vm2586, %v3167, %v3163
      %v3169 = vlaneseq
      %v3170 = vshrl.u32 %v3169, 7
      %v3171 = vsub.s32 %v2588, %v3170
      %v3172 = vrot.slane %v2535, %v3171
      %v3173 = vsel %vm2593, %v3172, %v3168
      %v3174 = vlaneseq
      %v3175 = vshrl.u32 %v3174, 7
      %v3176 = vsub.s32 %v2595, %v3175
      %v3177 = vrot.slane %v2538, %v3176
      %v3178 = vsel %vm2600, %v3177, %v3173
      %v3179 = vlaneseq
      %v3180 = vshrl.u32 %v3179, 7
      %v3181 = vsub.s32 %v2602, %v3180
      %v3182 = vrot.slane %v2541, %v3181
      %v3183 = vsel %vm2607, %v3182, %v3178
      %v3184 = vlaneseq
      %v3185 = vshrl.u32 %v3184, 7
      %v3186 = vsub.s32 %v2609, %v3185
      %v3187 = vrot.slane %v2544, %v3186
      %v3188 = vsel %vm2614, %v3187, %v3183
      %v3189 = vlaneseq
      %v3190 = vshrl.u32 %v3189, 7
      %v3191 = vsub.s32 %v2616, %v3190
      %v3192 = vrot.slane %v2547, %v3191
      %v3193 = vsel %vm2621, %v3192, %v3188
      %v3194 = vlaneseq
      %v3195 = vshrl.u32 %v3194, 7
      %v3196 = vsub.s32 %v2623, %v3195
      %v3197 = vrot.slane %v2550, %v3196
      %v3198 = vsel %vm2628, %v3197, %v3193
      %v3199 = vlaneseq
      %v3200 = vshrl.u32 %v3199, 7
      %v3201 = vsub.s32 %v2630, %v3200
      %v3202 = vrot.slane %v2553, %v3201
      %v3203 = vsel %vm2635, %v3202, %v3198
      %v3204 = vlaneseq
      %v3205 = vshrl.u32 %v3204, 7
      %v3206 = vsub.s32 %v2637, %v3205
      %v3207 = vrot.slane %v2556, %v3206
      %v3208 = vsel %vm2642, %v3207, %v3203
      %v3209 = vlaneseq
      %v3210 = vshrl.u32 %v3209, 7
      %v3211 = vsub.s32 %v2644, %v3210
      %v3212 = vrot.slane %v2559, %v3211
      %v3213 = vsel %vm2649, %v3212, %v3208
      %v3214 = vlaneseq
      %v3215 = vshrl.u32 %v3214, 7
      %v3216 = vsub.s32 %v2651, %v3215
      %v3217 = vrot.slane %v2562, %v3216
      %v3218 = vsel %vm2656, %v3217, %v3213
      %v3219 = vlaneseq
      %v3220 = vshrl.u32 %v3219, 7
      %v3221 = vsub.s32 %v2658, %v3220
      %v3222 = vrot.slane %v2565, %v3221
      %v3223 = vsel %vm2663, %v3222, %v3218
      %v3224 = vlaneseq
      %v3225 = vshrl.u32 %v3224, 7
      %v3226 = vsub.s32 %v2665, %v3225
      %v3227 = vrot.slane %v2568, %v3226
      %v3228 = vsel %vm2670, %v3227, %v3223
      %v3229 = vlaneseq
      %v3230 = vshrl.u32 %v3229, 7
      %v3231 = vsub.s32 %v2672, %v3230
      %v3232 = vrot.slane %v2571, %v3231
      %v3233 = vsel %vm2677, %v3232, %v3228
      %v3234 = vlaneseq
      %v3235 = vshrl.u32 %v3234, 7
      %v3236 = vsub.s32 %v2679, %v3235
      %v3237 = vrot.slane %v2574, %v3236
      %v3238 = vsel %vm2684, %v3237, %v3233
      %vm3239 = vcmask 1041409
      %v3240 = vsel %vm3239, %v2843, %v2685
      %vm3241 = vcmask 1042434
      %v3242 = vsel %vm3241, %v3001, %v3240
      %vm3243 = vcmask 1043459
      %v3244 = vsel %vm3243, %v3159, %v3242
      %v3245 = vsel %vm3239, %v2922, %v2764
      %v3246 = vsel %vm3241, %v3080, %v3245
      %v3247 = vsel %vm3243, %v3238, %v3246
      %v3248 = vcombine.low %v3244, %v3247
      %v3250 = vmul.f32 %v1678, %v3248
      %v3252 = vcombine.high %v3250, %v3250
      %v3254 = vpack.c.bf16 %v3250, %v3250
      %v3255 = vpack.c.bf16 %v3252, %v3252
      %v3256 = vld [vmem:[#allocation3] sm:$0xff]
      %v3257 = vpack.c.bf16 %v1421, %v1417
      %v3258 = vpack.c.bf16 %v1423, %v1419
      %v3259 = vpack.c.bf16 %v1429, %v1425
      %v3260 = vpack.c.bf16 %v1431, %v1427
      %v3261 = vpack.c.bf16 %v1437, %v1433
      %v3262 = vpack.c.bf16 %v1439, %v1435
      %v3263 = vpack.c.bf16 %v1445, %v1441
      %v3264 = vpack.c.bf16 %v1447, %v1443
      %v3265 = vpack.c.bf16 %v1453, %v1449
      %v3266 = vpack.c.bf16 %v1455, %v1451
      %v3267 = vpack.c.bf16 %v1461, %v1457
      %v3268 = vpack.c.bf16 %v1463, %v1459
      %v3269 = vpack.c.bf16 %v1469, %v1465
      %v3270 = vpack.c.bf16 %v1471, %v1467
      %v3271 = vpack.c.bf16 %v1477, %v1473
      %v3272 = vpack.c.bf16 %v1479, %v1475
      %v3273 = vpack.c.bf16 %v1485, %v1481
      %v3274 = vpack.c.bf16 %v1487, %v1483
      %v3275 = vpack.c.bf16 %v1493, %v1489
      %v3276 = vpack.c.bf16 %v1495, %v1491
      %v3277 = vpack.c.bf16 %v1501, %v1497
      %v3278 = vpack.c.bf16 %v1503, %v1499
      %v3279 = vpack.c.bf16 %v1509, %v1505
      %v3280 = vpack.c.bf16 %v1511, %v1507
      %v3281 = vpack.c.bf16 %v1517, %v1513
      %v3282 = vpack.c.bf16 %v1519, %v1515
      %v3283 = vpack.c.bf16 %v1525, %v1521
      %v3284 = vpack.c.bf16 %v1527, %v1523
      %v3285 = vpack.c.bf16 %v1533, %v1529
      %v3286 = vpack.c.bf16 %v1535, %v1531
      %v3287 = vpack.c.bf16 %v1541, %v1537
      %v3288 = vpack.c.bf16 %v1543, %v1539
      %3289 = vmatprep.subr.bf16.mxu0 %v3272
      %3290 = vmatpush1.bf16.msra.mxu0 %v3271
      %3291 = vmatprep.subr.bf16.mxu0 %v3270
      %3292 = vmatpush1.bf16.msra.mxu0 %v3269
      %3293 = vmatprep.subr.bf16.mxu0 %v3268
      %3294 = vmatpush1.bf16.msra.mxu0 %v3267
      %3295 = vmatprep.subr.bf16.mxu0 %v3266
      %3296 = vmatpush1.bf16.msra.mxu0 %v3265
      %3297 = vmatprep.subr.bf16.mxu0 %v3264
      %3298 = vmatpush1.bf16.msra.mxu0 %v3263
      %3299 = vmatprep.subr.bf16.mxu0 %v3262
      %3300 = vmatpush1.bf16.msra.mxu0 %v3261
      %3301 = vmatprep.subr.bf16.mxu0 %v3260
      %3302 = vmatpush1.bf16.msra.mxu0 %v3259
      %3303 = vmatprep.subr.bf16.mxu0 %v3258
      %3304 = vmatpush1.bf16.msra.mxu0 %v3257
      %3305 = vmatprep.subr.bf16.mxu0 %v3288
      %3306 = vmatpush2.bf16.msra.mxu0 %v3287
      %3307 = vmatprep.subr.bf16.mxu0 %v3286
      %3308 = vmatpush2.bf16.msra.mxu0 %v3285
      %3309 = vmatprep.subr.bf16.mxu0 %v3284
      %3310 = vmatpush2.bf16.msra.mxu0 %v3283
      %3311 = vmatprep.subr.bf16.mxu0 %v3282
      %3312 = vmatpush2.bf16.msra.mxu0 %v3281
      %3313 = vmatprep.subr.bf16.mxu0 %v3280
      %3314 = vmatpush2.bf16.msra.mxu0 %v3279
      %3315 = vmatprep.subr.bf16.mxu0 %v3278
      %3316 = vmatpush2.bf16.msra.mxu0 %v3277
      %3317 = vmatprep.subr.bf16.mxu0 %v3276
      %3318 = vmatpush2.bf16.msra.mxu0 %v3275
      %3319 = vmatprep.subr.bf16.mxu0 %v3274
      %3320 = vmatpush2.bf16.msra.mxu0 %v3273
      %3321 = vmatprep.mubr.bf16.mxu0 %v3255
      %3322 = vmatmul.mubr.bf16.gmra.mxu0 %v3254
      %v3323 = vpop.f32.mrf.mxu0
      %v3324 = vadd.f32 0.0, %v3323
      %v3325 = vpop.f32.mrf.mxu0
      %v3326 = vadd.f32 0.0, %v3325
      %v3327 = vpop.f32.mrf.mxu0
      %v3328 = vpop.f32.mrf.mxu0
      %3329 = vdwg.mxu0
      %v3332 = vcombine.low %v3324, %v3326
      %v3334 = vadd.f32 %v3256, %v3332
      %3335 = vst [vmem:[#allocation3] sm:$0xff] %v3334
      // Predicated region
      $region57: #{lspm_forward.1} parent=51 // pred_check
        %p3336 = pneg %p355
      $region58: #{lspm_forward.1} parent=51 // pred_check_branch
        %3338 = sbr.rel (%p3336) target = $region60
      $region59: #{lspm_forward.1} parent=51 // pred_region
        %v3339 = vld [vmem:[#allocation3] sm:$0xff]
        %3340 = vst [vmem:[%s353] sm:$0xff] %v3339
      $region60: #{lspm_forward.1} parent=51 // pred_fallthru
        _
      %p3341 = scmp.lt.s32.totalorder %s23, 1
      %s3342 = scalar_select %p3341, %s23, 1
      %s3343 = smul.addr %s3342, 2
      %s3344 = smul.addr %s3343, 4
      %s3345 = scalar_lea.vmem %s8, %s3344
      // Predicated region
      $region61: #{lspm_forward.1} parent=51 // pred_check
        %p3346 = pneg %p229
      $region62: #{lspm_forward.1} parent=51 // pred_check_branch
        %3348 = sbr.rel (%p3346) target = $region64
      $region63: #{lspm_forward.1} parent=51 // pred_region
        _
      $region64: #{lspm_forward.1} parent=51 // pred_fallthru
        _
    $region52: #{lspm_forward.1} parent=5 // pred_fallthru
      _
    %p3349 = scmp.le.s32.totalorder 2, %s14
    // Predicated region
    $region65: #{lspm_forward.1} parent=5 // pred_check
      %p3350 = pneg %p3349
    $region66: #{lspm_forward.1} parent=5 // pred_check_branch
      %3352 = sbr.rel (%p3350) target = $region68
    $region67: #{lspm_forward.1} parent=5 // pred_region
      %s3353 = ssub.s32 %s14, 2
      // Predicated region
      $region69: #{lspm_forward.1} parent=67 // pred_check
        %p3354 = pneg %p235
      $region70: #{lspm_forward.1} parent=67 // pred_check_branch
        %3356 = sbr.rel (%p3354) target = $region72
      $region71: #{lspm_forward.1} parent=67 // pred_region
        %p3357 = scmp.lt.s32.totalorder %s25, 1
        %s3358 = scalar_select %p3357, %s25, 1
        %s3359 = smul.addr %s3358, 2
        %s3360 = smul.addr %s3359, 4
        %s3361 = scalar_lea.vmem %s8, %s3360
      $region72: #{lspm_forward.1} parent=67 // pred_fallthru
        _
    $region68: #{lspm_forward.1} parent=5 // pred_fallthru
      _
  $region6: #{lspm_forward.1} parent=0 // loop_footer
    %s18 = sadd.s32 1, %s14
  $region7: #{lspm_forward.1} parent=0 // loop_footer_branch
    %13 = sbr.rel target = $region3
  $region8: #{lspm_forward.1} parent=0 // loop_exit
    _

</llo_original>
